<compile_context>
chip_gen: v7x
topology: tpu7x:2x2x1
jax: 0.10.0
libtpu: 0.0.40
codegen_flags: <defaults>
</compile_context>

<pallas_src>
import functools

import numpy as np
import jax
import jax.numpy as jnp
from jax.experimental import pallas as pl
from jax.experimental.pallas import tpu as pltpu


# ------------------------------ fused kernel ------------------------------

def _mra_kernel(x_ref, wall_ref, colmix_ref, dall_ref, consts_ref, out_ref,
                m_scr, pad_scr, br_scr, *,
                N, H, W, C, Hc, Wc, P, dhs, eps, mxu_dtype):
    f32 = jnp.float32
    LW = W * C                  # full-resolution lane width      (w, c)
    LWc = Wc * C                # compressed "tem" lane width     (wc, c)
    L6 = Wc * 6 * C             # compressed tem+key lane width
    LP = (Wc + 2 * P) * C       # zero-padded compressed lane width
    NHc = N * Hc
    HP = Hc + 2 * P

    def mm(a, b):
        return jnp.dot(a.astype(mxu_dtype), b, preferred_element_type=f32)

    def lane_tile(v):           # (1, C) -> (1, Wc*C), repeated per column wc
        return jnp.concatenate([v] * Wc, axis=1)

    def lane_fold(v):           # (1, Wc*C) -> (1, C), summed over columns wc
        r = v[:, 0:C]
        for w in range(1, Wc):
            r = r + v[:, w * C:(w + 1) * C]
        return r

    # packed small constants
    bias_cmp = consts_ref[0:1, :]            # (1, Wc*6C)  [btem | bkey]
    bias_dec = consts_ref[1:2, :LW]          # (1, W*C)
    gamma = consts_ref[2:3, :C]              # (1, C)
    beta = consts_ref[3:4, :C]               # (1, C)

    # --- stage 1: MaxPool2d(3, stride=1, pad=1), separable, per image -------
    # replicate-clamped borders are equivalent to excluding out-of-range taps
    for n in range(N):
        xn = x_ref[n * H:(n + 1) * H, :]                       # (H, W*C)
        up = jnp.concatenate([xn[:1, :], xn[:H - 1, :]], axis=0)
        dn = jnp.concatenate([xn[1:, :], xn[H - 1:, :]], axis=0)
        rmax = jnp.maximum(jnp.maximum(xn, up), dn)            # vertical max
        lf = jnp.concatenate([rmax[:, :C], rmax[:, :LW - C]], axis=1)
        rt = jnp.concatenate([rmax[:, C:], rmax[:, LW - C:]], axis=1)
        m_scr[n * H:(n + 1) * H, :] = jnp.maximum(jnp.maximum(rmax, lf), rt)

    # --- stage 2: compress Conv2d(C, 6C, k=3, stride=3), batched over N -----
    cmp = jnp.zeros((NHc, L6), f32)
    for kh in range(3):
        rows = m_scr[pl.ds(kh, NHc, stride=3), :]              # rows 3r+kh
        cmp = cmp + mm(rows, wall_ref[kh])
    cmp = cmp + bias_cmp
    tem = cmp[:, :LWc]                                         # (N*Hc, Wc*C)
    key = cmp[:, LWc:]                                         # (N*Hc, Wc*5C)

    # --- stage 3: H_att1 + V_att1 + inv_h(H_att2(h(.))) + inv_v(V_att2(v(.)))
    #     folded (exactly) into per-dh column-mix matmuls on zero-padded tem -
    pad_scr[...] = jnp.zeros((N * HP, LP), f32)
    for n in range(N):
        r0 = n * HP
        pad_scr[r0 + P:r0 + P + Hc, P * C:P * C + LWc] = tem[n * Hc:(n + 1) * Hc, :]
        acc = jnp.zeros((Hc, LWc), f32)
        for i, dh in enumerate(dhs):
            sl = pad_scr[r0 + P + dh:r0 + P + dh + Hc, :]      # (Hc, LP)
            acc = acc + mm(sl, colmix_ref[i])
        br_scr[n * Hc:(n + 1) * Hc, :] = acc

    # --- stage 4: BatchNorm2d with batch statistics (two-pass, biased var) --
    br = br_scr[...]                                           # (N*Hc, Wc*C)
    inv_cnt = 1.0 / float(N * Hc * Wc)
    mean = lane_fold(jnp.sum(br, axis=0, keepdims=True)) * inv_cnt
    cent = br - lane_tile(mean)
    var = lane_fold(jnp.sum(cent * cent, axis=0, keepdims=True)) * inv_cnt
    scale = gamma * jax.lax.rsqrt(var + eps)
    bn = cent * lane_tile(scale) + lane_tile(beta)

    # --- stage 5: decompress ConvTranspose2d(6C, C, k=3, s=3, p=1, op=2) ----
    attcat = jnp.concatenate([bn, key], axis=1)                # (N*Hc, Wc*6C)
    contrib = [mm(attcat, dall_ref[kh]) for kh in range(3)]    # each (N*Hc, W*C)

    # output row 3q+p of each image comes from kernel row kh = (p+1) % 3:
    #   p=0 <- kh=1 (hc=q), p=1 <- kh=2 (hc=q), p=2 <- kh=0 (hc=q+1)
    rowid = jax.lax.broadcasted_iota(jnp.int32, (NHc, LW), 0)
    last = rowid == (Hc - 1)
    for n in range(1, N):
        last = jnp.logical_or(last, rowid == ((n + 1) * Hc - 1))
    shifted = jnp.concatenate(
        [contrib[0][1:, :], jnp.zeros((1, LW), f32)], axis=0)
    g = (contrib[1], contrib[2], jnp.where(last, 0.0, shifted))

    # --- stage 6: sigmoid gate * original input, phase-major output ---------
    for p in range(3):
        x_p = x_ref[pl.ds(p, NHc, stride=3), :]                # rows 3q+p
        gate = jax.nn.sigmoid(g[p] + bias_dec)
        out_ref[p * NHc:(p + 1) * NHc, :] = x_p * gate


# ------------------------------ MRA forward --------------------------------

def mra_forward(x_nchw, params, *, channel, att_kernel, mxu_dtype=jnp.float32):
    C = int(channel)
    ak = int(att_kernel)
    pad = ak // 2
    P = pad + 1                                    # max |tap offset|
    N, Cin, H, W = x_nchw.shape
    if Cin != C:
        raise ValueError("input channel dim must equal `channel`")
    # TODO(synk): general H != W / H % 3 != 0 path (nearest resize of the gate,
    #             non-square shear inverses) is not implemented.
    if H != W or H % 3 != 0:
        raise ValueError("MRA Pallas kernel requires square spatial dims divisible by 3")
    Hc, Wc = H // 3, W // 3
    f32 = jnp.float32
    LW, LWc, L6 = W * C, Wc * C, Wc * 6 * C
    LP = (Wc + 2 * P) * C

    # ---- input layout: NCHW -> (N*H, W*C), channels fused into lanes -------
    x2d = jnp.transpose(x_nchw.astype(f32), (0, 2, 3, 1)).reshape(N * H, LW)

    # ---- compress conv folded into per-kh (W*C, Wc*6C) lane-mix matrices ---
    sel3 = np.zeros((3, W, Wc), np.float32)                    # [w == 3wc+kw]
    for kw in range(3):
        sel3[kw, 3 * np.arange(Wc) + kw, np.arange(Wc)] = 1.0
    w_cmp = params["compress_w"].astype(f32)                   # (6C, C, 3, 3)
    Tfull = jnp.einsum('kxv,ocyk->yxcvo', jnp.asarray(sel3), w_cmp)
    Wtem = Tfull[..., :C].reshape(3, LW, LWc)
    Wkey = Tfull[..., C:].reshape(3, LW, Wc * 5 * C)
    Wall = jnp.concatenate([Wtem, Wkey], axis=2)               # (3, W*C, Wc*6C)

    # ---- four depthwise branches: shears folded analytically into taps -----
    H1 = params["H_att1_w"].astype(f32)[:, 0]                  # (C, ak, 3)
    V1 = params["V_att1_w"].astype(f32)[:, 0]                  # (C, 3, ak)
    H2 = params["H_att2_w"].astype(f32)[:, 0]
    V2 = params["V_att2_w"].astype(f32)[:, 0]
    taps = {}

    def add_tap(dh, dw, wvec):
        taps[(dh, dw)] = taps.get((dh, dw), 0.0) + wvec

    for kh in range(ak):
        for kw in range(3):
            dh = kh - pad
            add_tap(dh, kw - 1, H1[:, kh, kw])                 # H_att1
            add_tap(dh, (kw - 1) - dh, H2[:, kh, kw])          # inv_h(H_att2(h(.)))
    for kh in range(3):
        for kw in range(ak):
            dw = kw - pad
            add_tap(kh - 1, dw, V1[:, kh, kw])                 # V_att1
            add_tap((kh - 1) - dw, dw, V2[:, kh, kw])          # inv_v(V_att2(v(.)))

    tap_keys = sorted(taps.keys())
    T = len(tap_keys)
    dhs = tuple(sorted({dh for (dh, _) in tap_keys}))
    tapW = jnp.stack([taps[k] for k in tap_keys], axis=0)      # (T, C)
    colscale = jnp.tile(tapW, (1, Wc))                         # (T, Wc*C)
    place = np.zeros((T, LP, LWc), np.float32)
    group = np.zeros((len(dhs), T), np.float32)
    dh_idx = {dh: i for i, dh in enumerate(dhs)}
    for t, (dh, dw) in enumerate(tap_keys):
        group[dh_idx[dh], t] = 1.0
        for wc in range(Wc):
            for c in range(C):
                place[t, (wc + P + dw) * C + c, wc * C + c] = 1.0
    ColMix = jnp.einsum('it,tpq,tq->ipq', jnp.asarray(group),
                        jnp.asarray(place), colscale)          # (n_dh, LP, Wc*C)

    # ---- decompress ConvTranspose folded into per-kh (Wc*6C, W*C) matrices -
    selD = np.zeros((3, Wc, W), np.float32)                    # [w == 3wc+kw-1]
    for kw in range(3):
        for v in range(Wc):
            w_out = 3 * v + kw - 1
            if 0 <= w_out < W:
                selD[kw, v, w_out] = 1.0
    w_dec = params["decompress_w"].astype(f32)                 # (6C, C, 3, 3)
    Dfull = jnp.einsum('kvx,icyk->yvixc', jnp.asarray(selD), w_dec)
    Dbn = Dfull[:, :, :C].reshape(3, LWc, LW)
    Dkey = Dfull[:, :, C:].reshape(3, Wc * 5 * C, LW)
    Dall = jnp.concatenate([Dbn, Dkey], axis=1)                # (3, Wc*6C, W*C)

    # ---- packed small constants: [compress bias | decompress bias | g | b] -
    b_cmp = params["compress_b"].astype(f32)
    bias_cmp = jnp.concatenate([jnp.tile(b_cmp[:C], Wc), jnp.tile(b_cmp[C:], Wc)])
    bias_dec = jnp.tile(params["decompress_b"].astype(f32), W)
    consts = jnp.zeros((4, L6), f32)
    consts = consts.at[0].set(bias_cmp)
    consts = consts.at[1, :LW].set(bias_dec)
    consts = consts.at[2, :C].set(params["norm_g"].astype(f32))
    consts = consts.at[3, :C].set(params["norm_b"].astype(f32))

    if mxu_dtype != jnp.float32:          # bf16 MXU path (v6e/v7x), f32 accum
        Wall = Wall.astype(mxu_dtype)
        Dall = Dall.astype(mxu_dtype)
        ColMix = ColMix.astype(mxu_dtype)

    kernel = functools.partial(
        _mra_kernel, N=N, H=H, W=W, C=C, Hc=Hc, Wc=Wc, P=P, dhs=dhs,
        eps=1e-5, mxu_dtype=mxu_dtype)

    # Whole batch in one grid-less invocation (BatchNorm couples the batch).
    # TODO(synk): v7x dual-TensorCore split (grid over batch/row tiles with
    #             cross-core BN partial sums) and a BlockSpec-pipelined grid
    #             for large H/W with per-generation VMEM budgets.
    out = pl.pallas_call(
        kernel,
        out_shape=jax.ShapeDtypeStruct((3 * N * Hc, LW), f32),
        scratch_shapes=[
            pltpu.VMEM((N * H, LW), f32),               # max-pool result
            pltpu.VMEM((N * (Hc + 2 * P), LP), f32),    # zero-padded x_tem
            pltpu.VMEM((N * Hc, LWc), f32),             # branch sum (pre-BN)
        ],
    )(x2d, Wall, ColMix, Dall, consts)

    # phase-major -> NHWC -> NCHW (pure layout glue on a tiny tensor)
    out = out.reshape(3, N, Hc, W, C)
    out = jnp.transpose(out, (1, 2, 0, 3, 4)).reshape(N, H, W, C)
    return jnp.transpose(out, (0, 3, 1, 2))


# ----------------------------- parameter init ------------------------------

def init_params(key, channel, att_kernel):
    C = channel
    ks = jax.random.split(key, 10)

    def rn(k, shape, scale=0.1):
        return scale * jax.random.normal(k, shape, jnp.float32)

    return dict(
        compress_w=rn(ks[0], (6 * C, C, 3, 3)),
        compress_b=rn(ks[1], (6 * C,)),
        H_att1_w=rn(ks[2], (C, 1, att_kernel, 3)),
        V_att1_w=rn(ks[3], (C, 1, 3, att_kernel)),
        H_att2_w=rn(ks[4], (C, 1, att_kernel, 3)),
        V_att2_w=rn(ks[5], (C, 1, 3, att_kernel)),
        norm_g=1.0 + rn(ks[6], (C,)),
        norm_b=rn(ks[7], (C,)),
        decompress_w=rn(ks[8], (6 * C, C, 3, 3)),
        decompress_b=rn(ks[9], (C,)),
    )


if __name__ == "__main__":
    key = jax.random.PRNGKey(0)
    k_x, k_p = jax.random.split(key)

    channel, att_kernel = 4, 7
    N, H, W = 2, 18, 18            # square, divisible by 3 (exact compress/decompress)
    x = jax.random.normal(k_x, (N, channel, H, W), jnp.float32)   # NCHW input
    params = init_params(k_p, channel, att_kernel)

    fwd = jax.jit(functools.partial(mra_forward, channel=channel,
                                    att_kernel=att_kernel))
    out = fwd(x, params)
    jax.block_until_ready(out)

    assert out.shape == (N, channel, H, W)
    assert bool(jnp.all(jnp.isfinite(out)))
    print("KERNEL_OK")
</pallas_src>

<mosaic_0001>
module attributes {stable_mosaic.version = 11 : i64} {
  func.func @_mra_kernel(%arg0: memref<36x72xf32, #tpu.memory_space<vmem>>, %arg1: memref<3x72x144xf32, #tpu.memory_space<vmem>>, %arg2: memref<9x56x24xf32, #tpu.memory_space<vmem>>, %arg3: memref<3x144x72xf32, #tpu.memory_space<vmem>>, %arg4: memref<4x144xf32, #tpu.memory_space<vmem>>, %arg5: memref<36x72xf32, #tpu.memory_space<vmem>>, %arg6: memref<36x72xf32, #tpu.memory_space<vmem>>, %arg7: memref<28x56xf32, #tpu.memory_space<vmem>>, %arg8: memref<12x24xf32, #tpu.memory_space<vmem>>) attributes {dimension_semantics = [], scalar_prefetch = 0 : i64, scratch_operands = 3 : i64, tpu.core_type = #tpu.core_type<tc>} {
    %c0 = arith.constant 0 : index
    %c0_0 = arith.constant 0 : index
    %0 = vector.load %arg4[%c0, %c0_0] : memref<4x144xf32, #tpu.memory_space<vmem>>, vector<1x144xf32>
    %c1 = arith.constant 1 : index
    %c0_1 = arith.constant 0 : index
    %1 = vector.load %arg4[%c1, %c0_1] : memref<4x144xf32, #tpu.memory_space<vmem>>, vector<1x72xf32>
    %c2 = arith.constant 2 : index
    %c0_2 = arith.constant 0 : index
    %2 = vector.load %arg4[%c2, %c0_2] : memref<4x144xf32, #tpu.memory_space<vmem>>, vector<1x4xf32>
    %c3 = arith.constant 3 : index
    %c0_3 = arith.constant 0 : index
    %3 = vector.load %arg4[%c3, %c0_3] : memref<4x144xf32, #tpu.memory_space<vmem>>, vector<1x4xf32>
    %c0_4 = arith.constant 0 : index
    %c0_5 = arith.constant 0 : index
    %4 = vector.load %arg0[%c0_4, %c0_5] : memref<36x72xf32, #tpu.memory_space<vmem>>, vector<18x72xf32>
    %5 = vector.extract_strided_slice %4 {offsets = [0, 0], sizes = [1, 72], strides = [1, 1]} : vector<18x72xf32> to vector<1x72xf32>
    %6 = vector.extract_strided_slice %4 {offsets = [0, 0], sizes = [17, 72], strides = [1, 1]} : vector<18x72xf32> to vector<17x72xf32>
    %7 = tpu.concatenate %5, %6 in 0 : vector<1x72xf32>, vector<17x72xf32> -> vector<18x72xf32>
    %8 = vector.extract_strided_slice %4 {offsets = [1, 0], sizes = [17, 72], strides = [1, 1]} : vector<18x72xf32> to vector<17x72xf32>
    %9 = vector.extract_strided_slice %4 {offsets = [17, 0], sizes = [1, 72], strides = [1, 1]} : vector<18x72xf32> to vector<1x72xf32>
    %10 = tpu.concatenate %8, %9 in 0 : vector<17x72xf32>, vector<1x72xf32> -> vector<18x72xf32>
    %11 = arith.maximumf %4, %7 : vector<18x72xf32>
    %12 = arith.maximumf %11, %10 : vector<18x72xf32>
    %13 = vector.extract_strided_slice %12 {offsets = [0, 0], sizes = [18, 4], strides = [1, 1]} : vector<18x72xf32> to vector<18x4xf32>
    %14 = vector.extract_strided_slice %12 {offsets = [0, 0], sizes = [18, 68], strides = [1, 1]} : vector<18x72xf32> to vector<18x68xf32>
    %15 = tpu.concatenate %13, %14 in 1 : vector<18x4xf32>, vector<18x68xf32> -> vector<18x72xf32>
    %16 = vector.extract_strided_slice %12 {offsets = [0, 4], sizes = [18, 68], strides = [1, 1]} : vector<18x72xf32> to vector<18x68xf32>
    %17 = vector.extract_strided_slice %12 {offsets = [0, 68], sizes = [18, 4], strides = [1, 1]} : vector<18x72xf32> to vector<18x4xf32>
    %18 = tpu.concatenate %16, %17 in 1 : vector<18x68xf32>, vector<18x4xf32> -> vector<18x72xf32>
    %19 = arith.maximumf %12, %15 : vector<18x72xf32>
    %20 = arith.maximumf %19, %18 : vector<18x72xf32>
    %c0_6 = arith.constant 0 : index
    %c0_7 = arith.constant 0 : index
    %21 = vector.load %arg6[%c0_6, %c0_7] : memref<36x72xf32, #tpu.memory_space<vmem>>, vector<18x72xf32>
    tpu.vector_store %arg6[%c0_6, %c0_7], %20 {strides = array<i32>} : memref<36x72xf32, #tpu.memory_space<vmem>>, vector<18x72xf32>,
    %c18 = arith.constant 18 : index
    %c0_8 = arith.constant 0 : index
    %22 = vector.load %arg0[%c18, %c0_8] : memref<36x72xf32, #tpu.memory_space<vmem>>, vector<18x72xf32>
    %23 = vector.extract_strided_slice %22 {offsets = [0, 0], sizes = [1, 72], strides = [1, 1]} : vector<18x72xf32> to vector<1x72xf32>
    %24 = vector.extract_strided_slice %22 {offsets = [0, 0], sizes = [17, 72], strides = [1, 1]} : vector<18x72xf32> to vector<17x72xf32>
    %25 = tpu.concatenate %23, %24 in 0 : vector<1x72xf32>, vector<17x72xf32> -> vector<18x72xf32>
    %26 = vector.extract_strided_slice %22 {offsets = [1, 0], sizes = [17, 72], strides = [1, 1]} : vector<18x72xf32> to vector<17x72xf32>
    %27 = vector.extract_strided_slice %22 {offsets = [17, 0], sizes = [1, 72], strides = [1, 1]} : vector<18x72xf32> to vector<1x72xf32>
    %28 = tpu.concatenate %26, %27 in 0 : vector<17x72xf32>, vector<1x72xf32> -> vector<18x72xf32>
    %29 = arith.maximumf %22, %25 : vector<18x72xf32>
    %30 = arith.maximumf %29, %28 : vector<18x72xf32>
    %31 = vector.extract_strided_slice %30 {offsets = [0, 0], sizes = [18, 4], strides = [1, 1]} : vector<18x72xf32> to vector<18x4xf32>
    %32 = vector.extract_strided_slice %30 {offsets = [0, 0], sizes = [18, 68], strides = [1, 1]} : vector<18x72xf32> to vector<18x68xf32>
    %33 = tpu.concatenate %31, %32 in 1 : vector<18x4xf32>, vector<18x68xf32> -> vector<18x72xf32>
    %34 = vector.extract_strided_slice %30 {offsets = [0, 4], sizes = [18, 68], strides = [1, 1]} : vector<18x72xf32> to vector<18x68xf32>
    %35 = vector.extract_strided_slice %30 {offsets = [0, 68], sizes = [18, 4], strides = [1, 1]} : vector<18x72xf32> to vector<18x4xf32>
    %36 = tpu.concatenate %34, %35 in 1 : vector<18x68xf32>, vector<18x4xf32> -> vector<18x72xf32>
    %37 = arith.maximumf %30, %33 : vector<18x72xf32>
    %38 = arith.maximumf %37, %36 : vector<18x72xf32>
    %c18_9 = arith.constant 18 : index
    %c0_10 = arith.constant 0 : index
    %39 = vector.load %arg6[%c18_9, %c0_10] : memref<36x72xf32, #tpu.memory_space<vmem>>, vector<18x72xf32>
    tpu.vector_store %arg6[%c18_9, %c0_10], %38 {strides = array<i32>} : memref<36x72xf32, #tpu.memory_space<vmem>>, vector<18x72xf32>,
    %cst = arith.constant 0.000000e+00 : f32
    %40 = vector.broadcast %cst : f32 to vector<12x144xf32>
    %c0_11 = arith.constant 0 : index
    %c0_12 = arith.constant 0 : index
    %41 = tpu.strided_load %arg6[%c0_11, %c0_12] {strides = array<i32: 3, 1>} : memref<36x72xf32, #tpu.memory_space<vmem>>, vector<12x72xf32>
    %c0_13 = arith.constant 0 : index
    %c0_14 = arith.constant 0 : index
    %c0_15 = arith.constant 0 : index
    %42 = vector.load %arg1[%c0_13, %c0_14, %c0_15] : memref<3x72x144xf32, #tpu.memory_space<vmem>>, vector<1x72x144xf32>
    %43 = vector.shape_cast %42 : vector<1x72x144xf32> to vector<72x144xf32>
    %cst_16 = arith.constant dense<0.000000e+00> : vector<12x144xf32>
    %44 = tpu.matmul %41, %43, %cst_16 {dimension_numbers = #tpu.dot_dimension_numbers<[1], [0], [0], [1], [0, 0, 1, 1], [], []>} : vector<12x72xf32>, vector<72x144xf32>, vector<12x144xf32> -> vector<12x144xf32>
    %45 = arith.addf %40, %44 : vector<12x144xf32>
    %c1_17 = arith.constant 1 : index
    %c0_18 = arith.constant 0 : index
    %46 = tpu.strided_load %arg6[%c1_17, %c0_18] {strides = array<i32: 3, 1>} : memref<36x72xf32, #tpu.memory_space<vmem>>, vector<12x72xf32>
    %c1_19 = arith.constant 1 : index
    %c0_20 = arith.constant 0 : index
    %c0_21 = arith.constant 0 : index
    %47 = vector.load %arg1[%c1_19, %c0_20, %c0_21] : memref<3x72x144xf32, #tpu.memory_space<vmem>>, vector<1x72x144xf32>
    %48 = vector.shape_cast %47 : vector<1x72x144xf32> to vector<72x144xf32>
    %cst_22 = arith.constant dense<0.000000e+00> : vector<12x144xf32>
    %49 = tpu.matmul %46, %48, %cst_22 {dimension_numbers = #tpu.dot_dimension_numbers<[1], [0], [0], [1], [0, 0, 1, 1], [], []>} : vector<12x72xf32>, vector<72x144xf32>, vector<12x144xf32> -> vector<12x144xf32>
    %50 = arith.addf %45, %49 : vector<12x144xf32>
    %c2_23 = arith.constant 2 : index
    %c0_24 = arith.constant 0 : index
    %51 = tpu.strided_load %arg6[%c2_23, %c0_24] {strides = array<i32: 3, 1>} : memref<36x72xf32, #tpu.memory_space<vmem>>, vector<12x72xf32>
    %c2_25 = arith.constant 2 : index
    %c0_26 = arith.constant 0 : index
    %c0_27 = arith.constant 0 : index
    %52 = vector.load %arg1[%c2_25, %c0_26, %c0_27] : memref<3x72x144xf32, #tpu.memory_space<vmem>>, vector<1x72x144xf32>
    %53 = vector.shape_cast %52 : vector<1x72x144xf32> to vector<72x144xf32>
    %cst_28 = arith.constant dense<0.000000e+00> : vector<12x144xf32>
    %54 = tpu.matmul %51, %53, %cst_28 {dimension_numbers = #tpu.dot_dimension_numbers<[1], [0], [0], [1], [0, 0, 1, 1], [], []>} : vector<12x72xf32>, vector<72x144xf32>, vector<12x144xf32> -> vector<12x144xf32>
    %55 = arith.addf %50, %54 : vector<12x144xf32>
    %56 = vector.broadcast %0 : vector<1x144xf32> to vector<12x144xf32>
    %57 = arith.addf %55, %56 : vector<12x144xf32>
    %58 = vector.extract_strided_slice %57 {offsets = [0, 0], sizes = [12, 24], strides = [1, 1]} : vector<12x144xf32> to vector<12x24xf32>
    %59 = vector.extract_strided_slice %57 {offsets = [0, 24], sizes = [12, 120], strides = [1, 1]} : vector<12x144xf32> to vector<12x120xf32>
    %cst_29 = arith.constant 0.000000e+00 : f32
    %60 = vector.broadcast %cst_29 : f32 to vector<28x56xf32>
    %c0_30 = arith.constant 0 : index
    %c0_31 = arith.constant 0 : index
    %61 = vector.load %arg7[%c0_30, %c0_31] : memref<28x56xf32, #tpu.memory_space<vmem>>, vector<28x56xf32>
    tpu.vector_store %arg7[%c0_30, %c0_31], %60 {strides = array<i32>} : memref<28x56xf32, #tpu.memory_space<vmem>>, vector<28x56xf32>,
    %62 = vector.extract_strided_slice %58 {offsets = [0, 0], sizes = [6, 24], strides = [1, 1]} : vector<12x24xf32> to vector<6x24xf32>
    %c4 = arith.constant 4 : index
    %c16 = arith.constant 16 : index
    %63 = vector.load %arg7[%c4, %c16] : memref<28x56xf32, #tpu.memory_space<vmem>>, vector<6x24xf32>
    tpu.vector_store %arg7[%c4, %c16], %62 {strides = array<i32>} : memref<28x56xf32, #tpu.memory_space<vmem>>, vector<6x24xf32>,
    %cst_32 = arith.constant 0.000000e+00 : f32
    %64 = vector.broadcast %cst_32 : f32 to vector<6x24xf32>
    %c0_33 = arith.constant 0 : index
    %c0_34 = arith.constant 0 : index
    %65 = vector.load %arg7[%c0_33, %c0_34] : memref<28x56xf32, #tpu.memory_space<vmem>>, vector<6x56xf32>
    %c0_35 = arith.constant 0 : index
    %c0_36 = arith.constant 0 : index
    %c0_37 = arith.constant 0 : index
    %66 = vector.load %arg2[%c0_35, %c0_36, %c0_37] : memref<9x56x24xf32, #tpu.memory_space<vmem>>, vector<1x56x24xf32>
    %67 = vector.shape_cast %66 : vector<1x56x24xf32> to vector<56x24xf32>
    %cst_38 = arith.constant dense<0.000000e+00> : vector<6x24xf32>
    %68 = tpu.matmul %65, %67, %cst_38 {dimension_numbers = #tpu.dot_dimension_numbers<[1], [0], [0], [1], [0, 0, 1, 1], [], []>} : vector<6x56xf32>, vector<56x24xf32>, vector<6x24xf32> -> vector<6x24xf32>
    %69 = arith.addf %64, %68 : vector<6x24xf32>
    %c1_39 = arith.constant 1 : index
    %c0_40 = arith.constant 0 : index
    %70 = vector.load %arg7[%c1_39, %c0_40] : memref<28x56xf32, #tpu.memory_space<vmem>>, vector<6x56xf32>
    %c1_41 = arith.constant 1 : index
    %c0_42 = arith.constant 0 : index
    %c0_43 = arith.constant 0 : index
    %71 = vector.load %arg2[%c1_41, %c0_42, %c0_43] : memref<9x56x24xf32, #tpu.memory_space<vmem>>, vector<1x56x24xf32>
    %72 = vector.shape_cast %71 : vector<1x56x24xf32> to vector<56x24xf32>
    %cst_44 = arith.constant dense<0.000000e+00> : vector<6x24xf32>
    %73 = tpu.matmul %70, %72, %cst_44 {dimension_numbers = #tpu.dot_dimension_numbers<[1], [0], [0], [1], [0, 0, 1, 1], [], []>} : vector<6x56xf32>, vector<56x24xf32>, vector<6x24xf32> -> vector<6x24xf32>
    %74 = arith.addf %69, %73 : vector<6x24xf32>
    %c2_45 = arith.constant 2 : index
    %c0_46 = arith.constant 0 : index
    %75 = vector.load %arg7[%c2_45, %c0_46] : memref<28x56xf32, #tpu.memory_space<vmem>>, vector<6x56xf32>
    %c2_47 = arith.constant 2 : index
    %c0_48 = arith.constant 0 : index
    %c0_49 = arith.constant 0 : index
    %76 = vector.load %arg2[%c2_47, %c0_48, %c0_49] : memref<9x56x24xf32, #tpu.memory_space<vmem>>, vector<1x56x24xf32>
    %77 = vector.shape_cast %76 : vector<1x56x24xf32> to vector<56x24xf32>
    %cst_50 = arith.constant dense<0.000000e+00> : vector<6x24xf32>
    %78 = tpu.matmul %75, %77, %cst_50 {dimension_numbers = #tpu.dot_dimension_numbers<[1], [0], [0], [1], [0, 0, 1, 1], [], []>} : vector<6x56xf32>, vector<56x24xf32>, vector<6x24xf32> -> vector<6x24xf32>
    %79 = arith.addf %74, %78 : vector<6x24xf32>
    %c3_51 = arith.constant 3 : index
    %c0_52 = arith.constant 0 : index
    %80 = vector.load %arg7[%c3_51, %c0_52] : memref<28x56xf32, #tpu.memory_space<vmem>>, vector<6x56xf32>
    %c3_53 = arith.constant 3 : index
    %c0_54 = arith.constant 0 : index
    %c0_55 = arith.constant 0 : index
    %81 = vector.load %arg2[%c3_53, %c0_54, %c0_55] : memref<9x56x24xf32, #tpu.memory_space<vmem>>, vector<1x56x24xf32>
    %82 = vector.shape_cast %81 : vector<1x56x24xf32> to vector<56x24xf32>
    %cst_56 = arith.constant dense<0.000000e+00> : vector<6x24xf32>
    %83 = tpu.matmul %80, %82, %cst_56 {dimension_numbers = #tpu.dot_dimension_numbers<[1], [0], [0], [1], [0, 0, 1, 1], [], []>} : vector<6x56xf32>, vector<56x24xf32>, vector<6x24xf32> -> vector<6x24xf32>
    %84 = arith.addf %79, %83 : vector<6x24xf32>
    %c4_57 = arith.constant 4 : index
    %c0_58 = arith.constant 0 : index
    %85 = vector.load %arg7[%c4_57, %c0_58] : memref<28x56xf32, #tpu.memory_space<vmem>>, vector<6x56xf32>
    %c4_59 = arith.constant 4 : index
    %c0_60 = arith.constant 0 : index
    %c0_61 = arith.constant 0 : index
    %86 = vector.load %arg2[%c4_59, %c0_60, %c0_61] : memref<9x56x24xf32, #tpu.memory_space<vmem>>, vector<1x56x24xf32>
    %87 = vector.shape_cast %86 : vector<1x56x24xf32> to vector<56x24xf32>
    %cst_62 = arith.constant dense<0.000000e+00> : vector<6x24xf32>
    %88 = tpu.matmul %85, %87, %cst_62 {dimension_numbers = #tpu.dot_dimension_numbers<[1], [0], [0], [1], [0, 0, 1, 1], [], []>} : vector<6x56xf32>, vector<56x24xf32>, vector<6x24xf32> -> vector<6x24xf32>
    %89 = arith.addf %84, %88 : vector<6x24xf32>
    %c5 = arith.constant 5 : index
    %c0_63 = arith.constant 0 : index
    %90 = vector.load %arg7[%c5, %c0_63] : memref<28x56xf32, #tpu.memory_space<vmem>>, vector<6x56xf32>
    %c5_64 = arith.constant 5 : index
    %c0_65 = arith.constant 0 : index
    %c0_66 = arith.constant 0 : index
    %91 = vector.load %arg2[%c5_64, %c0_65, %c0_66] : memref<9x56x24xf32, #tpu.memory_space<vmem>>, vector<1x56x24xf32>
    %92 = vector.shape_cast %91 : vector<1x56x24xf32> to vector<56x24xf32>
    %cst_67 = arith.constant dense<0.000000e+00> : vector<6x24xf32>
    %93 = tpu.matmul %90, %92, %cst_67 {dimension_numbers = #tpu.dot_dimension_numbers<[1], [0], [0], [1], [0, 0, 1, 1], [], []>} : vector<6x56xf32>, vector<56x24xf32>, vector<6x24xf32> -> vector<6x24xf32>
    %94 = arith.addf %89, %93 : vector<6x24xf32>
    %c6 = arith.constant 6 : index
    %c0_68 = arith.constant 0 : index
    %95 = vector.load %arg7[%c6, %c0_68] : memref<28x56xf32, #tpu.memory_space<vmem>>, vector<6x56xf32>
    %c6_69 = arith.constant 6 : index
    %c0_70 = arith.constant 0 : index
    %c0_71 = arith.constant 0 : index
    %96 = vector.load %arg2[%c6_69, %c0_70, %c0_71] : memref<9x56x24xf32, #tpu.memory_space<vmem>>, vector<1x56x24xf32>
    %97 = vector.shape_cast %96 : vector<1x56x24xf32> to vector<56x24xf32>
    %cst_72 = arith.constant dense<0.000000e+00> : vector<6x24xf32>
    %98 = tpu.matmul %95, %97, %cst_72 {dimension_numbers = #tpu.dot_dimension_numbers<[1], [0], [0], [1], [0, 0, 1, 1], [], []>} : vector<6x56xf32>, vector<56x24xf32>, vector<6x24xf32> -> vector<6x24xf32>
    %99 = arith.addf %94, %98 : vector<6x24xf32>
    %c7 = arith.constant 7 : index
    %c0_73 = arith.constant 0 : index
    %100 = vector.load %arg7[%c7, %c0_73] : memref<28x56xf32, #tpu.memory_space<vmem>>, vector<6x56xf32>
    %c7_74 = arith.constant 7 : index
    %c0_75 = arith.constant 0 : index
    %c0_76 = arith.constant 0 : index
    %101 = vector.load %arg2[%c7_74, %c0_75, %c0_76] : memref<9x56x24xf32, #tpu.memory_space<vmem>>, vector<1x56x24xf32>
    %102 = vector.shape_cast %101 : vector<1x56x24xf32> to vector<56x24xf32>
    %cst_77 = arith.constant dense<0.000000e+00> : vector<6x24xf32>
    %103 = tpu.matmul %100, %102, %cst_77 {dimension_numbers = #tpu.dot_dimension_numbers<[1], [0], [0], [1], [0, 0, 1, 1], [], []>} : vector<6x56xf32>, vector<56x24xf32>, vector<6x24xf32> -> vector<6x24xf32>
    %104 = arith.addf %99, %103 : vector<6x24xf32>
    %c8 = arith.constant 8 : index
    %c0_78 = arith.constant 0 : index
    %105 = vector.load %arg7[%c8, %c0_78] : memref<28x56xf32, #tpu.memory_space<vmem>>, vector<6x56xf32>
    %c8_79 = arith.constant 8 : index
    %c0_80 = arith.constant 0 : index
    %c0_81 = arith.constant 0 : index
    %106 = vector.load %arg2[%c8_79, %c0_80, %c0_81] : memref<9x56x24xf32, #tpu.memory_space<vmem>>, vector<1x56x24xf32>
    %107 = vector.shape_cast %106 : vector<1x56x24xf32> to vector<56x24xf32>
    %cst_82 = arith.constant dense<0.000000e+00> : vector<6x24xf32>
    %108 = tpu.matmul %105, %107, %cst_82 {dimension_numbers = #tpu.dot_dimension_numbers<[1], [0], [0], [1], [0, 0, 1, 1], [], []>} : vector<6x56xf32>, vector<56x24xf32>, vector<6x24xf32> -> vector<6x24xf32>
    %109 = arith.addf %104, %108 : vector<6x24xf32>
    %c0_83 = arith.constant 0 : index
    %c0_84 = arith.constant 0 : index
    %110 = vector.load %arg8[%c0_83, %c0_84] : memref<12x24xf32, #tpu.memory_space<vmem>>, vector<6x24xf32>
    tpu.vector_store %arg8[%c0_83, %c0_84], %109 {strides = array<i32>} : memref<12x24xf32, #tpu.memory_space<vmem>>, vector<6x24xf32>,
    %111 = vector.extract_strided_slice %58 {offsets = [6, 0], sizes = [6, 24], strides = [1, 1]} : vector<12x24xf32> to vector<6x24xf32>
    %c18_85 = arith.constant 18 : index
    %c16_86 = arith.constant 16 : index
    %112 = vector.load %arg7[%c18_85, %c16_86] : memref<28x56xf32, #tpu.memory_space<vmem>>, vector<6x24xf32>
    tpu.vector_store %arg7[%c18_85, %c16_86], %111 {strides = array<i32>} : memref<28x56xf32, #tpu.memory_space<vmem>>, vector<6x24xf32>,
    %cst_87 = arith.constant 0.000000e+00 : f32
    %113 = vector.broadcast %cst_87 : f32 to vector<6x24xf32>
    %c14 = arith.constant 14 : index
    %c0_88 = arith.constant 0 : index
    %114 = vector.load %arg7[%c14, %c0_88] : memref<28x56xf32, #tpu.memory_space<vmem>>, vector<6x56xf32>
    %c0_89 = arith.constant 0 : index
    %c0_90 = arith.constant 0 : index
    %c0_91 = arith.constant 0 : index
    %115 = vector.load %arg2[%c0_89, %c0_90, %c0_91] : memref<9x56x24xf32, #tpu.memory_space<vmem>>, vector<1x56x24xf32>
    %116 = vector.shape_cast %115 : vector<1x56x24xf32> to vector<56x24xf32>
    %cst_92 = arith.constant dense<0.000000e+00> : vector<6x24xf32>
    %117 = tpu.matmul %114, %116, %cst_92 {dimension_numbers = #tpu.dot_dimension_numbers<[1], [0], [0], [1], [0, 0, 1, 1], [], []>} : vector<6x56xf32>, vector<56x24xf32>, vector<6x24xf32> -> vector<6x24xf32>
    %118 = arith.addf %113, %117 : vector<6x24xf32>
    %c15 = arith.constant 15 : index
    %c0_93 = arith.constant 0 : index
    %119 = vector.load %arg7[%c15, %c0_93] : memref<28x56xf32, #tpu.memory_space<vmem>>, vector<6x56xf32>
    %c1_94 = arith.constant 1 : index
    %c0_95 = arith.constant 0 : index
    %c0_96 = arith.constant 0 : index
    %120 = vector.load %arg2[%c1_94, %c0_95, %c0_96] : memref<9x56x24xf32, #tpu.memory_space<vmem>>, vector<1x56x24xf32>
    %121 = vector.shape_cast %120 : vector<1x56x24xf32> to vector<56x24xf32>
    %cst_97 = arith.constant dense<0.000000e+00> : vector<6x24xf32>
    %122 = tpu.matmul %119, %121, %cst_97 {dimension_numbers = #tpu.dot_dimension_numbers<[1], [0], [0], [1], [0, 0, 1, 1], [], []>} : vector<6x56xf32>, vector<56x24xf32>, vector<6x24xf32> -> vector<6x24xf32>
    %123 = arith.addf %118, %122 : vector<6x24xf32>
    %c16_98 = arith.constant 16 : index
    %c0_99 = arith.constant 0 : index
    %124 = vector.load %arg7[%c16_98, %c0_99] : memref<28x56xf32, #tpu.memory_space<vmem>>, vector<6x56xf32>
    %c2_100 = arith.constant 2 : index
    %c0_101 = arith.constant 0 : index
    %c0_102 = arith.constant 0 : index
    %125 = vector.load %arg2[%c2_100, %c0_101, %c0_102] : memref<9x56x24xf32, #tpu.memory_space<vmem>>, vector<1x56x24xf32>
    %126 = vector.shape_cast %125 : vector<1x56x24xf32> to vector<56x24xf32>
    %cst_103 = arith.constant dense<0.000000e+00> : vector<6x24xf32>
    %127 = tpu.matmul %124, %126, %cst_103 {dimension_numbers = #tpu.dot_dimension_numbers<[1], [0], [0], [1], [0, 0, 1, 1], [], []>} : vector<6x56xf32>, vector<56x24xf32>, vector<6x24xf32> -> vector<6x24xf32>
    %128 = arith.addf %123, %127 : vector<6x24xf32>
    %c17 = arith.constant 17 : index
    %c0_104 = arith.constant 0 : index
    %129 = vector.load %arg7[%c17, %c0_104] : memref<28x56xf32, #tpu.memory_space<vmem>>, vector<6x56xf32>
    %c3_105 = arith.constant 3 : index
    %c0_106 = arith.constant 0 : index
    %c0_107 = arith.constant 0 : index
    %130 = vector.load %arg2[%c3_105, %c0_106, %c0_107] : memref<9x56x24xf32, #tpu.memory_space<vmem>>, vector<1x56x24xf32>
    %131 = vector.shape_cast %130 : vector<1x56x24xf32> to vector<56x24xf32>
    %cst_108 = arith.constant dense<0.000000e+00> : vector<6x24xf32>
    %132 = tpu.matmul %129, %131, %cst_108 {dimension_numbers = #tpu.dot_dimension_numbers<[1], [0], [0], [1], [0, 0, 1, 1], [], []>} : vector<6x56xf32>, vector<56x24xf32>, vector<6x24xf32> -> vector<6x24xf32>
    %133 = arith.addf %128, %132 : vector<6x24xf32>
    %c18_109 = arith.constant 18 : index
    %c0_110 = arith.constant 0 : index
    %134 = vector.load %arg7[%c18_109, %c0_110] : memref<28x56xf32, #tpu.memory_space<vmem>>, vector<6x56xf32>
    %c4_111 = arith.constant 4 : index
    %c0_112 = arith.constant 0 : index
    %c0_113 = arith.constant 0 : index
    %135 = vector.load %arg2[%c4_111, %c0_112, %c0_113] : memref<9x56x24xf32, #tpu.memory_space<vmem>>, vector<1x56x24xf32>
    %136 = vector.shape_cast %135 : vector<1x56x24xf32> to vector<56x24xf32>
    %cst_114 = arith.constant dense<0.000000e+00> : vector<6x24xf32>
    %137 = tpu.matmul %134, %136, %cst_114 {dimension_numbers = #tpu.dot_dimension_numbers<[1], [0], [0], [1], [0, 0, 1, 1], [], []>} : vector<6x56xf32>, vector<56x24xf32>, vector<6x24xf32> -> vector<6x24xf32>
    %138 = arith.addf %133, %137 : vector<6x24xf32>
    %c19 = arith.constant 19 : index
    %c0_115 = arith.constant 0 : index
    %139 = vector.load %arg7[%c19, %c0_115] : memref<28x56xf32, #tpu.memory_space<vmem>>, vector<6x56xf32>
    %c5_116 = arith.constant 5 : index
    %c0_117 = arith.constant 0 : index
    %c0_118 = arith.constant 0 : index
    %140 = vector.load %arg2[%c5_116, %c0_117, %c0_118] : memref<9x56x24xf32, #tpu.memory_space<vmem>>, vector<1x56x24xf32>
    %141 = vector.shape_cast %140 : vector<1x56x24xf32> to vector<56x24xf32>
    %cst_119 = arith.constant dense<0.000000e+00> : vector<6x24xf32>
    %142 = tpu.matmul %139, %141, %cst_119 {dimension_numbers = #tpu.dot_dimension_numbers<[1], [0], [0], [1], [0, 0, 1, 1], [], []>} : vector<6x56xf32>, vector<56x24xf32>, vector<6x24xf32> -> vector<6x24xf32>
    %143 = arith.addf %138, %142 : vector<6x24xf32>
    %c20 = arith.constant 20 : index
    %c0_120 = arith.constant 0 : index
    %144 = vector.load %arg7[%c20, %c0_120] : memref<28x56xf32, #tpu.memory_space<vmem>>, vector<6x56xf32>
    %c6_121 = arith.constant 6 : index
    %c0_122 = arith.constant 0 : index
    %c0_123 = arith.constant 0 : index
    %145 = vector.load %arg2[%c6_121, %c0_122, %c0_123] : memref<9x56x24xf32, #tpu.memory_space<vmem>>, vector<1x56x24xf32>
    %146 = vector.shape_cast %145 : vector<1x56x24xf32> to vector<56x24xf32>
    %cst_124 = arith.constant dense<0.000000e+00> : vector<6x24xf32>
    %147 = tpu.matmul %144, %146, %cst_124 {dimension_numbers = #tpu.dot_dimension_numbers<[1], [0], [0], [1], [0, 0, 1, 1], [], []>} : vector<6x56xf32>, vector<56x24xf32>, vector<6x24xf32> -> vector<6x24xf32>
    %148 = arith.addf %143, %147 : vector<6x24xf32>
    %c21 = arith.constant 21 : index
    %c0_125 = arith.constant 0 : index
    %149 = vector.load %arg7[%c21, %c0_125] : memref<28x56xf32, #tpu.memory_space<vmem>>, vector<6x56xf32>
    %c7_126 = arith.constant 7 : index
    %c0_127 = arith.constant 0 : index
    %c0_128 = arith.constant 0 : index
    %150 = vector.load %arg2[%c7_126, %c0_127, %c0_128] : memref<9x56x24xf32, #tpu.memory_space<vmem>>, vector<1x56x24xf32>
    %151 = vector.shape_cast %150 : vector<1x56x24xf32> to vector<56x24xf32>
    %cst_129 = arith.constant dense<0.000000e+00> : vector<6x24xf32>
    %152 = tpu.matmul %149, %151, %cst_129 {dimension_numbers = #tpu.dot_dimension_numbers<[1], [0], [0], [1], [0, 0, 1, 1], [], []>} : vector<6x56xf32>, vector<56x24xf32>, vector<6x24xf32> -> vector<6x24xf32>
    %153 = arith.addf %148, %152 : vector<6x24xf32>
    %c22 = arith.constant 22 : index
    %c0_130 = arith.constant 0 : index
    %154 = vector.load %arg7[%c22, %c0_130] : memref<28x56xf32, #tpu.memory_space<vmem>>, vector<6x56xf32>
    %c8_131 = arith.constant 8 : index
    %c0_132 = arith.constant 0 : index
    %c0_133 = arith.constant 0 : index
    %155 = vector.load %arg2[%c8_131, %c0_132, %c0_133] : memref<9x56x24xf32, #tpu.memory_space<vmem>>, vector<1x56x24xf32>
    %156 = vector.shape_cast %155 : vector<1x56x24xf32> to vector<56x24xf32>
    %cst_134 = arith.constant dense<0.000000e+00> : vector<6x24xf32>
    %157 = tpu.matmul %154, %156, %cst_134 {dimension_numbers = #tpu.dot_dimension_numbers<[1], [0], [0], [1], [0, 0, 1, 1], [], []>} : vector<6x56xf32>, vector<56x24xf32>, vector<6x24xf32> -> vector<6x24xf32>
    %158 = arith.addf %153, %157 : vector<6x24xf32>
    %c6_135 = arith.constant 6 : index
    %c0_136 = arith.constant 0 : index
    %159 = vector.load %arg8[%c6_135, %c0_136] : memref<12x24xf32, #tpu.memory_space<vmem>>, vector<6x24xf32>
    tpu.vector_store %arg8[%c6_135, %c0_136], %158 {strides = array<i32>} : memref<12x24xf32, #tpu.memory_space<vmem>>, vector<6x24xf32>,
    %c0_137 = arith.constant 0 : index
    %c0_138 = arith.constant 0 : index
    %160 = vector.load %arg8[%c0_137, %c0_138] : memref<12x24xf32, #tpu.memory_space<vmem>>, vector<12x24xf32>
    %cst_139 = arith.constant dense<0.000000e+00> : vector<24xf32>
    %161 = vector.multi_reduction <add>, %160, %cst_139 [0] : vector<12x24xf32> to vector<24xf32>
    %162 = vector.shape_cast %161 : vector<24xf32> to vector<1x24xf32>
    %163 = vector.extract_strided_slice %162 {offsets = [0, 0], sizes = [1, 4], strides = [1, 1]} : vector<1x24xf32> to vector<1x4xf32>
    %164 = vector.extract_strided_slice %162 {offsets = [0, 4], sizes = [1, 4], strides = [1, 1]} : vector<1x24xf32> to vector<1x4xf32>
    %165 = arith.addf %163, %164 : vector<1x4xf32>
    %166 = vector.extract_strided_slice %162 {offsets = [0, 8], sizes = [1, 4], strides = [1, 1]} : vector<1x24xf32> to vector<1x4xf32>
    %167 = arith.addf %165, %166 : vector<1x4xf32>
    %168 = vector.extract_strided_slice %162 {offsets = [0, 12], sizes = [1, 4], strides = [1, 1]} : vector<1x24xf32> to vector<1x4xf32>
    %169 = arith.addf %167, %168 : vector<1x4xf32>
    %170 = vector.extract_strided_slice %162 {offsets = [0, 16], sizes = [1, 4], strides = [1, 1]} : vector<1x24xf32> to vector<1x4xf32>
    %171 = arith.addf %169, %170 : vector<1x4xf32>
    %172 = vector.extract_strided_slice %162 {offsets = [0, 20], sizes = [1, 4], strides = [1, 1]} : vector<1x24xf32> to vector<1x4xf32>
    %173 = arith.addf %171, %172 : vector<1x4xf32>
    %cst_140 = arith.constant 0.013888889 : f32
    %174 = vector.broadcast %cst_140 : f32 to vector<1x4xf32>
    %175 = arith.mulf %173, %174 : vector<1x4xf32>
    %176 = tpu.concatenate %175, %175, %175, %175, %175, %175 in 1 : vector<1x4xf32>, vector<1x4xf32>, vector<1x4xf32>, vector<1x4xf32>, vector<1x4xf32>, vector<1x4xf32> -> vector<1x24xf32>
    %177 = vector.broadcast %176 : vector<1x24xf32> to vector<12x24xf32>
    %178 = arith.subf %160, %177 : vector<12x24xf32>
    %179 = arith.mulf %178, %178 : vector<12x24xf32>
    %cst_141 = arith.constant dense<0.000000e+00> : vector<24xf32>
    %180 = vector.multi_reduction <add>, %179, %cst_141 [0] : vector<12x24xf32> to vector<24xf32>
    %181 = vector.shape_cast %180 : vector<24xf32> to vector<1x24xf32>
    %182 = vector.extract_strided_slice %181 {offsets = [0, 0], sizes = [1, 4], strides = [1, 1]} : vector<1x24xf32> to vector<1x4xf32>
    %183 = vector.extract_strided_slice %181 {offsets = [0, 4], sizes = [1, 4], strides = [1, 1]} : vector<1x24xf32> to vector<1x4xf32>
    %184 = arith.addf %182, %183 : vector<1x4xf32>
    %185 = vector.extract_strided_slice %181 {offsets = [0, 8], sizes = [1, 4], strides = [1, 1]} : vector<1x24xf32> to vector<1x4xf32>
    %186 = arith.addf %184, %185 : vector<1x4xf32>
    %187 = vector.extract_strided_slice %181 {offsets = [0, 12], sizes = [1, 4], strides = [1, 1]} : vector<1x24xf32> to vector<1x4xf32>
    %188 = arith.addf %186, %187 : vector<1x4xf32>
    %189 = vector.extract_strided_slice %181 {offsets = [0, 16], sizes = [1, 4], strides = [1, 1]} : vector<1x24xf32> to vector<1x4xf32>
    %190 = arith.addf %188, %189 : vector<1x4xf32>
    %191 = vector.extract_strided_slice %181 {offsets = [0, 20], sizes = [1, 4], strides = [1, 1]} : vector<1x24xf32> to vector<1x4xf32>
    %192 = arith.addf %190, %191 : vector<1x4xf32>
    %cst_142 = arith.constant 0.013888889 : f32
    %193 = vector.broadcast %cst_142 : f32 to vector<1x4xf32>
    %194 = arith.mulf %192, %193 : vector<1x4xf32>
    %cst_143 = arith.constant 9.99999974E-6 : f32
    %195 = vector.broadcast %cst_143 : f32 to vector<1x4xf32>
    %196 = arith.addf %194, %195 : vector<1x4xf32>
    %197 = math.rsqrt %196 : vector<1x4xf32>
    %198 = arith.mulf %2, %197 : vector<1x4xf32>
    %199 = tpu.concatenate %198, %198, %198, %198, %198, %198 in 1 : vector<1x4xf32>, vector<1x4xf32>, vector<1x4xf32>, vector<1x4xf32>, vector<1x4xf32>, vector<1x4xf32> -> vector<1x24xf32>
    %200 = vector.broadcast %199 : vector<1x24xf32> to vector<12x24xf32>
    %201 = arith.mulf %178, %200 : vector<12x24xf32>
    %202 = tpu.concatenate %3, %3, %3, %3, %3, %3 in 1 : vector<1x4xf32>, vector<1x4xf32>, vector<1x4xf32>, vector<1x4xf32>, vector<1x4xf32>, vector<1x4xf32> -> vector<1x24xf32>
    %203 = vector.broadcast %202 : vector<1x24xf32> to vector<12x24xf32>
    %204 = arith.addf %201, %203 : vector<12x24xf32>
    %205 = tpu.concatenate %204, %59 in 1 : vector<12x24xf32>, vector<12x120xf32> -> vector<12x144xf32>
    %c0_144 = arith.constant 0 : index
    %c0_145 = arith.constant 0 : index
    %c0_146 = arith.constant 0 : index
    %206 = vector.load %arg3[%c0_144, %c0_145, %c0_146] : memref<3x144x72xf32, #tpu.memory_space<vmem>>, vector<1x144x72xf32>
    %207 = vector.shape_cast %206 : vector<1x144x72xf32> to vector<144x72xf32>
    %cst_147 = arith.constant dense<0.000000e+00> : vector<12x72xf32>
    %208 = tpu.matmul %205, %207, %cst_147 {dimension_numbers = #tpu.dot_dimension_numbers<[1], [0], [0], [1], [0, 0, 1, 1], [], []>} : vector<12x144xf32>, vector<144x72xf32>, vector<12x72xf32> -> vector<12x72xf32>
    %c1_148 = arith.constant 1 : index
    %c0_149 = arith.constant 0 : index
    %c0_150 = arith.constant 0 : index
    %209 = vector.load %arg3[%c1_148, %c0_149, %c0_150] : memref<3x144x72xf32, #tpu.memory_space<vmem>>, vector<1x144x72xf32>
    %210 = vector.shape_cast %209 : vector<1x144x72xf32> to vector<144x72xf32>
    %cst_151 = arith.constant dense<0.000000e+00> : vector<12x72xf32>
    %211 = tpu.matmul %205, %210, %cst_151 {dimension_numbers = #tpu.dot_dimension_numbers<[1], [0], [0], [1], [0, 0, 1, 1], [], []>} : vector<12x144xf32>, vector<144x72xf32>, vector<12x72xf32> -> vector<12x72xf32>
    %c2_152 = arith.constant 2 : index
    %c0_153 = arith.constant 0 : index
    %c0_154 = arith.constant 0 : index
    %212 = vector.load %arg3[%c2_152, %c0_153, %c0_154] : memref<3x144x72xf32, #tpu.memory_space<vmem>>, vector<1x144x72xf32>
    %213 = vector.shape_cast %212 : vector<1x144x72xf32> to vector<144x72xf32>
    %cst_155 = arith.constant dense<0.000000e+00> : vector<12x72xf32>
    %214 = tpu.matmul %205, %213, %cst_155 {dimension_numbers = #tpu.dot_dimension_numbers<[1], [0], [0], [1], [0, 0, 1, 1], [], []>} : vector<12x144xf32>, vector<144x72xf32>, vector<12x72xf32> -> vector<12x72xf32>
    %215 = tpu.iota {dimensions = array<i32: 0>} : vector<12x72xi32>
    %c5_i32 = arith.constant 5 : i32
    %216 = vector.broadcast %c5_i32 : i32 to vector<12x72xi32>
    %217 = arith.cmpi eq, %215, %216 : vector<12x72xi32>
    %c11_i32 = arith.constant 11 : i32
    %218 = vector.broadcast %c11_i32 : i32 to vector<12x72xi32>
    %219 = arith.cmpi eq, %215, %218 : vector<12x72xi32>
    %220 = arith.ori %217, %219 : vector<12x72xi1>
    %221 = vector.extract_strided_slice %208 {offsets = [1, 0], sizes = [11, 72], strides = [1, 1]} : vector<12x72xf32> to vector<11x72xf32>
    %cst_156 = arith.constant 0.000000e+00 : f32
    %222 = vector.broadcast %cst_156 : f32 to vector<1x72xf32>
    %223 = tpu.concatenate %221, %222 in 0 : vector<11x72xf32>, vector<1x72xf32> -> vector<12x72xf32>
    %cst_157 = arith.constant 0.000000e+00 : f32
    %224 = vector.broadcast %cst_157 : f32 to vector<12x72xf32>
    %225 = arith.select %220, %224, %223 : vector<12x72xi1>, vector<12x72xf32>
    %c0_158 = arith.constant 0 : index
    %c0_159 = arith.constant 0 : index
    %226 = tpu.strided_load %arg0[%c0_158, %c0_159] {strides = array<i32: 3, 1>} : memref<36x72xf32, #tpu.memory_space<vmem>>, vector<12x72xf32>
    %227 = vector.broadcast %1 : vector<1x72xf32> to vector<12x72xf32>
    %228 = arith.addf %211, %227 : vector<12x72xf32>
    %229 = arith.negf %228 : vector<12x72xf32>
    %230 = math.exp %229 : vector<12x72xf32>
    %cst_160 = arith.constant 1.000000e+00 : f32
    %231 = vector.broadcast %cst_160 : f32 to vector<12x72xf32>
    %232 = arith.addf %231, %230 : vector<12x72xf32>
    %233 = arith.divf %231, %232 : vector<12x72xf32>
    %234 = arith.mulf %226, %233 : vector<12x72xf32>
    %c0_161 = arith.constant 0 : index
    %c0_162 = arith.constant 0 : index
    %235 = vector.load %arg5[%c0_161, %c0_162] : memref<36x72xf32, #tpu.memory_space<vmem>>, vector<12x72xf32>
    tpu.vector_store %arg5[%c0_161, %c0_162], %234 {strides = array<i32>} : memref<36x72xf32, #tpu.memory_space<vmem>>, vector<12x72xf32>,
    %c1_163 = arith.constant 1 : index
    %c0_164 = arith.constant 0 : index
    %236 = tpu.strided_load %arg0[%c1_163, %c0_164] {strides = array<i32: 3, 1>} : memref<36x72xf32, #tpu.memory_space<vmem>>, vector<12x72xf32>
    %237 = vector.broadcast %1 : vector<1x72xf32> to vector<12x72xf32>
    %238 = arith.addf %214, %237 : vector<12x72xf32>
    %239 = arith.negf %238 : vector<12x72xf32>
    %240 = math.exp %239 : vector<12x72xf32>
    %cst_165 = arith.constant 1.000000e+00 : f32
    %241 = vector.broadcast %cst_165 : f32 to vector<12x72xf32>
    %242 = arith.addf %241, %240 : vector<12x72xf32>
    %243 = arith.divf %241, %242 : vector<12x72xf32>
    %244 = arith.mulf %236, %243 : vector<12x72xf32>
    %c12 = arith.constant 12 : index
    %c0_166 = arith.constant 0 : index
    %245 = vector.load %arg5[%c12, %c0_166] : memref<36x72xf32, #tpu.memory_space<vmem>>, vector<12x72xf32>
    tpu.vector_store %arg5[%c12, %c0_166], %244 {strides = array<i32>} : memref<36x72xf32, #tpu.memory_space<vmem>>, vector<12x72xf32>,
    %c2_167 = arith.constant 2 : index
    %c0_168 = arith.constant 0 : index
    %246 = tpu.strided_load %arg0[%c2_167, %c0_168] {strides = array<i32: 3, 1>} : memref<36x72xf32, #tpu.memory_space<vmem>>, vector<12x72xf32>
    %247 = vector.broadcast %1 : vector<1x72xf32> to vector<12x72xf32>
    %248 = arith.addf %225, %247 : vector<12x72xf32>
    %249 = arith.negf %248 : vector<12x72xf32>
    %250 = math.exp %249 : vector<12x72xf32>
    %cst_169 = arith.constant 1.000000e+00 : f32
    %251 = vector.broadcast %cst_169 : f32 to vector<12x72xf32>
    %252 = arith.addf %251, %250 : vector<12x72xf32>
    %253 = arith.divf %251, %252 : vector<12x72xf32>
    %254 = arith.mulf %246, %253 : vector<12x72xf32>
    %c24 = arith.constant 24 : index
    %c0_170 = arith.constant 0 : index
    %255 = vector.load %arg5[%c24, %c0_170] : memref<36x72xf32, #tpu.memory_space<vmem>>, vector<12x72xf32>
    tpu.vector_store %arg5[%c24, %c0_170], %254 {strides = array<i32>} : memref<36x72xf32, #tpu.memory_space<vmem>>, vector<12x72xf32>,
    return
  }
}

</mosaic_0001>

<llo_original>
// kernel: tile.34
$region0: #{tile.34}
  %s0 = inlined_call_operand.vmem [shape: f32[6,20], index: 0, kind: input, shape index: {}]
  %s1 = inlined_call_operand.vmem [shape: f32[120], index: 1, kind: output, shape index: {}]
  $region1: #{tile.34} parent=0
    #allocation0 [shape = 'u8[4096]{0}', space=vmem, size = 0x1000, scoped, tag = 'scoped mem for output reshape']
    %v2 = vld [vmem:[%s0] sm:$0x1]
    %vm3 = vcmask 162816
    %4 = vst.msk [vmem:[#allocation0] sm:$0x1] %vm3, %v2
    %s5 = scalar_lea.vmem %s0, 5
    %v6 = vld [vmem:[%s5] sm:$0x1]
    %7 = vrot.lane.b32.xlu0 %v6, 100
    %v8 = vpop.permute.xlu0 %7
    %vm9 = vcmask 982816
    %10 = vst.msk [vmem:[#allocation0] sm:$0x1] %vm9, %v8
    %s11 = scalar_lea.vmem %s0, 4
    %v12 = vld [vmem:[%s11] sm:$0x1]
    %13 = vrot.lane.b32.xlu0 %v12, 80
    %v14 = vpop.permute.xlu0 %13
    %vm15 = vcmask 818816
    %16 = vst.msk [vmem:[#allocation0] sm:$0x1] %vm15, %v14
    %s17 = scalar_lea.vmem %s0, 3
    %v18 = vld [vmem:[%s17] sm:$0x1]
    %19 = vrot.lane.b32.xlu0 %v18, 60
    %v20 = vpop.permute.xlu0 %19
    %vm21 = vcmask 654816
    %22 = vst.msk [vmem:[#allocation0] sm:$0x1] %vm21, %v20
    %s23 = scalar_lea.vmem %s0, 2
    %v24 = vld [vmem:[%s23] sm:$0x1]
    %25 = vrot.lane.b32.xlu0 %v24, 40
    %v26 = vpop.permute.xlu0 %25
    %vm27 = vcmask 490816
    %28 = vst.msk [vmem:[#allocation0] sm:$0x1] %vm27, %v26
    %s29 = scalar_lea.vmem %s0, 1
    %v30 = vld [vmem:[%s29] sm:$0x1]
    %31 = vrot.lane.b32.xlu0 %v30, 20
    %v32 = vpop.permute.xlu0 %31
    %vm33 = vcmask 326816
    %34 = vst.msk [vmem:[#allocation0] sm:$0x1] %vm33, %v32
    %s36 = sshllo.u32 0, 1
    %v38 = vld [vmem:[#allocation0] sm:%s36]
    %s39 = sshllo.u32 0, 1
    %40 = vst [vmem:[%s1] sm:%s39] %v38

// kernel: tile.33
$region0: #{tile.33}
  #allocation0 [shape = 's32[1]{0}', space=sflag, size = 0x4, scoped, tag = 'scoped memory for tile.33']
  %s0 = inlined_call_operand.vmem [shape: f32[20], index: 0, kind: input, shape index: {}]
  %s1 = inlined_call_operand.vmem [shape: f32[6,20], index: 1, kind: output, shape index: {}]
  // Predicated region
  $region2: #{tile.33} parent=0 // pred_check
    _
  $region3: #{tile.33} parent=0 // pred_check_branch
    %3 = sbr.rel (0) target = $region5
  $region4: #{tile.33} parent=0 // pred_region
    _
  $region5: #{tile.33} parent=0 // pred_fallthru
    _
  %v4 = vld [vmem:[%s0] ss:$0 sm:$0xff]
  %5 = vst [vmem:[%s1] sm:$0xff] %v4

// kernel: tile.28
$region0: #{tile.28}
  #allocation2 [shape = 's32[1]{0}', space=sflag, size = 0x4, scoped, tag = 'scoped memory for tile.28']
  %s0 = inlined_call_operand.hbm [shape: f32[4], index: 0, kind: input, shape index: {}]
  %s1 = inlined_call_operand.vmem [shape: f32[6,4], index: 1, kind: output, shape index: {}]
  $region1: #{tile.28} parent=0
    #allocation0 [shape = 'u8[512]{0}', space=vmem, size = 0x400, scoped, tag = 'operand span for operand 0']
    #allocation1 [shape = 's32[1]{0}', space=sflag, size = 0x4, scoped, tag = 'scoped memory for tile.28']
    %2 = vsyncpa [#allocation1], 0
    // Predicated region
    $region2: #{tile.28} parent=1 // pred_check
      _
    $region3: #{tile.28} parent=1 // pred_check_branch
      %4 = sbr.rel (0) target = $region5
    $region4: #{tile.28} parent=1 // pred_region
      %s6 = ssub.s32 16, 16
      %7 = vsyncadd [#allocation1], %s6
      %s9 = sshll.u32 [#allocation0], 4
      %s10 = int_to_ptr.vmem [resolvable:$true] %s9
      %12 = dma.hbm_to_vmem [thread:$0]  %s0, 16, %s10, [#allocation1]
    $region5: #{tile.28} parent=1 // pred_fallthru
      _
    // Predicated region
    $region6: #{tile.28} parent=1 // pred_check
      _
    $region7: #{tile.28} parent=1 // pred_check_branch
      %14 = sbr.rel (0) target = $region9
    $region8: #{tile.28} parent=1 // pred_region
      %15 = dma.done [#allocation1], 16
    $region9: #{tile.28} parent=1 // pred_fallthru
      _
    %v16 = vld [vmem:[#allocation0] ss:$0 sm:$0xff]
    %17 = vst [vmem:[%s1] sm:$0xff] %v16
    %18 = vsyncpa [#allocation1], 1

// kernel: tile.29
$region0: #{tile.29}
  %s0 = inlined_call_operand.vmem [shape: f32[6,4], index: 0, kind: input, shape index: {}]
  %s1 = inlined_call_operand.vmem [shape: f32[24], index: 1, kind: output, shape index: {}]
  $region1: #{tile.29} parent=0
    #allocation0 [shape = 'u8[4096]{0}', space=vmem, size = 0x1000, scoped, tag = 'scoped mem for output reshape']
    %v2 = vld [vmem:[%s0] sm:$0x1]
    %vm3 = vcmask 31744
    %4 = vst.msk [vmem:[#allocation0] sm:$0x1] %vm3, %v2
    %s5 = scalar_lea.vmem %s0, 5
    %v6 = vld [vmem:[%s5] sm:$0x1]
    %7 = vrot.lane.b32.xlu0 %v6, 20
    %v8 = vpop.permute.xlu0 %7
    %vm9 = vcmask 195744
    %10 = vst.msk [vmem:[#allocation0] sm:$0x1] %vm9, %v8
    %s11 = scalar_lea.vmem %s0, 4
    %v12 = vld [vmem:[%s11] sm:$0x1]
    %13 = vrot.lane.b32.xlu0 %v12, 16
    %v14 = vpop.permute.xlu0 %13
    %vm15 = vcmask 162944
    %16 = vst.msk [vmem:[#allocation0] sm:$0x1] %vm15, %v14
    %s17 = scalar_lea.vmem %s0, 3
    %v18 = vld [vmem:[%s17] sm:$0x1]
    %19 = vrot.lane.b32.xlu0 %v18, 12
    %v20 = vpop.permute.xlu0 %19
    %vm21 = vcmask 130144
    %22 = vst.msk [vmem:[#allocation0] sm:$0x1] %vm21, %v20
    %s23 = scalar_lea.vmem %s0, 2
    %v24 = vld [vmem:[%s23] sm:$0x1]
    %25 = vrot.lane.b32.xlu0 %v24, 8
    %v26 = vpop.permute.xlu0 %25
    %vm27 = vcmask 97344
    %28 = vst.msk [vmem:[#allocation0] sm:$0x1] %vm27, %v26
    %s29 = scalar_lea.vmem %s0, 1
    %v30 = vld [vmem:[%s29] sm:$0x1]
    %31 = vrot.lane.b32.xlu0 %v30, 4
    %v32 = vpop.permute.xlu0 %31
    %vm33 = vcmask 64544
    %34 = vst.msk [vmem:[#allocation0] sm:$0x1] %vm33, %v32
    %s36 = sshllo.u32 0, 1
    %v38 = vld [vmem:[#allocation0] sm:%s36]
    %s39 = sshllo.u32 0, 1
    %40 = vst [vmem:[%s1] sm:%s39] %v38

// kernel: tile.38
$region0: #{tile.38}
  #allocation2 [shape = 's32[1]{0}', space=sflag, size = 0x4, scoped, tag = 'scoped memory for tile.38']
  %s0 = inlined_call_operand.hbm [shape: f32[4], index: 0, kind: input, shape index: {}]
  %s1 = inlined_call_operand.vmem [shape: f32[18,4], index: 1, kind: output, shape index: {}]
  $region1: #{tile.38} parent=0
    #allocation0 [shape = 'u8[512]{0}', space=vmem, size = 0x400, scoped, tag = 'operand span for operand 0']
    #allocation1 [shape = 's32[1]{0}', space=sflag, size = 0x4, scoped, tag = 'scoped memory for tile.38']
    %2 = vsyncpa [#allocation1], 0
    // Predicated region
    $region2: #{tile.38} parent=1 // pred_check
      _
    $region3: #{tile.38} parent=1 // pred_check_branch
      %4 = sbr.rel (0) target = $region5
    $region4: #{tile.38} parent=1 // pred_region
      %s6 = ssub.s32 16, 16
      %7 = vsyncadd [#allocation1], %s6
      %s9 = sshll.u32 [#allocation0], 4
      %s10 = int_to_ptr.vmem [resolvable:$true] %s9
      %12 = dma.hbm_to_vmem [thread:$0]  %s0, 16, %s10, [#allocation1]
    $region5: #{tile.38} parent=1 // pred_fallthru
      _
    // Predicated region
    $region6: #{tile.38} parent=1 // pred_check
      _
    $region7: #{tile.38} parent=1 // pred_check_branch
      %14 = sbr.rel (0) target = $region9
    $region8: #{tile.38} parent=1 // pred_region
      %15 = dma.done [#allocation1], 16
    $region9: #{tile.38} parent=1 // pred_fallthru
      _
    %v16 = vld [vmem:[#allocation0] ss:$0 sm:$0xff]
    %17 = vst [vmem:[%s1] sm:$0xff] %v16
    %s18 = scalar_lea.vmem %s1, 8
    %19 = vst [vmem:[%s18] sm:$0xff] %v16
    %s20 = scalar_lea.vmem %s1, 16
    %21 = vst [vmem:[%s20] sm:$0xff] %v16
    %22 = vsyncpa [#allocation1], 1

// kernel: mra_forward.1
$region0: #{mra_forward.1}
  #allocation0 [shape = 'u32[]', space=smem, size = 0x4, offset = 0x4, fixed_abs, tag = 'smem constant byte address 0x4 - core index']
  #allocation1 [shape = 'u32[144,128]{1,0:T(1,128)}', space=vmem, size = 0x12000, scoped, tag = 'internal scratch']
  #allocation2 [shape = 'f32[36,72]{1,0:T(8,128)}', space=vmem, size = 0x5000, scoped, tag = 'scratch operand']
  #allocation3 [shape = 'f32[28,56]{1,0:T(8,128)}', space=vmem, size = 0x4000, scoped, tag = 'scratch operand']
  #allocation4 [shape = 'f32[12,24]{1,0:T(8,128)}', space=vmem, size = 0x2000, scoped, tag = 'scratch operand']
  %s0 = inlined_call_operand.vmem [shape: f32[36,72], index: 0, kind: input, shape index: {}]
  %s1 = inlined_call_operand.vmem [shape: f32[3,72,144], index: 1, kind: input, shape index: {}]
  %s2 = inlined_call_operand.vmem [shape: f32[9,56,24], index: 2, kind: input, shape index: {}]
  %s3 = inlined_call_operand.vmem [shape: f32[3,144,72], index: 3, kind: input, shape index: {}]
  %s4 = inlined_call_operand.vmem [shape: f32[4,144], index: 4, kind: input, shape index: {}]
  %s5 = inlined_call_operand.vmem [shape: f32[36,72], index: 5, kind: output, shape index: {}]
  %s6 = sld [smem:[#allocation0]]
  $region30: #{mra_forward.1} parent=0
    _
  %s8 = ssub.s32 1, %s6
  %s9 = scalar_select 0, %s8, %s6
  // Predicated region
  $region2: #{mra_forward.1} parent=0 // pred_check
    _
  $region3: #{mra_forward.1} parent=0 // pred_check_branch
    %11 = sbr.rel (0) target = $region5
  $region4: #{mra_forward.1} parent=0 // pred_region
    _
  $region5: #{mra_forward.1} parent=0 // pred_fallthru
    _
  // Predicated region
  $region6: #{mra_forward.1} parent=0 // pred_check
    _
  $region7: #{mra_forward.1} parent=0 // pred_check_branch
    %13 = sbr.rel (0) target = $region9
  $region8: #{mra_forward.1} parent=0 // pred_region
    _
  $region9: #{mra_forward.1} parent=0 // pred_fallthru
    _
  // Predicated region
  $region10: #{mra_forward.1} parent=0 // pred_check
    _
  $region11: #{mra_forward.1} parent=0 // pred_check_branch
    %15 = sbr.rel (0) target = $region13
  $region12: #{mra_forward.1} parent=0 // pred_region
    _
  $region13: #{mra_forward.1} parent=0 // pred_fallthru
    _
  // Predicated region
  $region14: #{mra_forward.1} parent=0 // pred_check
    _
  $region15: #{mra_forward.1} parent=0 // pred_check_branch
    %17 = sbr.rel (0) target = $region17
  $region16: #{mra_forward.1} parent=0 // pred_region
    _
  $region17: #{mra_forward.1} parent=0 // pred_fallthru
    _
  // Predicated region
  $region18: #{mra_forward.1} parent=0 // pred_check
    _
  $region19: #{mra_forward.1} parent=0 // pred_check_branch
    %19 = sbr.rel (0) target = $region21
  $region20: #{mra_forward.1} parent=0 // pred_region
    _
  $region21: #{mra_forward.1} parent=0 // pred_fallthru
    _
  %v20 = vld [vmem:[%s4] ss:$4 sm:$0x3]
  %v21 = vld [vmem:[%s4 + $0x1] sm:$0x1]
  %v22 = vld [vmem:[%s4 + $0x2] sm:$0x1]
  %v23 = vld [vmem:[%s4 + $0x3] sm:$0x1]
  %v24 = vld [vmem:[%s0] sm:$0xff]
  %v25 = vld [vmem:[%s0 + $0x8] sm:$0xff]
  %v26 = vld [vmem:[%s0 + $0x10] sm:$0x3]
  %vm30 = vcmask 1040384
  %v31 = vrot.slane %v24, 7
  %v32 = vrot.slane %v25, 7
  %v33 = vsel %vm30, %v31, %v32
  %v34 = vrot.slane %v26, 7
  %v35 = vsel %vm30, %v32, %v34
  %v39 = vsel %vm30, %v24, %v31
  %vm40 = vcmask 1046528
  %v41 = vrot.slane %v24, 1
  %v42 = vrot.slane %v25, 1
  %v43 = vsel %vm40, %v41, %v42
  %v44 = vrot.slane %v26, 1
  %v45 = vsel %vm40, %v42, %v44
  %v49 = vsel %vm30, %v44, %v26
  %v50 = vmax.f32 %v24, %v39
  %v51 = vmax.f32 %v25, %v33
  %v52 = vmax.f32 %v26, %v35
  %v53 = vmax.f32 %v50, %v43
  %v54 = vmax.f32 %v51, %v45
  %v55 = vmax.f32 %v52, %v49
  %59 = vrot.lane.b32.xlu0 %v53, 4
  %v60 = vpop.permute.xlu0 %59
  %61 = vrot.lane.b32.xlu0 %v54, 4
  %v62 = vpop.permute.xlu0 %61
  %63 = vrot.lane.b32.xlu0 %v55, 4
  %v64 = vpop.permute.xlu0 %63
  %vm68 = vcmask 31744
  %v69 = vsel %vm68, %v53, %v60
  %v70 = vsel %vm68, %v54, %v62
  %v71 = vsel %vm68, %v55, %v64
  %72 = vrot.lane.b32.xlu0 %v53, 124
  %v73 = vpop.permute.xlu0 %72
  %74 = vrot.lane.b32.xlu0 %v54, 124
  %v75 = vpop.permute.xlu0 %74
  %76 = vrot.lane.b32.xlu0 %v55, 124
  %v77 = vpop.permute.xlu0 %76
  %vm81 = vcmask 556032
  %v82 = vsel %vm81, %v73, %v53
  %v83 = vsel %vm81, %v75, %v54
  %v84 = vsel %vm81, %v77, %v55
  %v85 = vmax.f32 %v53, %v69
  %v86 = vmax.f32 %v54, %v70
  %v87 = vmax.f32 %v55, %v71
  %v88 = vmax.f32 %v85, %v82
  %v89 = vmax.f32 %v86, %v83
  %v90 = vmax.f32 %v87, %v84
  %vm91 = vcmask 588800
  %92 = vst.msk [vmem:[#allocation2] sm:$0xff] %vm91, %v88
  %93 = vst.msk [vmem:[#allocation2 + $0x8] sm:$0xff] %vm91, %v89
  %vm94 = vcmask 582656
  %95 = vst.msk [vmem:[#allocation2 + $0x10] sm:$0x3] %vm94, %v90
  %v96 = vld [vmem:[%s0 + $0x12] sm:$0xff]
  %v97 = vld [vmem:[%s0 + $0x1a] sm:$0xff]
  %v98 = vld [vmem:[%s0 + $0x22] sm:$0x3]
  %v102 = vrot.slane %v96, 7
  %v103 = vrot.slane %v97, 7
  %v104 = vsel %vm30, %v102, %v103
  %v105 = vrot.slane %v98, 7
  %v106 = vsel %vm30, %v103, %v105
  %v110 = vsel %vm30, %v96, %v102
  %v111 = vrot.slane %v96, 1
  %v112 = vrot.slane %v97, 1
  %v113 = vsel %vm40, %v111, %v112
  %v114 = vrot.slane %v98, 1
  %v115 = vsel %vm40, %v112, %v114
  %v119 = vsel %vm30, %v114, %v98
  %v120 = vmax.f32 %v96, %v110
  %v121 = vmax.f32 %v97, %v104
  %v122 = vmax.f32 %v98, %v106
  %v123 = vmax.f32 %v120, %v113
  %v124 = vmax.f32 %v121, %v115
  %v125 = vmax.f32 %v122, %v119
  %129 = vrot.lane.b32.xlu0 %v123, 4
  %v130 = vpop.permute.xlu0 %129
  %131 = vrot.lane.b32.xlu0 %v124, 4
  %v132 = vpop.permute.xlu0 %131
  %133 = vrot.lane.b32.xlu0 %v125, 4
  %v134 = vpop.permute.xlu0 %133
  %v138 = vsel %vm68, %v123, %v130
  %v139 = vsel %vm68, %v124, %v132
  %v140 = vsel %vm68, %v125, %v134
  %141 = vrot.lane.b32.xlu0 %v123, 124
  %v142 = vpop.permute.xlu0 %141
  %143 = vrot.lane.b32.xlu0 %v124, 124
  %v144 = vpop.permute.xlu0 %143
  %145 = vrot.lane.b32.xlu0 %v125, 124
  %v146 = vpop.permute.xlu0 %145
  %v150 = vsel %vm81, %v142, %v123
  %v151 = vsel %vm81, %v144, %v124
  %v152 = vsel %vm81, %v146, %v125
  %v153 = vmax.f32 %v123, %v138
  %v154 = vmax.f32 %v124, %v139
  %v155 = vmax.f32 %v125, %v140
  %v156 = vmax.f32 %v153, %v150
  %v157 = vmax.f32 %v154, %v151
  %v158 = vmax.f32 %v155, %v152
  %159 = vst.msk [vmem:[#allocation2 + $0x12] sm:$0xff] %vm91, %v156
  %160 = vst.msk [vmem:[#allocation2 + $0x1a] sm:$0xff] %vm91, %v157
  %161 = vst.msk [vmem:[#allocation2 + $0x22] sm:$0x3] %vm94, %v158
  %v162 = vld [vmem:[#allocation2] ss:$3 sm:$0xff]
  %s163 = scalar_lea.vmem [#allocation2], 24
  %v164 = vld [vmem:[%s163] ss:$3 sm:$0xf]
  %v165 = vld [vmem:[%s1] sm:$0xff]
  %v166 = vld [vmem:[%s1 + $0x8] sm:$0xff]
  %v167 = vld [vmem:[%s1 + $0x10] sm:$0xff]
  %v168 = vld [vmem:[%s1 + $0x18] sm:$0xff]
  %v169 = vld [vmem:[%s1 + $0x20] sm:$0xff]
  %v170 = vld [vmem:[%s1 + $0x28] sm:$0xff]
  %v171 = vld [vmem:[%s1 + $0x30] sm:$0xff]
  %v172 = vld [vmem:[%s1 + $0x38] sm:$0xff]
  %v173 = vld [vmem:[%s1 + $0x40] sm:$0xff]
  %v174 = vld [vmem:[%s1 + $0x48] sm:$0xff]
  %v175 = vld [vmem:[%s1 + $0x50] sm:$0xff]
  %v176 = vld [vmem:[%s1 + $0x58] sm:$0xff]
  %v177 = vld [vmem:[%s1 + $0x60] sm:$0xff]
  %v178 = vld [vmem:[%s1 + $0x68] sm:$0xff]
  %v179 = vld [vmem:[%s1 + $0x70] sm:$0xff]
  %v180 = vld [vmem:[%s1 + $0x78] sm:$0xff]
  %v181 = vld [vmem:[%s1 + $0x80] sm:$0xff]
  %v182 = vld [vmem:[%s1 + $0x88] sm:$0xff]
  %s183 = scalar_lea.vmem [#allocation2], 1
  %v184 = vld [vmem:[%s183] ss:$3 sm:$0xff]
  %s185 = scalar_lea.vmem [#allocation2], 25
  %v186 = vld [vmem:[%s185] ss:$3 sm:$0xf]
  %s187 = scalar_lea.vmem %s1, 144
  %v188 = vld [vmem:[%s187] sm:$0xff]
  %v189 = vld [vmem:[%s187 + $0x8] sm:$0xff]
  %v190 = vld [vmem:[%s187 + $0x10] sm:$0xff]
  %v191 = vld [vmem:[%s187 + $0x18] sm:$0xff]
  %v192 = vld [vmem:[%s187 + $0x20] sm:$0xff]
  %v193 = vld [vmem:[%s187 + $0x28] sm:$0xff]
  %v194 = vld [vmem:[%s187 + $0x30] sm:$0xff]
  %v195 = vld [vmem:[%s187 + $0x38] sm:$0xff]
  %v196 = vld [vmem:[%s187 + $0x40] sm:$0xff]
  %v197 = vld [vmem:[%s187 + $0x48] sm:$0xff]
  %v198 = vld [vmem:[%s187 + $0x50] sm:$0xff]
  %v199 = vld [vmem:[%s187 + $0x58] sm:$0xff]
  %v200 = vld [vmem:[%s187 + $0x60] sm:$0xff]
  %v201 = vld [vmem:[%s187 + $0x68] sm:$0xff]
  %v202 = vld [vmem:[%s187 + $0x70] sm:$0xff]
  %v203 = vld [vmem:[%s187 + $0x78] sm:$0xff]
  %v204 = vld [vmem:[%s187 + $0x80] sm:$0xff]
  %v205 = vld [vmem:[%s187 + $0x88] sm:$0xff]
  %v207 = vsel %vm91, %v184, 0
  %v210 = vsel %vm91, %v186, 0
  %212 = vmatprep.subr.mxu0 %v189
  %213 = vmatpush1.msra.mxu0 %v188
  %214 = vmatprep.subr.mxu0 %v191
  %215 = vmatpush1.msra.mxu0 %v190
  %216 = vmatprep.subr.mxu0 %v193
  %217 = vmatpush1.msra.mxu0 %v192
  %218 = vmatprep.subr.mxu0 %v195
  %219 = vmatpush1.msra.mxu0 %v194
  %220 = vmatprep.subr.mxu0 %v197
  %221 = vmatpush1.msra.mxu0 %v196
  %222 = vmatprep.subr.mxu0 %v199
  %223 = vmatpush1.msra.mxu0 %v198
  %224 = vmatprep.subr.mxu0 %v201
  %225 = vmatpush1.msra.mxu0 %v200
  %226 = vmatprep.subr.mxu0 %v203
  %227 = vmatpush1.msra.mxu0 %v202
  %228 = vmatprep.subr.mxu0 %v205
  %229 = vmatpush1.msra.mxu0 %v204
  %230 = vmatprep.subr.mxu0 0.0
  %231 = vmatpush1.msra.mxu0 0.0
  %232 = vmatprep.subr.mxu0 0.0
  %233 = vmatpush1.msra.mxu0 0.0
  %234 = vmatprep.subr.mxu0 0.0
  %235 = vmatpush1.msra.mxu0 0.0
  %236 = vmatprep.subr.mxu0 0.0
  %237 = vmatpush1.msra.mxu0 0.0
  %238 = vmatprep.subr.mxu0 0.0
  %239 = vmatpush1.msra.mxu0 0.0
  %240 = vmatprep.subr.mxu0 0.0
  %241 = vmatpush1.msra.mxu0 0.0
  %242 = vmatprep.subr.mxu0 0.0
  %243 = vmatpush1.msra.mxu0 0.0
  %244 = vmatprep.subr.mxu0 0.0
  %245 = vmatpush1.msra.mxu0 0.0
  %246 = vmatprep.subr.mxu0 0.0
  %247 = vmatpush1.msra.mxu0 0.0
  %248 = vmatprep.subr.mxu0 0.0
  %249 = vmatpush1.msra.mxu0 0.0
  %250 = vmatprep.subr.mxu0 0.0
  %251 = vmatpush1.msra.mxu0 0.0
  %252 = vmatprep.subr.mxu0 0.0
  %253 = vmatpush1.msra.mxu0 0.0
  %254 = vmatprep.subr.mxu0 0.0
  %255 = vmatpush1.msra.mxu0 0.0
  %256 = vmatprep.subr.mxu0 0.0
  %257 = vmatpush1.msra.mxu0 0.0
  %258 = vmatprep.subr.mxu0 0.0
  %259 = vmatpush1.msra.mxu0 0.0
  %260 = vmatprep.subr.mxu0 0.0
  %261 = vmatpush1.msra.mxu0 0.0
  %262 = vmatprep.subr.mxu0 0.0
  %263 = vmatpush1.msra.mxu0 0.0
  %264 = vmatprep.subr.mxu0 0.0
  %265 = vmatpush1.msra.mxu0 0.0
  %266 = vmatprep.subr.mxu0 0.0
  %267 = vmatpush1.msra.mxu0 0.0
  %268 = vmatprep.subr.mxu0 0.0
  %269 = vmatpush1.msra.mxu0 0.0
  %270 = vmatprep.subr.mxu0 0.0
  %271 = vmatpush1.msra.mxu0 0.0
  %272 = vmatprep.subr.mxu0 0.0
  %273 = vmatpush1.msra.mxu0 0.0
  %274 = vmatprep.subr.mxu0 0.0
  %275 = vmatpush1.msra.mxu0 0.0
  %276 = vmatprep.mubr.f32.mxu0 0.0
  %277 = vmatmul.mubr.f32.gmra.mrb[0].mxu0 %v207
  %v278 = vpop.f32.mrb[0].mxu0
  %v279 = vadd.f32 0.0, %v278
  %v280 = vpop.f32.mrb[0].mxu0
  %v281 = vadd.f32 0.0, %v280
  %282 = vmatprep.mubr.f32.mxu0 0.0
  %283 = vmatmul.mubr.f32.gmra.mrb[0].mxu0 %v210
  %v284 = vpop.f32.mrb[0].mxu0
  %v285 = vadd.f32 0.0, %v284
  %v286 = vpop.f32.mrb[0].mxu0
  %v287 = vadd.f32 0.0, %v286
  %288 = vdwg.mxu0
  %v290 = vsel %vm91, %v162, 0
  %v293 = vsel %vm91, %v164, 0
  %295 = vmatprep.subr.mxu0 %v166
  %296 = vmatpush1.msra.mxu0 %v165
  %297 = vmatprep.subr.mxu0 %v168
  %298 = vmatpush1.msra.mxu0 %v167
  %299 = vmatprep.subr.mxu0 %v170
  %300 = vmatpush1.msra.mxu0 %v169
  %301 = vmatprep.subr.mxu0 %v172
  %302 = vmatpush1.msra.mxu0 %v171
  %303 = vmatprep.subr.mxu0 %v174
  %304 = vmatpush1.msra.mxu0 %v173
  %305 = vmatprep.subr.mxu0 %v176
  %306 = vmatpush1.msra.mxu0 %v175
  %307 = vmatprep.subr.mxu0 %v178
  %308 = vmatpush1.msra.mxu0 %v177
  %309 = vmatprep.subr.mxu0 %v180
  %310 = vmatpush1.msra.mxu0 %v179
  %311 = vmatprep.subr.mxu0 %v182
  %312 = vmatpush1.msra.mxu0 %v181
  %313 = vmatprep.subr.mxu0 0.0
  %314 = vmatpush1.msra.mxu0 0.0
  %315 = vmatprep.subr.mxu0 0.0
  %316 = vmatpush1.msra.mxu0 0.0
  %317 = vmatprep.subr.mxu0 0.0
  %318 = vmatpush1.msra.mxu0 0.0
  %319 = vmatprep.subr.mxu0 0.0
  %320 = vmatpush1.msra.mxu0 0.0
  %321 = vmatprep.subr.mxu0 0.0
  %322 = vmatpush1.msra.mxu0 0.0
  %323 = vmatprep.subr.mxu0 0.0
  %324 = vmatpush1.msra.mxu0 0.0
  %325 = vmatprep.subr.mxu0 0.0
  %326 = vmatpush1.msra.mxu0 0.0
  %327 = vmatprep.subr.mxu0 0.0
  %328 = vmatpush1.msra.mxu0 0.0
  %329 = vmatprep.subr.mxu0 0.0
  %330 = vmatpush1.msra.mxu0 0.0
  %331 = vmatprep.subr.mxu0 0.0
  %332 = vmatpush1.msra.mxu0 0.0
  %333 = vmatprep.subr.mxu0 0.0
  %334 = vmatpush1.msra.mxu0 0.0
  %335 = vmatprep.subr.mxu0 0.0
  %336 = vmatpush1.msra.mxu0 0.0
  %337 = vmatprep.subr.mxu0 0.0
  %338 = vmatpush1.msra.mxu0 0.0
  %339 = vmatprep.subr.mxu0 0.0
  %340 = vmatpush1.msra.mxu0 0.0
  %341 = vmatprep.subr.mxu0 0.0
  %342 = vmatpush1.msra.mxu0 0.0
  %343 = vmatprep.subr.mxu0 0.0
  %344 = vmatpush1.msra.mxu0 0.0
  %345 = vmatprep.subr.mxu0 0.0
  %346 = vmatpush1.msra.mxu0 0.0
  %347 = vmatprep.subr.mxu0 0.0
  %348 = vmatpush1.msra.mxu0 0.0
  %349 = vmatprep.subr.mxu0 0.0
  %350 = vmatpush1.msra.mxu0 0.0
  %351 = vmatprep.subr.mxu0 0.0
  %352 = vmatpush1.msra.mxu0 0.0
  %353 = vmatprep.subr.mxu0 0.0
  %354 = vmatpush1.msra.mxu0 0.0
  %355 = vmatprep.subr.mxu0 0.0
  %356 = vmatpush1.msra.mxu0 0.0
  %357 = vmatprep.subr.mxu0 0.0
  %358 = vmatpush1.msra.mxu0 0.0
  %359 = vmatprep.mubr.f32.mxu0 0.0
  %360 = vmatmul.mubr.f32.gmra.mrb[0].mxu0 %v290
  %v361 = vpop.f32.mrb[0].mxu0
  %v362 = vadd.f32 %v279, %v361
  %v363 = vpop.f32.mrb[0].mxu0
  %v364 = vadd.f32 %v281, %v363
  %365 = vmatprep.mubr.f32.mxu0 0.0
  %366 = vmatmul.mubr.f32.gmra.mrb[0].mxu0 %v293
  %v367 = vpop.f32.mrb[0].mxu0
  %v368 = vadd.f32 %v285, %v367
  %v369 = vpop.f32.mrb[0].mxu0
  %v370 = vadd.f32 %v287, %v369
  %371 = vdwg.mxu0
  %s372 = scalar_lea.vmem [#allocation2], 2
  %v373 = vld [vmem:[%s372] ss:$3 sm:$0xff]
  %s374 = scalar_lea.vmem [#allocation2], 26
  %v375 = vld [vmem:[%s374] ss:$3 sm:$0xf]
  %s376 = scalar_lea.vmem %s1, 288
  %v377 = vld [vmem:[%s376] sm:$0xff]
  %v378 = vld [vmem:[%s376 + $0x8] sm:$0xff]
  %v379 = vld [vmem:[%s376 + $0x10] sm:$0xff]
  %v380 = vld [vmem:[%s376 + $0x18] sm:$0xff]
  %v381 = vld [vmem:[%s376 + $0x20] sm:$0xff]
  %v382 = vld [vmem:[%s376 + $0x28] sm:$0xff]
  %v383 = vld [vmem:[%s376 + $0x30] sm:$0xff]
  %v384 = vld [vmem:[%s376 + $0x38] sm:$0xff]
  %v385 = vld [vmem:[%s376 + $0x40] sm:$0xff]
  %v386 = vld [vmem:[%s376 + $0x48] sm:$0xff]
  %v387 = vld [vmem:[%s376 + $0x50] sm:$0xff]
  %v388 = vld [vmem:[%s376 + $0x58] sm:$0xff]
  %v389 = vld [vmem:[%s376 + $0x60] sm:$0xff]
  %v390 = vld [vmem:[%s376 + $0x68] sm:$0xff]
  %v391 = vld [vmem:[%s376 + $0x70] sm:$0xff]
  %v392 = vld [vmem:[%s376 + $0x78] sm:$0xff]
  %v393 = vld [vmem:[%s376 + $0x80] sm:$0xff]
  %v394 = vld [vmem:[%s376 + $0x88] sm:$0xff]
  %v396 = vsel %vm91, %v373, 0
  %v399 = vsel %vm91, %v375, 0
  %401 = vmatprep.subr.mxu0 %v378
  %402 = vmatpush1.msra.mxu0 %v377
  %403 = vmatprep.subr.mxu0 %v380
  %404 = vmatpush1.msra.mxu0 %v379
  %405 = vmatprep.subr.mxu0 %v382
  %406 = vmatpush1.msra.mxu0 %v381
  %407 = vmatprep.subr.mxu0 %v384
  %408 = vmatpush1.msra.mxu0 %v383
  %409 = vmatprep.subr.mxu0 %v386
  %410 = vmatpush1.msra.mxu0 %v385
  %411 = vmatprep.subr.mxu0 %v388
  %412 = vmatpush1.msra.mxu0 %v387
  %413 = vmatprep.subr.mxu0 %v390
  %414 = vmatpush1.msra.mxu0 %v389
  %415 = vmatprep.subr.mxu0 %v392
  %416 = vmatpush1.msra.mxu0 %v391
  %417 = vmatprep.subr.mxu0 %v394
  %418 = vmatpush1.msra.mxu0 %v393
  %419 = vmatprep.subr.mxu0 0.0
  %420 = vmatpush1.msra.mxu0 0.0
  %421 = vmatprep.subr.mxu0 0.0
  %422 = vmatpush1.msra.mxu0 0.0
  %423 = vmatprep.subr.mxu0 0.0
  %424 = vmatpush1.msra.mxu0 0.0
  %425 = vmatprep.subr.mxu0 0.0
  %426 = vmatpush1.msra.mxu0 0.0
  %427 = vmatprep.subr.mxu0 0.0
  %428 = vmatpush1.msra.mxu0 0.0
  %429 = vmatprep.subr.mxu0 0.0
  %430 = vmatpush1.msra.mxu0 0.0
  %431 = vmatprep.subr.mxu0 0.0
  %432 = vmatpush1.msra.mxu0 0.0
  %433 = vmatprep.subr.mxu0 0.0
  %434 = vmatpush1.msra.mxu0 0.0
  %435 = vmatprep.subr.mxu0 0.0
  %436 = vmatpush1.msra.mxu0 0.0
  %437 = vmatprep.subr.mxu0 0.0
  %438 = vmatpush1.msra.mxu0 0.0
  %439 = vmatprep.subr.mxu0 0.0
  %440 = vmatpush1.msra.mxu0 0.0
  %441 = vmatprep.subr.mxu0 0.0
  %442 = vmatpush1.msra.mxu0 0.0
  %443 = vmatprep.subr.mxu0 0.0
  %444 = vmatpush1.msra.mxu0 0.0
  %445 = vmatprep.subr.mxu0 0.0
  %446 = vmatpush1.msra.mxu0 0.0
  %447 = vmatprep.subr.mxu0 0.0
  %448 = vmatpush1.msra.mxu0 0.0
  %449 = vmatprep.subr.mxu0 0.0
  %450 = vmatpush1.msra.mxu0 0.0
  %451 = vmatprep.subr.mxu0 0.0
  %452 = vmatpush1.msra.mxu0 0.0
  %453 = vmatprep.subr.mxu0 0.0
  %454 = vmatpush1.msra.mxu0 0.0
  %455 = vmatprep.subr.mxu0 0.0
  %456 = vmatpush1.msra.mxu0 0.0
  %457 = vmatprep.subr.mxu0 0.0
  %458 = vmatpush1.msra.mxu0 0.0
  %459 = vmatprep.subr.mxu0 0.0
  %460 = vmatpush1.msra.mxu0 0.0
  %461 = vmatprep.subr.mxu0 0.0
  %462 = vmatpush1.msra.mxu0 0.0
  %463 = vmatprep.subr.mxu0 0.0
  %464 = vmatpush1.msra.mxu0 0.0
  %465 = vmatprep.mubr.f32.mxu0 0.0
  %466 = vmatmul.mubr.f32.gmra.mrb[0].mxu0 %v396
  %v467 = vpop.f32.mrb[0].mxu0
  %v468 = vadd.f32 0.0, %v467
  %v469 = vpop.f32.mrb[0].mxu0
  %v470 = vadd.f32 0.0, %v469
  %471 = vmatprep.mubr.f32.mxu0 0.0
  %472 = vmatmul.mubr.f32.gmra.mrb[0].mxu0 %v399
  %v473 = vpop.f32.mrb[0].mxu0
  %v474 = vadd.f32 0.0, %v473
  %v475 = vpop.f32.mrb[0].mxu0
  %v476 = vadd.f32 0.0, %v475
  %477 = vdwg.mxu0
  %v478 = vadd.f32 %v362, %v468
  %v479 = vadd.f32 %v364, %v470
  %v480 = vadd.f32 %v368, %v474
  %v481 = vadd.f32 %v370, %v476
  %v483 = vlaneseq
  %v484 = vshrl.u32 %v483, 7
  %v485 = vsub.s32 0, %v484
  %v486 = vrot.slane %v20, %v485
  %v487 = vlaneseq
  %v488 = vshrl.u32 %v487, 7
  %v489 = vsub.s32 1, %v488
  %v490 = vrot.slane %v20, %v489
  %v493 = vadd.f32 %v478, %v486
  %v494 = vadd.f32 %v479, %v490
  %v495 = vadd.f32 %v480, %v486
  %v496 = vadd.f32 %v481, %v490
  %vm497 = vcmask 457728
  %498 = vst.msk [vmem:[#allocation3] sm:$0xff] %vm497, 0.0
  %499 = vst.msk [vmem:[#allocation3 + $0x8] sm:$0xff] %vm497, 0.0
  %500 = vst.msk [vmem:[#allocation3 + $0x10] sm:$0xff] %vm497, 0.0
  %vm501 = vcmask 453632
  %502 = vst.msk [vmem:[#allocation3 + $0x18] sm:$0xf] %vm501, 0.0
  %504 = vrot.lane.b32.xlu0 %v493, 16
  %v505 = vpop.permute.xlu0 %504
  %vm507 = vcmask 324736
  %508 = vst.msk [vmem:[#allocation3 + $0x4] sm:$0x3f] %vm507, %v505
  %v509 = vld [vmem:[#allocation3] sm:$0x3f]
  %v510 = vld [vmem:[%s2] sm:$0xff]
  %v511 = vld [vmem:[%s2 + $0x8] sm:$0xff]
  %v512 = vld [vmem:[%s2 + $0x10] sm:$0xff]
  %v513 = vld [vmem:[%s2 + $0x18] sm:$0xff]
  %v514 = vld [vmem:[%s2 + $0x20] sm:$0xff]
  %v515 = vld [vmem:[%s2 + $0x28] sm:$0xff]
  %v516 = vld [vmem:[%s2 + $0x30] sm:$0xff]
  %v517 = vld [vmem:[#allocation3 + $0x1] sm:$0x3f]
  %s518 = scalar_lea.vmem %s2, 56
  %v519 = vld [vmem:[%s518] sm:$0xff]
  %v520 = vld [vmem:[%s518 + $0x8] sm:$0xff]
  %v521 = vld [vmem:[%s518 + $0x10] sm:$0xff]
  %v522 = vld [vmem:[%s518 + $0x18] sm:$0xff]
  %v523 = vld [vmem:[%s518 + $0x20] sm:$0xff]
  %v524 = vld [vmem:[%s518 + $0x28] sm:$0xff]
  %v525 = vld [vmem:[%s518 + $0x30] sm:$0xff]
  %v527 = vsel %vm497, %v517, 0
  %529 = vmatprep.subr.mxu0 0.0
  %530 = vmatpush1.msra.mxu0 %v519
  %531 = vmatprep.subr.mxu0 0.0
  %532 = vmatpush1.msra.mxu0 %v520
  %533 = vmatprep.subr.mxu0 0.0
  %534 = vmatpush1.msra.mxu0 %v521
  %535 = vmatprep.subr.mxu0 0.0
  %536 = vmatpush1.msra.mxu0 %v522
  %537 = vmatprep.subr.mxu0 0.0
  %538 = vmatpush1.msra.mxu0 %v523
  %539 = vmatprep.subr.mxu0 0.0
  %540 = vmatpush1.msra.mxu0 %v524
  %541 = vmatprep.subr.mxu0 0.0
  %542 = vmatpush1.msra.mxu0 %v525
  %543 = vmatprep.subr.mxu0 0.0
  %544 = vmatpush1.msra.mxu0 0.0
  %545 = vmatprep.subr.mxu0 0.0
  %546 = vmatpush1.msra.mxu0 0.0
  %547 = vmatprep.subr.mxu0 0.0
  %548 = vmatpush1.msra.mxu0 0.0
  %549 = vmatprep.subr.mxu0 0.0
  %550 = vmatpush1.msra.mxu0 0.0
  %551 = vmatprep.subr.mxu0 0.0
  %552 = vmatpush1.msra.mxu0 0.0
  %553 = vmatprep.subr.mxu0 0.0
  %554 = vmatpush1.msra.mxu0 0.0
  %555 = vmatprep.subr.mxu0 0.0
  %556 = vmatpush1.msra.mxu0 0.0
  %557 = vmatprep.subr.mxu0 0.0
  %558 = vmatpush1.msra.mxu0 0.0
  %559 = vmatprep.subr.mxu0 0.0
  %560 = vmatpush1.msra.mxu0 0.0
  %561 = vmatprep.subr.mxu0 0.0
  %562 = vmatpush1.msra.mxu0 0.0
  %563 = vmatprep.subr.mxu0 0.0
  %564 = vmatpush1.msra.mxu0 0.0
  %565 = vmatprep.subr.mxu0 0.0
  %566 = vmatpush1.msra.mxu0 0.0
  %567 = vmatprep.subr.mxu0 0.0
  %568 = vmatpush1.msra.mxu0 0.0
  %569 = vmatprep.subr.mxu0 0.0
  %570 = vmatpush1.msra.mxu0 0.0
  %571 = vmatprep.subr.mxu0 0.0
  %572 = vmatpush1.msra.mxu0 0.0
  %573 = vmatprep.subr.mxu0 0.0
  %574 = vmatpush1.msra.mxu0 0.0
  %575 = vmatprep.subr.mxu0 0.0
  %576 = vmatpush1.msra.mxu0 0.0
  %577 = vmatprep.subr.mxu0 0.0
  %578 = vmatpush1.msra.mxu0 0.0
  %579 = vmatprep.subr.mxu0 0.0
  %580 = vmatpush1.msra.mxu0 0.0
  %581 = vmatprep.subr.mxu0 0.0
  %582 = vmatpush1.msra.mxu0 0.0
  %583 = vmatprep.subr.mxu0 0.0
  %584 = vmatpush1.msra.mxu0 0.0
  %585 = vmatprep.subr.mxu0 0.0
  %586 = vmatpush1.msra.mxu0 0.0
  %587 = vmatprep.subr.mxu0 0.0
  %588 = vmatpush1.msra.mxu0 0.0
  %589 = vmatprep.subr.mxu0 0.0
  %590 = vmatpush1.msra.mxu0 0.0
  %591 = vmatprep.subr.mxu0 0.0
  %592 = vmatpush1.msra.mxu0 0.0
  %593 = vmatprep.mubr.f32.mxu0 0.0
  %594 = vmatmul.mubr.f32.gmra.mrb[0].mxu0 %v527
  %v595 = vpop.f32.mrb[0].mxu0
  %v596 = vadd.f32 0.0, %v595
  %v597 = vpop.f32.mrb[0].mxu0
  %598 = vdwg.mxu0
  %v600 = vsel %vm497, %v509, 0
  %602 = vmatprep.subr.mxu0 0.0
  %603 = vmatpush1.msra.mxu0 %v510
  %604 = vmatprep.subr.mxu0 0.0
  %605 = vmatpush1.msra.mxu0 %v511
  %606 = vmatprep.subr.mxu0 0.0
  %607 = vmatpush1.msra.mxu0 %v512
  %608 = vmatprep.subr.mxu0 0.0
  %609 = vmatpush1.msra.mxu0 %v513
  %610 = vmatprep.subr.mxu0 0.0
  %611 = vmatpush1.msra.mxu0 %v514
  %612 = vmatprep.subr.mxu0 0.0
  %613 = vmatpush1.msra.mxu0 %v515
  %614 = vmatprep.subr.mxu0 0.0
  %615 = vmatpush1.msra.mxu0 %v516
  %616 = vmatprep.subr.mxu0 0.0
  %617 = vmatpush1.msra.mxu0 0.0
  %618 = vmatprep.subr.mxu0 0.0
  %619 = vmatpush1.msra.mxu0 0.0
  %620 = vmatprep.subr.mxu0 0.0
  %621 = vmatpush1.msra.mxu0 0.0
  %622 = vmatprep.subr.mxu0 0.0
  %623 = vmatpush1.msra.mxu0 0.0
  %624 = vmatprep.subr.mxu0 0.0
  %625 = vmatpush1.msra.mxu0 0.0
  %626 = vmatprep.subr.mxu0 0.0
  %627 = vmatpush1.msra.mxu0 0.0
  %628 = vmatprep.subr.mxu0 0.0
  %629 = vmatpush1.msra.mxu0 0.0
  %630 = vmatprep.subr.mxu0 0.0
  %631 = vmatpush1.msra.mxu0 0.0
  %632 = vmatprep.subr.mxu0 0.0
  %633 = vmatpush1.msra.mxu0 0.0
  %634 = vmatprep.subr.mxu0 0.0
  %635 = vmatpush1.msra.mxu0 0.0
  %636 = vmatprep.subr.mxu0 0.0
  %637 = vmatpush1.msra.mxu0 0.0
  %638 = vmatprep.subr.mxu0 0.0
  %639 = vmatpush1.msra.mxu0 0.0
  %640 = vmatprep.subr.mxu0 0.0
  %641 = vmatpush1.msra.mxu0 0.0
  %642 = vmatprep.subr.mxu0 0.0
  %643 = vmatpush1.msra.mxu0 0.0
  %644 = vmatprep.subr.mxu0 0.0
  %645 = vmatpush1.msra.mxu0 0.0
  %646 = vmatprep.subr.mxu0 0.0
  %647 = vmatpush1.msra.mxu0 0.0
  %648 = vmatprep.subr.mxu0 0.0
  %649 = vmatpush1.msra.mxu0 0.0
  %650 = vmatprep.subr.mxu0 0.0
  %651 = vmatpush1.msra.mxu0 0.0
  %652 = vmatprep.subr.mxu0 0.0
  %653 = vmatpush1.msra.mxu0 0.0
  %654 = vmatprep.subr.mxu0 0.0
  %655 = vmatpush1.msra.mxu0 0.0
  %656 = vmatprep.subr.mxu0 0.0
  %657 = vmatpush1.msra.mxu0 0.0
  %658 = vmatprep.subr.mxu0 0.0
  %659 = vmatpush1.msra.mxu0 0.0
  %660 = vmatprep.subr.mxu0 0.0
  %661 = vmatpush1.msra.mxu0 0.0
  %662 = vmatprep.subr.mxu0 0.0
  %663 = vmatpush1.msra.mxu0 0.0
  %664 = vmatprep.subr.mxu0 0.0
  %665 = vmatpush1.msra.mxu0 0.0
  %666 = vmatprep.mubr.f32.mxu0 0.0
  %667 = vmatmul.mubr.f32.gmra.mrb[0].mxu0 %v600
  %v668 = vpop.f32.mrb[0].mxu0
  %v669 = vadd.f32 %v596, %v668
  %v670 = vpop.f32.mrb[0].mxu0
  %671 = vdwg.mxu0
  %v672 = vld [vmem:[#allocation3 + $0x2] sm:$0x3f]
  %s673 = scalar_lea.vmem %s2, 112
  %v674 = vld [vmem:[%s673] sm:$0xff]
  %v675 = vld [vmem:[%s673 + $0x8] sm:$0xff]
  %v676 = vld [vmem:[%s673 + $0x10] sm:$0xff]
  %v677 = vld [vmem:[%s673 + $0x18] sm:$0xff]
  %v678 = vld [vmem:[%s673 + $0x20] sm:$0xff]
  %v679 = vld [vmem:[%s673 + $0x28] sm:$0xff]
  %v680 = vld [vmem:[%s673 + $0x30] sm:$0xff]
  %v682 = vsel %vm497, %v672, 0
  %684 = vmatprep.subr.mxu0 0.0
  %685 = vmatpush1.msra.mxu0 %v674
  %686 = vmatprep.subr.mxu0 0.0
  %687 = vmatpush1.msra.mxu0 %v675
  %688 = vmatprep.subr.mxu0 0.0
  %689 = vmatpush1.msra.mxu0 %v676
  %690 = vmatprep.subr.mxu0 0.0
  %691 = vmatpush1.msra.mxu0 %v677
  %692 = vmatprep.subr.mxu0 0.0
  %693 = vmatpush1.msra.mxu0 %v678
  %694 = vmatprep.subr.mxu0 0.0
  %695 = vmatpush1.msra.mxu0 %v679
  %696 = vmatprep.subr.mxu0 0.0
  %697 = vmatpush1.msra.mxu0 %v680
  %698 = vmatprep.subr.mxu0 0.0
  %699 = vmatpush1.msra.mxu0 0.0
  %700 = vmatprep.subr.mxu0 0.0
  %701 = vmatpush1.msra.mxu0 0.0
  %702 = vmatprep.subr.mxu0 0.0
  %703 = vmatpush1.msra.mxu0 0.0
  %704 = vmatprep.subr.mxu0 0.0
  %705 = vmatpush1.msra.mxu0 0.0
  %706 = vmatprep.subr.mxu0 0.0
  %707 = vmatpush1.msra.mxu0 0.0
  %708 = vmatprep.subr.mxu0 0.0
  %709 = vmatpush1.msra.mxu0 0.0
  %710 = vmatprep.subr.mxu0 0.0
  %711 = vmatpush1.msra.mxu0 0.0
  %712 = vmatprep.subr.mxu0 0.0
  %713 = vmatpush1.msra.mxu0 0.0
  %714 = vmatprep.subr.mxu0 0.0
  %715 = vmatpush1.msra.mxu0 0.0
  %716 = vmatprep.subr.mxu0 0.0
  %717 = vmatpush1.msra.mxu0 0.0
  %718 = vmatprep.subr.mxu0 0.0
  %719 = vmatpush1.msra.mxu0 0.0
  %720 = vmatprep.subr.mxu0 0.0
  %721 = vmatpush1.msra.mxu0 0.0
  %722 = vmatprep.subr.mxu0 0.0
  %723 = vmatpush1.msra.mxu0 0.0
  %724 = vmatprep.subr.mxu0 0.0
  %725 = vmatpush1.msra.mxu0 0.0
  %726 = vmatprep.subr.mxu0 0.0
  %727 = vmatpush1.msra.mxu0 0.0
  %728 = vmatprep.subr.mxu0 0.0
  %729 = vmatpush1.msra.mxu0 0.0
  %730 = vmatprep.subr.mxu0 0.0
  %731 = vmatpush1.msra.mxu0 0.0
  %732 = vmatprep.subr.mxu0 0.0
  %733 = vmatpush1.msra.mxu0 0.0
  %734 = vmatprep.subr.mxu0 0.0
  %735 = vmatpush1.msra.mxu0 0.0
  %736 = vmatprep.subr.mxu0 0.0
  %737 = vmatpush1.msra.mxu0 0.0
  %738 = vmatprep.subr.mxu0 0.0
  %739 = vmatpush1.msra.mxu0 0.0
  %740 = vmatprep.subr.mxu0 0.0
  %741 = vmatpush1.msra.mxu0 0.0
  %742 = vmatprep.subr.mxu0 0.0
  %743 = vmatpush1.msra.mxu0 0.0
  %744 = vmatprep.subr.mxu0 0.0
  %745 = vmatpush1.msra.mxu0 0.0
  %746 = vmatprep.subr.mxu0 0.0
  %747 = vmatpush1.msra.mxu0 0.0
  %748 = vmatprep.mubr.f32.mxu0 0.0
  %749 = vmatmul.mubr.f32.gmra.mrb[0].mxu0 %v682
  %v750 = vpop.f32.mrb[0].mxu0
  %v751 = vadd.f32 0.0, %v750
  %v752 = vpop.f32.mrb[0].mxu0
  %753 = vdwg.mxu0
  %v754 = vadd.f32 %v669, %v751
  %v755 = vld [vmem:[#allocation3 + $0x3] sm:$0x3f]
  %s756 = scalar_lea.vmem %s2, 168
  %v757 = vld [vmem:[%s756] sm:$0xff]
  %v758 = vld [vmem:[%s756 + $0x8] sm:$0xff]
  %v759 = vld [vmem:[%s756 + $0x10] sm:$0xff]
  %v760 = vld [vmem:[%s756 + $0x18] sm:$0xff]
  %v761 = vld [vmem:[%s756 + $0x20] sm:$0xff]
  %v762 = vld [vmem:[%s756 + $0x28] sm:$0xff]
  %v763 = vld [vmem:[%s756 + $0x30] sm:$0xff]
  %v765 = vsel %vm497, %v755, 0
  %767 = vmatprep.subr.mxu0 0.0
  %768 = vmatpush1.msra.mxu0 %v757
  %769 = vmatprep.subr.mxu0 0.0
  %770 = vmatpush1.msra.mxu0 %v758
  %771 = vmatprep.subr.mxu0 0.0
  %772 = vmatpush1.msra.mxu0 %v759
  %773 = vmatprep.subr.mxu0 0.0
  %774 = vmatpush1.msra.mxu0 %v760
  %775 = vmatprep.subr.mxu0 0.0
  %776 = vmatpush1.msra.mxu0 %v761
  %777 = vmatprep.subr.mxu0 0.0
  %778 = vmatpush1.msra.mxu0 %v762
  %779 = vmatprep.subr.mxu0 0.0
  %780 = vmatpush1.msra.mxu0 %v763
  %781 = vmatprep.subr.mxu0 0.0
  %782 = vmatpush1.msra.mxu0 0.0
  %783 = vmatprep.subr.mxu0 0.0
  %784 = vmatpush1.msra.mxu0 0.0
  %785 = vmatprep.subr.mxu0 0.0
  %786 = vmatpush1.msra.mxu0 0.0
  %787 = vmatprep.subr.mxu0 0.0
  %788 = vmatpush1.msra.mxu0 0.0
  %789 = vmatprep.subr.mxu0 0.0
  %790 = vmatpush1.msra.mxu0 0.0
  %791 = vmatprep.subr.mxu0 0.0
  %792 = vmatpush1.msra.mxu0 0.0
  %793 = vmatprep.subr.mxu0 0.0
  %794 = vmatpush1.msra.mxu0 0.0
  %795 = vmatprep.subr.mxu0 0.0
  %796 = vmatpush1.msra.mxu0 0.0
  %797 = vmatprep.subr.mxu0 0.0
  %798 = vmatpush1.msra.mxu0 0.0
  %799 = vmatprep.subr.mxu0 0.0
  %800 = vmatpush1.msra.mxu0 0.0
  %801 = vmatprep.subr.mxu0 0.0
  %802 = vmatpush1.msra.mxu0 0.0
  %803 = vmatprep.subr.mxu0 0.0
  %804 = vmatpush1.msra.mxu0 0.0
  %805 = vmatprep.subr.mxu0 0.0
  %806 = vmatpush1.msra.mxu0 0.0
  %807 = vmatprep.subr.mxu0 0.0
  %808 = vmatpush1.msra.mxu0 0.0
  %809 = vmatprep.subr.mxu0 0.0
  %810 = vmatpush1.msra.mxu0 0.0
  %811 = vmatprep.subr.mxu0 0.0
  %812 = vmatpush1.msra.mxu0 0.0
  %813 = vmatprep.subr.mxu0 0.0
  %814 = vmatpush1.msra.mxu0 0.0
  %815 = vmatprep.subr.mxu0 0.0
  %816 = vmatpush1.msra.mxu0 0.0
  %817 = vmatprep.subr.mxu0 0.0
  %818 = vmatpush1.msra.mxu0 0.0
  %819 = vmatprep.subr.mxu0 0.0
  %820 = vmatpush1.msra.mxu0 0.0
  %821 = vmatprep.subr.mxu0 0.0
  %822 = vmatpush1.msra.mxu0 0.0
  %823 = vmatprep.subr.mxu0 0.0
  %824 = vmatpush1.msra.mxu0 0.0
  %825 = vmatprep.subr.mxu0 0.0
  %826 = vmatpush1.msra.mxu0 0.0
  %827 = vmatprep.subr.mxu0 0.0
  %828 = vmatpush1.msra.mxu0 0.0
  %829 = vmatprep.subr.mxu0 0.0
  %830 = vmatpush1.msra.mxu0 0.0
  %831 = vmatprep.mubr.f32.mxu0 0.0
  %832 = vmatmul.mubr.f32.gmra.mrb[0].mxu0 %v765
  %v833 = vpop.f32.mrb[0].mxu0
  %v834 = vadd.f32 0.0, %v833
  %v835 = vpop.f32.mrb[0].mxu0
  %836 = vdwg.mxu0
  %v837 = vadd.f32 %v754, %v834
  %v838 = vld [vmem:[#allocation3 + $0x4] sm:$0x3f]
  %s839 = scalar_lea.vmem %s2, 224
  %v840 = vld [vmem:[%s839] sm:$0xff]
  %v841 = vld [vmem:[%s839 + $0x8] sm:$0xff]
  %v842 = vld [vmem:[%s839 + $0x10] sm:$0xff]
  %v843 = vld [vmem:[%s839 + $0x18] sm:$0xff]
  %v844 = vld [vmem:[%s839 + $0x20] sm:$0xff]
  %v845 = vld [vmem:[%s839 + $0x28] sm:$0xff]
  %v846 = vld [vmem:[%s839 + $0x30] sm:$0xff]
  %v848 = vsel %vm497, %v838, 0
  %850 = vmatprep.subr.mxu0 0.0
  %851 = vmatpush1.msra.mxu0 %v840
  %852 = vmatprep.subr.mxu0 0.0
  %853 = vmatpush1.msra.mxu0 %v841
  %854 = vmatprep.subr.mxu0 0.0
  %855 = vmatpush1.msra.mxu0 %v842
  %856 = vmatprep.subr.mxu0 0.0
  %857 = vmatpush1.msra.mxu0 %v843
  %858 = vmatprep.subr.mxu0 0.0
  %859 = vmatpush1.msra.mxu0 %v844
  %860 = vmatprep.subr.mxu0 0.0
  %861 = vmatpush1.msra.mxu0 %v845
  %862 = vmatprep.subr.mxu0 0.0
  %863 = vmatpush1.msra.mxu0 %v846
  %864 = vmatprep.subr.mxu0 0.0
  %865 = vmatpush1.msra.mxu0 0.0
  %866 = vmatprep.subr.mxu0 0.0
  %867 = vmatpush1.msra.mxu0 0.0
  %868 = vmatprep.subr.mxu0 0.0
  %869 = vmatpush1.msra.mxu0 0.0
  %870 = vmatprep.subr.mxu0 0.0
  %871 = vmatpush1.msra.mxu0 0.0
  %872 = vmatprep.subr.mxu0 0.0
  %873 = vmatpush1.msra.mxu0 0.0
  %874 = vmatprep.subr.mxu0 0.0
  %875 = vmatpush1.msra.mxu0 0.0
  %876 = vmatprep.subr.mxu0 0.0
  %877 = vmatpush1.msra.mxu0 0.0
  %878 = vmatprep.subr.mxu0 0.0
  %879 = vmatpush1.msra.mxu0 0.0
  %880 = vmatprep.subr.mxu0 0.0
  %881 = vmatpush1.msra.mxu0 0.0
  %882 = vmatprep.subr.mxu0 0.0
  %883 = vmatpush1.msra.mxu0 0.0
  %884 = vmatprep.subr.mxu0 0.0
  %885 = vmatpush1.msra.mxu0 0.0
  %886 = vmatprep.subr.mxu0 0.0
  %887 = vmatpush1.msra.mxu0 0.0
  %888 = vmatprep.subr.mxu0 0.0
  %889 = vmatpush1.msra.mxu0 0.0
  %890 = vmatprep.subr.mxu0 0.0
  %891 = vmatpush1.msra.mxu0 0.0
  %892 = vmatprep.subr.mxu0 0.0
  %893 = vmatpush1.msra.mxu0 0.0
  %894 = vmatprep.subr.mxu0 0.0
  %895 = vmatpush1.msra.mxu0 0.0
  %896 = vmatprep.subr.mxu0 0.0
  %897 = vmatpush1.msra.mxu0 0.0
  %898 = vmatprep.subr.mxu0 0.0
  %899 = vmatpush1.msra.mxu0 0.0
  %900 = vmatprep.subr.mxu0 0.0
  %901 = vmatpush1.msra.mxu0 0.0
  %902 = vmatprep.subr.mxu0 0.0
  %903 = vmatpush1.msra.mxu0 0.0
  %904 = vmatprep.subr.mxu0 0.0
  %905 = vmatpush1.msra.mxu0 0.0
  %906 = vmatprep.subr.mxu0 0.0
  %907 = vmatpush1.msra.mxu0 0.0
  %908 = vmatprep.subr.mxu0 0.0
  %909 = vmatpush1.msra.mxu0 0.0
  %910 = vmatprep.subr.mxu0 0.0
  %911 = vmatpush1.msra.mxu0 0.0
  %912 = vmatprep.subr.mxu0 0.0
  %913 = vmatpush1.msra.mxu0 0.0
  %914 = vmatprep.mubr.f32.mxu0 0.0
  %915 = vmatmul.mubr.f32.gmra.mrb[0].mxu0 %v848
  %v916 = vpop.f32.mrb[0].mxu0
  %v917 = vadd.f32 0.0, %v916
  %v918 = vpop.f32.mrb[0].mxu0
  %919 = vdwg.mxu0
  %v920 = vadd.f32 %v837, %v917
  %v921 = vld [vmem:[#allocation3 + $0x5] sm:$0x3f]
  %s922 = scalar_lea.vmem %s2, 280
  %v923 = vld [vmem:[%s922] sm:$0xff]
  %v924 = vld [vmem:[%s922 + $0x8] sm:$0xff]
  %v925 = vld [vmem:[%s922 + $0x10] sm:$0xff]
  %v926 = vld [vmem:[%s922 + $0x18] sm:$0xff]
  %v927 = vld [vmem:[%s922 + $0x20] sm:$0xff]
  %v928 = vld [vmem:[%s922 + $0x28] sm:$0xff]
  %v929 = vld [vmem:[%s922 + $0x30] sm:$0xff]
  %v931 = vsel %vm497, %v921, 0
  %933 = vmatprep.subr.mxu0 0.0
  %934 = vmatpush1.msra.mxu0 %v923
  %935 = vmatprep.subr.mxu0 0.0
  %936 = vmatpush1.msra.mxu0 %v924
  %937 = vmatprep.subr.mxu0 0.0
  %938 = vmatpush1.msra.mxu0 %v925
  %939 = vmatprep.subr.mxu0 0.0
  %940 = vmatpush1.msra.mxu0 %v926
  %941 = vmatprep.subr.mxu0 0.0
  %942 = vmatpush1.msra.mxu0 %v927
  %943 = vmatprep.subr.mxu0 0.0
  %944 = vmatpush1.msra.mxu0 %v928
  %945 = vmatprep.subr.mxu0 0.0
  %946 = vmatpush1.msra.mxu0 %v929
  %947 = vmatprep.subr.mxu0 0.0
  %948 = vmatpush1.msra.mxu0 0.0
  %949 = vmatprep.subr.mxu0 0.0
  %950 = vmatpush1.msra.mxu0 0.0
  %951 = vmatprep.subr.mxu0 0.0
  %952 = vmatpush1.msra.mxu0 0.0
  %953 = vmatprep.subr.mxu0 0.0
  %954 = vmatpush1.msra.mxu0 0.0
  %955 = vmatprep.subr.mxu0 0.0
  %956 = vmatpush1.msra.mxu0 0.0
  %957 = vmatprep.subr.mxu0 0.0
  %958 = vmatpush1.msra.mxu0 0.0
  %959 = vmatprep.subr.mxu0 0.0
  %960 = vmatpush1.msra.mxu0 0.0
  %961 = vmatprep.subr.mxu0 0.0
  %962 = vmatpush1.msra.mxu0 0.0
  %963 = vmatprep.subr.mxu0 0.0
  %964 = vmatpush1.msra.mxu0 0.0
  %965 = vmatprep.subr.mxu0 0.0
  %966 = vmatpush1.msra.mxu0 0.0
  %967 = vmatprep.subr.mxu0 0.0
  %968 = vmatpush1.msra.mxu0 0.0
  %969 = vmatprep.subr.mxu0 0.0
  %970 = vmatpush1.msra.mxu0 0.0
  %971 = vmatprep.subr.mxu0 0.0
  %972 = vmatpush1.msra.mxu0 0.0
  %973 = vmatprep.subr.mxu0 0.0
  %974 = vmatpush1.msra.mxu0 0.0
  %975 = vmatprep.subr.mxu0 0.0
  %976 = vmatpush1.msra.mxu0 0.0
  %977 = vmatprep.subr.mxu0 0.0
  %978 = vmatpush1.msra.mxu0 0.0
  %979 = vmatprep.subr.mxu0 0.0
  %980 = vmatpush1.msra.mxu0 0.0
  %981 = vmatprep.subr.mxu0 0.0
  %982 = vmatpush1.msra.mxu0 0.0
  %983 = vmatprep.subr.mxu0 0.0
  %984 = vmatpush1.msra.mxu0 0.0
  %985 = vmatprep.subr.mxu0 0.0
  %986 = vmatpush1.msra.mxu0 0.0
  %987 = vmatprep.subr.mxu0 0.0
  %988 = vmatpush1.msra.mxu0 0.0
  %989 = vmatprep.subr.mxu0 0.0
  %990 = vmatpush1.msra.mxu0 0.0
  %991 = vmatprep.subr.mxu0 0.0
  %992 = vmatpush1.msra.mxu0 0.0
  %993 = vmatprep.subr.mxu0 0.0
  %994 = vmatpush1.msra.mxu0 0.0
  %995 = vmatprep.subr.mxu0 0.0
  %996 = vmatpush1.msra.mxu0 0.0
  %997 = vmatprep.mubr.f32.mxu0 0.0
  %998 = vmatmul.mubr.f32.gmra.mrb[0].mxu0 %v931
  %v999 = vpop.f32.mrb[0].mxu0
  %v1000 = vadd.f32 0.0, %v999
  %v1001 = vpop.f32.mrb[0].mxu0
  %1002 = vdwg.mxu0
  %v1003 = vadd.f32 %v920, %v1000
  %v1004 = vld [vmem:[#allocation3 + $0x6] sm:$0x3f]
  %s1005 = scalar_lea.vmem %s2, 336
  %v1006 = vld [vmem:[%s1005] sm:$0xff]
  %v1007 = vld [vmem:[%s1005 + $0x8] sm:$0xff]
  %v1008 = vld [vmem:[%s1005 + $0x10] sm:$0xff]
  %v1009 = vld [vmem:[%s1005 + $0x18] sm:$0xff]
  %v1010 = vld [vmem:[%s1005 + $0x20] sm:$0xff]
  %v1011 = vld [vmem:[%s1005 + $0x28] sm:$0xff]
  %v1012 = vld [vmem:[%s1005 + $0x30] sm:$0xff]
  %v1014 = vsel %vm497, %v1004, 0
  %1016 = vmatprep.subr.mxu0 0.0
  %1017 = vmatpush1.msra.mxu0 %v1006
  %1018 = vmatprep.subr.mxu0 0.0
  %1019 = vmatpush1.msra.mxu0 %v1007
  %1020 = vmatprep.subr.mxu0 0.0
  %1021 = vmatpush1.msra.mxu0 %v1008
  %1022 = vmatprep.subr.mxu0 0.0
  %1023 = vmatpush1.msra.mxu0 %v1009
  %1024 = vmatprep.subr.mxu0 0.0
  %1025 = vmatpush1.msra.mxu0 %v1010
  %1026 = vmatprep.subr.mxu0 0.0
  %1027 = vmatpush1.msra.mxu0 %v1011
  %1028 = vmatprep.subr.mxu0 0.0
  %1029 = vmatpush1.msra.mxu0 %v1012
  %1030 = vmatprep.subr.mxu0 0.0
  %1031 = vmatpush1.msra.mxu0 0.0
  %1032 = vmatprep.subr.mxu0 0.0
  %1033 = vmatpush1.msra.mxu0 0.0
  %1034 = vmatprep.subr.mxu0 0.0
  %1035 = vmatpush1.msra.mxu0 0.0
  %1036 = vmatprep.subr.mxu0 0.0
  %1037 = vmatpush1.msra.mxu0 0.0
  %1038 = vmatprep.subr.mxu0 0.0
  %1039 = vmatpush1.msra.mxu0 0.0
  %1040 = vmatprep.subr.mxu0 0.0
  %1041 = vmatpush1.msra.mxu0 0.0
  %1042 = vmatprep.subr.mxu0 0.0
  %1043 = vmatpush1.msra.mxu0 0.0
  %1044 = vmatprep.subr.mxu0 0.0
  %1045 = vmatpush1.msra.mxu0 0.0
  %1046 = vmatprep.subr.mxu0 0.0
  %1047 = vmatpush1.msra.mxu0 0.0
  %1048 = vmatprep.subr.mxu0 0.0
  %1049 = vmatpush1.msra.mxu0 0.0
  %1050 = vmatprep.subr.mxu0 0.0
  %1051 = vmatpush1.msra.mxu0 0.0
  %1052 = vmatprep.subr.mxu0 0.0
  %1053 = vmatpush1.msra.mxu0 0.0
  %1054 = vmatprep.subr.mxu0 0.0
  %1055 = vmatpush1.msra.mxu0 0.0
  %1056 = vmatprep.subr.mxu0 0.0
  %1057 = vmatpush1.msra.mxu0 0.0
  %1058 = vmatprep.subr.mxu0 0.0
  %1059 = vmatpush1.msra.mxu0 0.0
  %1060 = vmatprep.subr.mxu0 0.0
  %1061 = vmatpush1.msra.mxu0 0.0
  %1062 = vmatprep.subr.mxu0 0.0
  %1063 = vmatpush1.msra.mxu0 0.0
  %1064 = vmatprep.subr.mxu0 0.0
  %1065 = vmatpush1.msra.mxu0 0.0
  %1066 = vmatprep.subr.mxu0 0.0
  %1067 = vmatpush1.msra.mxu0 0.0
  %1068 = vmatprep.subr.mxu0 0.0
  %1069 = vmatpush1.msra.mxu0 0.0
  %1070 = vmatprep.subr.mxu0 0.0
  %1071 = vmatpush1.msra.mxu0 0.0
  %1072 = vmatprep.subr.mxu0 0.0
  %1073 = vmatpush1.msra.mxu0 0.0
  %1074 = vmatprep.subr.mxu0 0.0
  %1075 = vmatpush1.msra.mxu0 0.0
  %1076 = vmatprep.subr.mxu0 0.0
  %1077 = vmatpush1.msra.mxu0 0.0
  %1078 = vmatprep.subr.mxu0 0.0
  %1079 = vmatpush1.msra.mxu0 0.0
  %1080 = vmatprep.mubr.f32.mxu0 0.0
  %1081 = vmatmul.mubr.f32.gmra.mrb[0].mxu0 %v1014
  %v1082 = vpop.f32.mrb[0].mxu0
  %v1083 = vadd.f32 0.0, %v1082
  %v1084 = vpop.f32.mrb[0].mxu0
  %1085 = vdwg.mxu0
  %v1086 = vadd.f32 %v1003, %v1083
  %v1087 = vld [vmem:[#allocation3 + $0x7] sm:$0x3f]
  %s1088 = scalar_lea.vmem %s2, 392
  %v1089 = vld [vmem:[%s1088] sm:$0xff]
  %v1090 = vld [vmem:[%s1088 + $0x8] sm:$0xff]
  %v1091 = vld [vmem:[%s1088 + $0x10] sm:$0xff]
  %v1092 = vld [vmem:[%s1088 + $0x18] sm:$0xff]
  %v1093 = vld [vmem:[%s1088 + $0x20] sm:$0xff]
  %v1094 = vld [vmem:[%s1088 + $0x28] sm:$0xff]
  %v1095 = vld [vmem:[%s1088 + $0x30] sm:$0xff]
  %v1097 = vsel %vm497, %v1087, 0
  %1099 = vmatprep.subr.mxu0 0.0
  %1100 = vmatpush1.msra.mxu0 %v1089
  %1101 = vmatprep.subr.mxu0 0.0
  %1102 = vmatpush1.msra.mxu0 %v1090
  %1103 = vmatprep.subr.mxu0 0.0
  %1104 = vmatpush1.msra.mxu0 %v1091
  %1105 = vmatprep.subr.mxu0 0.0
  %1106 = vmatpush1.msra.mxu0 %v1092
  %1107 = vmatprep.subr.mxu0 0.0
  %1108 = vmatpush1.msra.mxu0 %v1093
  %1109 = vmatprep.subr.mxu0 0.0
  %1110 = vmatpush1.msra.mxu0 %v1094
  %1111 = vmatprep.subr.mxu0 0.0
  %1112 = vmatpush1.msra.mxu0 %v1095
  %1113 = vmatprep.subr.mxu0 0.0
  %1114 = vmatpush1.msra.mxu0 0.0
  %1115 = vmatprep.subr.mxu0 0.0
  %1116 = vmatpush1.msra.mxu0 0.0
  %1117 = vmatprep.subr.mxu0 0.0
  %1118 = vmatpush1.msra.mxu0 0.0
  %1119 = vmatprep.subr.mxu0 0.0
  %1120 = vmatpush1.msra.mxu0 0.0
  %1121 = vmatprep.subr.mxu0 0.0
  %1122 = vmatpush1.msra.mxu0 0.0
  %1123 = vmatprep.subr.mxu0 0.0
  %1124 = vmatpush1.msra.mxu0 0.0
  %1125 = vmatprep.subr.mxu0 0.0
  %1126 = vmatpush1.msra.mxu0 0.0
  %1127 = vmatprep.subr.mxu0 0.0
  %1128 = vmatpush1.msra.mxu0 0.0
  %1129 = vmatprep.subr.mxu0 0.0
  %1130 = vmatpush1.msra.mxu0 0.0
  %1131 = vmatprep.subr.mxu0 0.0
  %1132 = vmatpush1.msra.mxu0 0.0
  %1133 = vmatprep.subr.mxu0 0.0
  %1134 = vmatpush1.msra.mxu0 0.0
  %1135 = vmatprep.subr.mxu0 0.0
  %1136 = vmatpush1.msra.mxu0 0.0
  %1137 = vmatprep.subr.mxu0 0.0
  %1138 = vmatpush1.msra.mxu0 0.0
  %1139 = vmatprep.subr.mxu0 0.0
  %1140 = vmatpush1.msra.mxu0 0.0
  %1141 = vmatprep.subr.mxu0 0.0
  %1142 = vmatpush1.msra.mxu0 0.0
  %1143 = vmatprep.subr.mxu0 0.0
  %1144 = vmatpush1.msra.mxu0 0.0
  %1145 = vmatprep.subr.mxu0 0.0
  %1146 = vmatpush1.msra.mxu0 0.0
  %1147 = vmatprep.subr.mxu0 0.0
  %1148 = vmatpush1.msra.mxu0 0.0
  %1149 = vmatprep.subr.mxu0 0.0
  %1150 = vmatpush1.msra.mxu0 0.0
  %1151 = vmatprep.subr.mxu0 0.0
  %1152 = vmatpush1.msra.mxu0 0.0
  %1153 = vmatprep.subr.mxu0 0.0
  %1154 = vmatpush1.msra.mxu0 0.0
  %1155 = vmatprep.subr.mxu0 0.0
  %1156 = vmatpush1.msra.mxu0 0.0
  %1157 = vmatprep.subr.mxu0 0.0
  %1158 = vmatpush1.msra.mxu0 0.0
  %1159 = vmatprep.subr.mxu0 0.0
  %1160 = vmatpush1.msra.mxu0 0.0
  %1161 = vmatprep.subr.mxu0 0.0
  %1162 = vmatpush1.msra.mxu0 0.0
  %1163 = vmatprep.mubr.f32.mxu0 0.0
  %1164 = vmatmul.mubr.f32.gmra.mrb[0].mxu0 %v1097
  %v1165 = vpop.f32.mrb[0].mxu0
  %v1166 = vadd.f32 0.0, %v1165
  %v1167 = vpop.f32.mrb[0].mxu0
  %1168 = vdwg.mxu0
  %v1169 = vadd.f32 %v1086, %v1166
  %v1170 = vld [vmem:[#allocation3 + $0x8] sm:$0x3f]
  %s1171 = scalar_lea.vmem %s2, 448
  %v1172 = vld [vmem:[%s1171] sm:$0xff]
  %v1173 = vld [vmem:[%s1171 + $0x8] sm:$0xff]
  %v1174 = vld [vmem:[%s1171 + $0x10] sm:$0xff]
  %v1175 = vld [vmem:[%s1171 + $0x18] sm:$0xff]
  %v1176 = vld [vmem:[%s1171 + $0x20] sm:$0xff]
  %v1177 = vld [vmem:[%s1171 + $0x28] sm:$0xff]
  %v1178 = vld [vmem:[%s1171 + $0x30] sm:$0xff]
  %v1180 = vsel %vm497, %v1170, 0
  %1182 = vmatprep.subr.mxu0 0.0
  %1183 = vmatpush1.msra.mxu0 %v1172
  %1184 = vmatprep.subr.mxu0 0.0
  %1185 = vmatpush1.msra.mxu0 %v1173
  %1186 = vmatprep.subr.mxu0 0.0
  %1187 = vmatpush1.msra.mxu0 %v1174
  %1188 = vmatprep.subr.mxu0 0.0
  %1189 = vmatpush1.msra.mxu0 %v1175
  %1190 = vmatprep.subr.mxu0 0.0
  %1191 = vmatpush1.msra.mxu0 %v1176
  %1192 = vmatprep.subr.mxu0 0.0
  %1193 = vmatpush1.msra.mxu0 %v1177
  %1194 = vmatprep.subr.mxu0 0.0
  %1195 = vmatpush1.msra.mxu0 %v1178
  %1196 = vmatprep.subr.mxu0 0.0
  %1197 = vmatpush1.msra.mxu0 0.0
  %1198 = vmatprep.subr.mxu0 0.0
  %1199 = vmatpush1.msra.mxu0 0.0
  %1200 = vmatprep.subr.mxu0 0.0
  %1201 = vmatpush1.msra.mxu0 0.0
  %1202 = vmatprep.subr.mxu0 0.0
  %1203 = vmatpush1.msra.mxu0 0.0
  %1204 = vmatprep.subr.mxu0 0.0
  %1205 = vmatpush1.msra.mxu0 0.0
  %1206 = vmatprep.subr.mxu0 0.0
  %1207 = vmatpush1.msra.mxu0 0.0
  %1208 = vmatprep.subr.mxu0 0.0
  %1209 = vmatpush1.msra.mxu0 0.0
  %1210 = vmatprep.subr.mxu0 0.0
  %1211 = vmatpush1.msra.mxu0 0.0
  %1212 = vmatprep.subr.mxu0 0.0
  %1213 = vmatpush1.msra.mxu0 0.0
  %1214 = vmatprep.subr.mxu0 0.0
  %1215 = vmatpush1.msra.mxu0 0.0
  %1216 = vmatprep.subr.mxu0 0.0
  %1217 = vmatpush1.msra.mxu0 0.0
  %1218 = vmatprep.subr.mxu0 0.0
  %1219 = vmatpush1.msra.mxu0 0.0
  %1220 = vmatprep.subr.mxu0 0.0
  %1221 = vmatpush1.msra.mxu0 0.0
  %1222 = vmatprep.subr.mxu0 0.0
  %1223 = vmatpush1.msra.mxu0 0.0
  %1224 = vmatprep.subr.mxu0 0.0
  %1225 = vmatpush1.msra.mxu0 0.0
  %1226 = vmatprep.subr.mxu0 0.0
  %1227 = vmatpush1.msra.mxu0 0.0
  %1228 = vmatprep.subr.mxu0 0.0
  %1229 = vmatpush1.msra.mxu0 0.0
  %1230 = vmatprep.subr.mxu0 0.0
  %1231 = vmatpush1.msra.mxu0 0.0
  %1232 = vmatprep.subr.mxu0 0.0
  %1233 = vmatpush1.msra.mxu0 0.0
  %1234 = vmatprep.subr.mxu0 0.0
  %1235 = vmatpush1.msra.mxu0 0.0
  %1236 = vmatprep.subr.mxu0 0.0
  %1237 = vmatpush1.msra.mxu0 0.0
  %1238 = vmatprep.subr.mxu0 0.0
  %1239 = vmatpush1.msra.mxu0 0.0
  %1240 = vmatprep.subr.mxu0 0.0
  %1241 = vmatpush1.msra.mxu0 0.0
  %1242 = vmatprep.subr.mxu0 0.0
  %1243 = vmatpush1.msra.mxu0 0.0
  %1244 = vmatprep.subr.mxu0 0.0
  %1245 = vmatpush1.msra.mxu0 0.0
  %1246 = vmatprep.mubr.f32.mxu0 0.0
  %1247 = vmatmul.mubr.f32.gmra.mrb[0].mxu0 %v1180
  %v1248 = vpop.f32.mrb[0].mxu0
  %v1249 = vadd.f32 0.0, %v1248
  %v1250 = vpop.f32.mrb[0].mxu0
  %1251 = vdwg.mxu0
  %v1252 = vadd.f32 %v1169, %v1249
  %vm1253 = vcmask 193536
  %1254 = vst.msk [vmem:[#allocation4] sm:$0x3f] %vm1253, %v1252
  %1256 = vrot.lane.b32.xlu0 %v495, 16
  %v1257 = vpop.permute.xlu0 %1256
  %vm1259 = vcmask 326790
  %1260 = vst.msk [vmem:[#allocation3 + $0xc] sm:$0xc0] %vm1259, %v505
  %vm1261 = vcmask 322688
  %1262 = vst.msk [vmem:[#allocation3 + $0x14] sm:$0xf] %vm1261, %v1257
  %v1263 = vld [vmem:[#allocation3 + $0xe] sm:$0x3f]
  %v1264 = vld [vmem:[%s2] sm:$0xff]
  %v1265 = vld [vmem:[%s2 + $0x8] sm:$0xff]
  %v1266 = vld [vmem:[%s2 + $0x10] sm:$0xff]
  %v1267 = vld [vmem:[%s2 + $0x18] sm:$0xff]
  %v1268 = vld [vmem:[%s2 + $0x20] sm:$0xff]
  %v1269 = vld [vmem:[%s2 + $0x28] sm:$0xff]
  %v1270 = vld [vmem:[%s2 + $0x30] sm:$0xff]
  %v1271 = vld [vmem:[#allocation3 + $0xf] sm:$0x3f]
  %v1272 = vld [vmem:[%s518] sm:$0xff]
  %v1273 = vld [vmem:[%s518 + $0x8] sm:$0xff]
  %v1274 = vld [vmem:[%s518 + $0x10] sm:$0xff]
  %v1275 = vld [vmem:[%s518 + $0x18] sm:$0xff]
  %v1276 = vld [vmem:[%s518 + $0x20] sm:$0xff]
  %v1277 = vld [vmem:[%s518 + $0x28] sm:$0xff]
  %v1278 = vld [vmem:[%s518 + $0x30] sm:$0xff]
  %v1280 = vsel %vm497, %v1271, 0
  %1282 = vmatprep.subr.mxu0 0.0
  %1283 = vmatpush1.msra.mxu0 %v1272
  %1284 = vmatprep.subr.mxu0 0.0
  %1285 = vmatpush1.msra.mxu0 %v1273
  %1286 = vmatprep.subr.mxu0 0.0
  %1287 = vmatpush1.msra.mxu0 %v1274
  %1288 = vmatprep.subr.mxu0 0.0
  %1289 = vmatpush1.msra.mxu0 %v1275
  %1290 = vmatprep.subr.mxu0 0.0
  %1291 = vmatpush1.msra.mxu0 %v1276
  %1292 = vmatprep.subr.mxu0 0.0
  %1293 = vmatpush1.msra.mxu0 %v1277
  %1294 = vmatprep.subr.mxu0 0.0
  %1295 = vmatpush1.msra.mxu0 %v1278
  %1296 = vmatprep.subr.mxu0 0.0
  %1297 = vmatpush1.msra.mxu0 0.0
  %1298 = vmatprep.subr.mxu0 0.0
  %1299 = vmatpush1.msra.mxu0 0.0
  %1300 = vmatprep.subr.mxu0 0.0
  %1301 = vmatpush1.msra.mxu0 0.0
  %1302 = vmatprep.subr.mxu0 0.0
  %1303 = vmatpush1.msra.mxu0 0.0
  %1304 = vmatprep.subr.mxu0 0.0
  %1305 = vmatpush1.msra.mxu0 0.0
  %1306 = vmatprep.subr.mxu0 0.0
  %1307 = vmatpush1.msra.mxu0 0.0
  %1308 = vmatprep.subr.mxu0 0.0
  %1309 = vmatpush1.msra.mxu0 0.0
  %1310 = vmatprep.subr.mxu0 0.0
  %1311 = vmatpush1.msra.mxu0 0.0
  %1312 = vmatprep.subr.mxu0 0.0
  %1313 = vmatpush1.msra.mxu0 0.0
  %1314 = vmatprep.subr.mxu0 0.0
  %1315 = vmatpush1.msra.mxu0 0.0
  %1316 = vmatprep.subr.mxu0 0.0
  %1317 = vmatpush1.msra.mxu0 0.0
  %1318 = vmatprep.subr.mxu0 0.0
  %1319 = vmatpush1.msra.mxu0 0.0
  %1320 = vmatprep.subr.mxu0 0.0
  %1321 = vmatpush1.msra.mxu0 0.0
  %1322 = vmatprep.subr.mxu0 0.0
  %1323 = vmatpush1.msra.mxu0 0.0
  %1324 = vmatprep.subr.mxu0 0.0
  %1325 = vmatpush1.msra.mxu0 0.0
  %1326 = vmatprep.subr.mxu0 0.0
  %1327 = vmatpush1.msra.mxu0 0.0
  %1328 = vmatprep.subr.mxu0 0.0
  %1329 = vmatpush1.msra.mxu0 0.0
  %1330 = vmatprep.subr.mxu0 0.0
  %1331 = vmatpush1.msra.mxu0 0.0
  %1332 = vmatprep.subr.mxu0 0.0
  %1333 = vmatpush1.msra.mxu0 0.0
  %1334 = vmatprep.subr.mxu0 0.0
  %1335 = vmatpush1.msra.mxu0 0.0
  %1336 = vmatprep.subr.mxu0 0.0
  %1337 = vmatpush1.msra.mxu0 0.0
  %1338 = vmatprep.subr.mxu0 0.0
  %1339 = vmatpush1.msra.mxu0 0.0
  %1340 = vmatprep.subr.mxu0 0.0
  %1341 = vmatpush1.msra.mxu0 0.0
  %1342 = vmatprep.subr.mxu0 0.0
  %1343 = vmatpush1.msra.mxu0 0.0
  %1344 = vmatprep.subr.mxu0 0.0
  %1345 = vmatpush1.msra.mxu0 0.0
  %1346 = vmatprep.mubr.f32.mxu0 0.0
  %1347 = vmatmul.mubr.f32.gmra.mrb[0].mxu0 %v1280
  %v1348 = vpop.f32.mrb[0].mxu0
  %v1349 = vadd.f32 0.0, %v1348
  %v1350 = vpop.f32.mrb[0].mxu0
  %1351 = vdwg.mxu0
  %v1353 = vsel %vm497, %v1263, 0
  %1355 = vmatprep.subr.mxu0 0.0
  %1356 = vmatpush1.msra.mxu0 %v1264
  %1357 = vmatprep.subr.mxu0 0.0
  %1358 = vmatpush1.msra.mxu0 %v1265
  %1359 = vmatprep.subr.mxu0 0.0
  %1360 = vmatpush1.msra.mxu0 %v1266
  %1361 = vmatprep.subr.mxu0 0.0
  %1362 = vmatpush1.msra.mxu0 %v1267
  %1363 = vmatprep.subr.mxu0 0.0
  %1364 = vmatpush1.msra.mxu0 %v1268
  %1365 = vmatprep.subr.mxu0 0.0
  %1366 = vmatpush1.msra.mxu0 %v1269
  %1367 = vmatprep.subr.mxu0 0.0
  %1368 = vmatpush1.msra.mxu0 %v1270
  %1369 = vmatprep.subr.mxu0 0.0
  %1370 = vmatpush1.msra.mxu0 0.0
  %1371 = vmatprep.subr.mxu0 0.0
  %1372 = vmatpush1.msra.mxu0 0.0
  %1373 = vmatprep.subr.mxu0 0.0
  %1374 = vmatpush1.msra.mxu0 0.0
  %1375 = vmatprep.subr.mxu0 0.0
  %1376 = vmatpush1.msra.mxu0 0.0
  %1377 = vmatprep.subr.mxu0 0.0
  %1378 = vmatpush1.msra.mxu0 0.0
  %1379 = vmatprep.subr.mxu0 0.0
  %1380 = vmatpush1.msra.mxu0 0.0
  %1381 = vmatprep.subr.mxu0 0.0
  %1382 = vmatpush1.msra.mxu0 0.0
  %1383 = vmatprep.subr.mxu0 0.0
  %1384 = vmatpush1.msra.mxu0 0.0
  %1385 = vmatprep.subr.mxu0 0.0
  %1386 = vmatpush1.msra.mxu0 0.0
  %1387 = vmatprep.subr.mxu0 0.0
  %1388 = vmatpush1.msra.mxu0 0.0
  %1389 = vmatprep.subr.mxu0 0.0
  %1390 = vmatpush1.msra.mxu0 0.0
  %1391 = vmatprep.subr.mxu0 0.0
  %1392 = vmatpush1.msra.mxu0 0.0
  %1393 = vmatprep.subr.mxu0 0.0
  %1394 = vmatpush1.msra.mxu0 0.0
  %1395 = vmatprep.subr.mxu0 0.0
  %1396 = vmatpush1.msra.mxu0 0.0
  %1397 = vmatprep.subr.mxu0 0.0
  %1398 = vmatpush1.msra.mxu0 0.0
  %1399 = vmatprep.subr.mxu0 0.0
  %1400 = vmatpush1.msra.mxu0 0.0
  %1401 = vmatprep.subr.mxu0 0.0
  %1402 = vmatpush1.msra.mxu0 0.0
  %1403 = vmatprep.subr.mxu0 0.0
  %1404 = vmatpush1.msra.mxu0 0.0
  %1405 = vmatprep.subr.mxu0 0.0
  %1406 = vmatpush1.msra.mxu0 0.0
  %1407 = vmatprep.subr.mxu0 0.0
  %1408 = vmatpush1.msra.mxu0 0.0
  %1409 = vmatprep.subr.mxu0 0.0
  %1410 = vmatpush1.msra.mxu0 0.0
  %1411 = vmatprep.subr.mxu0 0.0
  %1412 = vmatpush1.msra.mxu0 0.0
  %1413 = vmatprep.subr.mxu0 0.0
  %1414 = vmatpush1.msra.mxu0 0.0
  %1415 = vmatprep.subr.mxu0 0.0
  %1416 = vmatpush1.msra.mxu0 0.0
  %1417 = vmatprep.subr.mxu0 0.0
  %1418 = vmatpush1.msra.mxu0 0.0
  %1419 = vmatprep.mubr.f32.mxu0 0.0
  %1420 = vmatmul.mubr.f32.gmra.mrb[0].mxu0 %v1353
  %v1421 = vpop.f32.mrb[0].mxu0
  %v1422 = vadd.f32 %v1349, %v1421
  %v1423 = vpop.f32.mrb[0].mxu0
  %1424 = vdwg.mxu0
  %v1425 = vld [vmem:[#allocation3 + $0x10] sm:$0x3f]
  %v1426 = vld [vmem:[%s673] sm:$0xff]
  %v1427 = vld [vmem:[%s673 + $0x8] sm:$0xff]
  %v1428 = vld [vmem:[%s673 + $0x10] sm:$0xff]
  %v1429 = vld [vmem:[%s673 + $0x18] sm:$0xff]
  %v1430 = vld [vmem:[%s673 + $0x20] sm:$0xff]
  %v1431 = vld [vmem:[%s673 + $0x28] sm:$0xff]
  %v1432 = vld [vmem:[%s673 + $0x30] sm:$0xff]
  %v1434 = vsel %vm497, %v1425, 0
  %1436 = vmatprep.subr.mxu0 0.0
  %1437 = vmatpush1.msra.mxu0 %v1426
  %1438 = vmatprep.subr.mxu0 0.0
  %1439 = vmatpush1.msra.mxu0 %v1427
  %1440 = vmatprep.subr.mxu0 0.0
  %1441 = vmatpush1.msra.mxu0 %v1428
  %1442 = vmatprep.subr.mxu0 0.0
  %1443 = vmatpush1.msra.mxu0 %v1429
  %1444 = vmatprep.subr.mxu0 0.0
  %1445 = vmatpush1.msra.mxu0 %v1430
  %1446 = vmatprep.subr.mxu0 0.0
  %1447 = vmatpush1.msra.mxu0 %v1431
  %1448 = vmatprep.subr.mxu0 0.0
  %1449 = vmatpush1.msra.mxu0 %v1432
  %1450 = vmatprep.subr.mxu0 0.0
  %1451 = vmatpush1.msra.mxu0 0.0
  %1452 = vmatprep.subr.mxu0 0.0
  %1453 = vmatpush1.msra.mxu0 0.0
  %1454 = vmatprep.subr.mxu0 0.0
  %1455 = vmatpush1.msra.mxu0 0.0
  %1456 = vmatprep.subr.mxu0 0.0
  %1457 = vmatpush1.msra.mxu0 0.0
  %1458 = vmatprep.subr.mxu0 0.0
  %1459 = vmatpush1.msra.mxu0 0.0
  %1460 = vmatprep.subr.mxu0 0.0
  %1461 = vmatpush1.msra.mxu0 0.0
  %1462 = vmatprep.subr.mxu0 0.0
  %1463 = vmatpush1.msra.mxu0 0.0
  %1464 = vmatprep.subr.mxu0 0.0
  %1465 = vmatpush1.msra.mxu0 0.0
  %1466 = vmatprep.subr.mxu0 0.0
  %1467 = vmatpush1.msra.mxu0 0.0
  %1468 = vmatprep.subr.mxu0 0.0
  %1469 = vmatpush1.msra.mxu0 0.0
  %1470 = vmatprep.subr.mxu0 0.0
  %1471 = vmatpush1.msra.mxu0 0.0
  %1472 = vmatprep.subr.mxu0 0.0
  %1473 = vmatpush1.msra.mxu0 0.0
  %1474 = vmatprep.subr.mxu0 0.0
  %1475 = vmatpush1.msra.mxu0 0.0
  %1476 = vmatprep.subr.mxu0 0.0
  %1477 = vmatpush1.msra.mxu0 0.0
  %1478 = vmatprep.subr.mxu0 0.0
  %1479 = vmatpush1.msra.mxu0 0.0
  %1480 = vmatprep.subr.mxu0 0.0
  %1481 = vmatpush1.msra.mxu0 0.0
  %1482 = vmatprep.subr.mxu0 0.0
  %1483 = vmatpush1.msra.mxu0 0.0
  %1484 = vmatprep.subr.mxu0 0.0
  %1485 = vmatpush1.msra.mxu0 0.0
  %1486 = vmatprep.subr.mxu0 0.0
  %1487 = vmatpush1.msra.mxu0 0.0
  %1488 = vmatprep.subr.mxu0 0.0
  %1489 = vmatpush1.msra.mxu0 0.0
  %1490 = vmatprep.subr.mxu0 0.0
  %1491 = vmatpush1.msra.mxu0 0.0
  %1492 = vmatprep.subr.mxu0 0.0
  %1493 = vmatpush1.msra.mxu0 0.0
  %1494 = vmatprep.subr.mxu0 0.0
  %1495 = vmatpush1.msra.mxu0 0.0
  %1496 = vmatprep.subr.mxu0 0.0
  %1497 = vmatpush1.msra.mxu0 0.0
  %1498 = vmatprep.subr.mxu0 0.0
  %1499 = vmatpush1.msra.mxu0 0.0
  %1500 = vmatprep.mubr.f32.mxu0 0.0
  %1501 = vmatmul.mubr.f32.gmra.mrb[0].mxu0 %v1434
  %v1502 = vpop.f32.mrb[0].mxu0
  %v1503 = vadd.f32 0.0, %v1502
  %v1504 = vpop.f32.mrb[0].mxu0
  %1505 = vdwg.mxu0
  %v1506 = vadd.f32 %v1422, %v1503
  %v1507 = vld [vmem:[#allocation3 + $0x11] sm:$0x3f]
  %v1508 = vld [vmem:[%s756] sm:$0xff]
  %v1509 = vld [vmem:[%s756 + $0x8] sm:$0xff]
  %v1510 = vld [vmem:[%s756 + $0x10] sm:$0xff]
  %v1511 = vld [vmem:[%s756 + $0x18] sm:$0xff]
  %v1512 = vld [vmem:[%s756 + $0x20] sm:$0xff]
  %v1513 = vld [vmem:[%s756 + $0x28] sm:$0xff]
  %v1514 = vld [vmem:[%s756 + $0x30] sm:$0xff]
  %v1516 = vsel %vm497, %v1507, 0
  %1518 = vmatprep.subr.mxu0 0.0
  %1519 = vmatpush1.msra.mxu0 %v1508
  %1520 = vmatprep.subr.mxu0 0.0
  %1521 = vmatpush1.msra.mxu0 %v1509
  %1522 = vmatprep.subr.mxu0 0.0
  %1523 = vmatpush1.msra.mxu0 %v1510
  %1524 = vmatprep.subr.mxu0 0.0
  %1525 = vmatpush1.msra.mxu0 %v1511
  %1526 = vmatprep.subr.mxu0 0.0
  %1527 = vmatpush1.msra.mxu0 %v1512
  %1528 = vmatprep.subr.mxu0 0.0
  %1529 = vmatpush1.msra.mxu0 %v1513
  %1530 = vmatprep.subr.mxu0 0.0
  %1531 = vmatpush1.msra.mxu0 %v1514
  %1532 = vmatprep.subr.mxu0 0.0
  %1533 = vmatpush1.msra.mxu0 0.0
  %1534 = vmatprep.subr.mxu0 0.0
  %1535 = vmatpush1.msra.mxu0 0.0
  %1536 = vmatprep.subr.mxu0 0.0
  %1537 = vmatpush1.msra.mxu0 0.0
  %1538 = vmatprep.subr.mxu0 0.0
  %1539 = vmatpush1.msra.mxu0 0.0
  %1540 = vmatprep.subr.mxu0 0.0
  %1541 = vmatpush1.msra.mxu0 0.0
  %1542 = vmatprep.subr.mxu0 0.0
  %1543 = vmatpush1.msra.mxu0 0.0
  %1544 = vmatprep.subr.mxu0 0.0
  %1545 = vmatpush1.msra.mxu0 0.0
  %1546 = vmatprep.subr.mxu0 0.0
  %1547 = vmatpush1.msra.mxu0 0.0
  %1548 = vmatprep.subr.mxu0 0.0
  %1549 = vmatpush1.msra.mxu0 0.0
  %1550 = vmatprep.subr.mxu0 0.0
  %1551 = vmatpush1.msra.mxu0 0.0
  %1552 = vmatprep.subr.mxu0 0.0
  %1553 = vmatpush1.msra.mxu0 0.0
  %1554 = vmatprep.subr.mxu0 0.0
  %1555 = vmatpush1.msra.mxu0 0.0
  %1556 = vmatprep.subr.mxu0 0.0
  %1557 = vmatpush1.msra.mxu0 0.0
  %1558 = vmatprep.subr.mxu0 0.0
  %1559 = vmatpush1.msra.mxu0 0.0
  %1560 = vmatprep.subr.mxu0 0.0
  %1561 = vmatpush1.msra.mxu0 0.0
  %1562 = vmatprep.subr.mxu0 0.0
  %1563 = vmatpush1.msra.mxu0 0.0
  %1564 = vmatprep.subr.mxu0 0.0
  %1565 = vmatpush1.msra.mxu0 0.0
  %1566 = vmatprep.subr.mxu0 0.0
  %1567 = vmatpush1.msra.mxu0 0.0
  %1568 = vmatprep.subr.mxu0 0.0
  %1569 = vmatpush1.msra.mxu0 0.0
  %1570 = vmatprep.subr.mxu0 0.0
  %1571 = vmatpush1.msra.mxu0 0.0
  %1572 = vmatprep.subr.mxu0 0.0
  %1573 = vmatpush1.msra.mxu0 0.0
  %1574 = vmatprep.subr.mxu0 0.0
  %1575 = vmatpush1.msra.mxu0 0.0
  %1576 = vmatprep.subr.mxu0 0.0
  %1577 = vmatpush1.msra.mxu0 0.0
  %1578 = vmatprep.subr.mxu0 0.0
  %1579 = vmatpush1.msra.mxu0 0.0
  %1580 = vmatprep.subr.mxu0 0.0
  %1581 = vmatpush1.msra.mxu0 0.0
  %1582 = vmatprep.mubr.f32.mxu0 0.0
  %1583 = vmatmul.mubr.f32.gmra.mrb[0].mxu0 %v1516
  %v1584 = vpop.f32.mrb[0].mxu0
  %v1585 = vadd.f32 0.0, %v1584
  %v1586 = vpop.f32.mrb[0].mxu0
  %1587 = vdwg.mxu0
  %v1588 = vadd.f32 %v1506, %v1585
  %v1589 = vld [vmem:[#allocation3 + $0x12] sm:$0x3f]
  %v1590 = vld [vmem:[%s839] sm:$0xff]
  %v1591 = vld [vmem:[%s839 + $0x8] sm:$0xff]
  %v1592 = vld [vmem:[%s839 + $0x10] sm:$0xff]
  %v1593 = vld [vmem:[%s839 + $0x18] sm:$0xff]
  %v1594 = vld [vmem:[%s839 + $0x20] sm:$0xff]
  %v1595 = vld [vmem:[%s839 + $0x28] sm:$0xff]
  %v1596 = vld [vmem:[%s839 + $0x30] sm:$0xff]
  %v1598 = vsel %vm497, %v1589, 0
  %1600 = vmatprep.subr.mxu0 0.0
  %1601 = vmatpush1.msra.mxu0 %v1590
  %1602 = vmatprep.subr.mxu0 0.0
  %1603 = vmatpush1.msra.mxu0 %v1591
  %1604 = vmatprep.subr.mxu0 0.0
  %1605 = vmatpush1.msra.mxu0 %v1592
  %1606 = vmatprep.subr.mxu0 0.0
  %1607 = vmatpush1.msra.mxu0 %v1593
  %1608 = vmatprep.subr.mxu0 0.0
  %1609 = vmatpush1.msra.mxu0 %v1594
  %1610 = vmatprep.subr.mxu0 0.0
  %1611 = vmatpush1.msra.mxu0 %v1595
  %1612 = vmatprep.subr.mxu0 0.0
  %1613 = vmatpush1.msra.mxu0 %v1596
  %1614 = vmatprep.subr.mxu0 0.0
  %1615 = vmatpush1.msra.mxu0 0.0
  %1616 = vmatprep.subr.mxu0 0.0
  %1617 = vmatpush1.msra.mxu0 0.0
  %1618 = vmatprep.subr.mxu0 0.0
  %1619 = vmatpush1.msra.mxu0 0.0
  %1620 = vmatprep.subr.mxu0 0.0
  %1621 = vmatpush1.msra.mxu0 0.0
  %1622 = vmatprep.subr.mxu0 0.0
  %1623 = vmatpush1.msra.mxu0 0.0
  %1624 = vmatprep.subr.mxu0 0.0
  %1625 = vmatpush1.msra.mxu0 0.0
  %1626 = vmatprep.subr.mxu0 0.0
  %1627 = vmatpush1.msra.mxu0 0.0
  %1628 = vmatprep.subr.mxu0 0.0
  %1629 = vmatpush1.msra.mxu0 0.0
  %1630 = vmatprep.subr.mxu0 0.0
  %1631 = vmatpush1.msra.mxu0 0.0
  %1632 = vmatprep.subr.mxu0 0.0
  %1633 = vmatpush1.msra.mxu0 0.0
  %1634 = vmatprep.subr.mxu0 0.0
  %1635 = vmatpush1.msra.mxu0 0.0
  %1636 = vmatprep.subr.mxu0 0.0
  %1637 = vmatpush1.msra.mxu0 0.0
  %1638 = vmatprep.subr.mxu0 0.0
  %1639 = vmatpush1.msra.mxu0 0.0
  %1640 = vmatprep.subr.mxu0 0.0
  %1641 = vmatpush1.msra.mxu0 0.0
  %1642 = vmatprep.subr.mxu0 0.0
  %1643 = vmatpush1.msra.mxu0 0.0
  %1644 = vmatprep.subr.mxu0 0.0
  %1645 = vmatpush1.msra.mxu0 0.0
  %1646 = vmatprep.subr.mxu0 0.0
  %1647 = vmatpush1.msra.mxu0 0.0
  %1648 = vmatprep.subr.mxu0 0.0
  %1649 = vmatpush1.msra.mxu0 0.0
  %1650 = vmatprep.subr.mxu0 0.0
  %1651 = vmatpush1.msra.mxu0 0.0
  %1652 = vmatprep.subr.mxu0 0.0
  %1653 = vmatpush1.msra.mxu0 0.0
  %1654 = vmatprep.subr.mxu0 0.0
  %1655 = vmatpush1.msra.mxu0 0.0
  %1656 = vmatprep.subr.mxu0 0.0
  %1657 = vmatpush1.msra.mxu0 0.0
  %1658 = vmatprep.subr.mxu0 0.0
  %1659 = vmatpush1.msra.mxu0 0.0
  %1660 = vmatprep.subr.mxu0 0.0
  %1661 = vmatpush1.msra.mxu0 0.0
  %1662 = vmatprep.subr.mxu0 0.0
  %1663 = vmatpush1.msra.mxu0 0.0
  %1664 = vmatprep.mubr.f32.mxu0 0.0
  %1665 = vmatmul.mubr.f32.gmra.mrb[0].mxu0 %v1598
  %v1666 = vpop.f32.mrb[0].mxu0
  %v1667 = vadd.f32 0.0, %v1666
  %v1668 = vpop.f32.mrb[0].mxu0
  %1669 = vdwg.mxu0
  %v1670 = vadd.f32 %v1588, %v1667
  %v1671 = vld [vmem:[#allocation3 + $0x13] sm:$0x3f]
  %v1672 = vld [vmem:[%s922] sm:$0xff]
  %v1673 = vld [vmem:[%s922 + $0x8] sm:$0xff]
  %v1674 = vld [vmem:[%s922 + $0x10] sm:$0xff]
  %v1675 = vld [vmem:[%s922 + $0x18] sm:$0xff]
  %v1676 = vld [vmem:[%s922 + $0x20] sm:$0xff]
  %v1677 = vld [vmem:[%s922 + $0x28] sm:$0xff]
  %v1678 = vld [vmem:[%s922 + $0x30] sm:$0xff]
  %v1680 = vsel %vm497, %v1671, 0
  %1682 = vmatprep.subr.mxu0 0.0
  %1683 = vmatpush1.msra.mxu0 %v1672
  %1684 = vmatprep.subr.mxu0 0.0
  %1685 = vmatpush1.msra.mxu0 %v1673
  %1686 = vmatprep.subr.mxu0 0.0
  %1687 = vmatpush1.msra.mxu0 %v1674
  %1688 = vmatprep.subr.mxu0 0.0
  %1689 = vmatpush1.msra.mxu0 %v1675
  %1690 = vmatprep.subr.mxu0 0.0
  %1691 = vmatpush1.msra.mxu0 %v1676
  %1692 = vmatprep.subr.mxu0 0.0
  %1693 = vmatpush1.msra.mxu0 %v1677
  %1694 = vmatprep.subr.mxu0 0.0
  %1695 = vmatpush1.msra.mxu0 %v1678
  %1696 = vmatprep.subr.mxu0 0.0
  %1697 = vmatpush1.msra.mxu0 0.0
  %1698 = vmatprep.subr.mxu0 0.0
  %1699 = vmatpush1.msra.mxu0 0.0
  %1700 = vmatprep.subr.mxu0 0.0
  %1701 = vmatpush1.msra.mxu0 0.0
  %1702 = vmatprep.subr.mxu0 0.0
  %1703 = vmatpush1.msra.mxu0 0.0
  %1704 = vmatprep.subr.mxu0 0.0
  %1705 = vmatpush1.msra.mxu0 0.0
  %1706 = vmatprep.subr.mxu0 0.0
  %1707 = vmatpush1.msra.mxu0 0.0
  %1708 = vmatprep.subr.mxu0 0.0
  %1709 = vmatpush1.msra.mxu0 0.0
  %1710 = vmatprep.subr.mxu0 0.0
  %1711 = vmatpush1.msra.mxu0 0.0
  %1712 = vmatprep.subr.mxu0 0.0
  %1713 = vmatpush1.msra.mxu0 0.0
  %1714 = vmatprep.subr.mxu0 0.0
  %1715 = vmatpush1.msra.mxu0 0.0
  %1716 = vmatprep.subr.mxu0 0.0
  %1717 = vmatpush1.msra.mxu0 0.0
  %1718 = vmatprep.subr.mxu0 0.0
  %1719 = vmatpush1.msra.mxu0 0.0
  %1720 = vmatprep.subr.mxu0 0.0
  %1721 = vmatpush1.msra.mxu0 0.0
  %1722 = vmatprep.subr.mxu0 0.0
  %1723 = vmatpush1.msra.mxu0 0.0
  %1724 = vmatprep.subr.mxu0 0.0
  %1725 = vmatpush1.msra.mxu0 0.0
  %1726 = vmatprep.subr.mxu0 0.0
  %1727 = vmatpush1.msra.mxu0 0.0
  %1728 = vmatprep.subr.mxu0 0.0
  %1729 = vmatpush1.msra.mxu0 0.0
  %1730 = vmatprep.subr.mxu0 0.0
  %1731 = vmatpush1.msra.mxu0 0.0
  %1732 = vmatprep.subr.mxu0 0.0
  %1733 = vmatpush1.msra.mxu0 0.0
  %1734 = vmatprep.subr.mxu0 0.0
  %1735 = vmatpush1.msra.mxu0 0.0
  %1736 = vmatprep.subr.mxu0 0.0
  %1737 = vmatpush1.msra.mxu0 0.0
  %1738 = vmatprep.subr.mxu0 0.0
  %1739 = vmatpush1.msra.mxu0 0.0
  %1740 = vmatprep.subr.mxu0 0.0
  %1741 = vmatpush1.msra.mxu0 0.0
  %1742 = vmatprep.subr.mxu0 0.0
  %1743 = vmatpush1.msra.mxu0 0.0
  %1744 = vmatprep.subr.mxu0 0.0
  %1745 = vmatpush1.msra.mxu0 0.0
  %1746 = vmatprep.mubr.f32.mxu0 0.0
  %1747 = vmatmul.mubr.f32.gmra.mrb[0].mxu0 %v1680
  %v1748 = vpop.f32.mrb[0].mxu0
  %v1749 = vadd.f32 0.0, %v1748
  %v1750 = vpop.f32.mrb[0].mxu0
  %1751 = vdwg.mxu0
  %v1752 = vadd.f32 %v1670, %v1749
  %v1753 = vld [vmem:[#allocation3 + $0x14] sm:$0x3f]
  %v1754 = vld [vmem:[%s1005] sm:$0xff]
  %v1755 = vld [vmem:[%s1005 + $0x8] sm:$0xff]
  %v1756 = vld [vmem:[%s1005 + $0x10] sm:$0xff]
  %v1757 = vld [vmem:[%s1005 + $0x18] sm:$0xff]
  %v1758 = vld [vmem:[%s1005 + $0x20] sm:$0xff]
  %v1759 = vld [vmem:[%s1005 + $0x28] sm:$0xff]
  %v1760 = vld [vmem:[%s1005 + $0x30] sm:$0xff]
  %v1762 = vsel %vm497, %v1753, 0
  %1764 = vmatprep.subr.mxu0 0.0
  %1765 = vmatpush1.msra.mxu0 %v1754
  %1766 = vmatprep.subr.mxu0 0.0
  %1767 = vmatpush1.msra.mxu0 %v1755
  %1768 = vmatprep.subr.mxu0 0.0
  %1769 = vmatpush1.msra.mxu0 %v1756
  %1770 = vmatprep.subr.mxu0 0.0
  %1771 = vmatpush1.msra.mxu0 %v1757
  %1772 = vmatprep.subr.mxu0 0.0
  %1773 = vmatpush1.msra.mxu0 %v1758
  %1774 = vmatprep.subr.mxu0 0.0
  %1775 = vmatpush1.msra.mxu0 %v1759
  %1776 = vmatprep.subr.mxu0 0.0
  %1777 = vmatpush1.msra.mxu0 %v1760
  %1778 = vmatprep.subr.mxu0 0.0
  %1779 = vmatpush1.msra.mxu0 0.0
  %1780 = vmatprep.subr.mxu0 0.0
  %1781 = vmatpush1.msra.mxu0 0.0
  %1782 = vmatprep.subr.mxu0 0.0
  %1783 = vmatpush1.msra.mxu0 0.0
  %1784 = vmatprep.subr.mxu0 0.0
  %1785 = vmatpush1.msra.mxu0 0.0
  %1786 = vmatprep.subr.mxu0 0.0
  %1787 = vmatpush1.msra.mxu0 0.0
  %1788 = vmatprep.subr.mxu0 0.0
  %1789 = vmatpush1.msra.mxu0 0.0
  %1790 = vmatprep.subr.mxu0 0.0
  %1791 = vmatpush1.msra.mxu0 0.0
  %1792 = vmatprep.subr.mxu0 0.0
  %1793 = vmatpush1.msra.mxu0 0.0
  %1794 = vmatprep.subr.mxu0 0.0
  %1795 = vmatpush1.msra.mxu0 0.0
  %1796 = vmatprep.subr.mxu0 0.0
  %1797 = vmatpush1.msra.mxu0 0.0
  %1798 = vmatprep.subr.mxu0 0.0
  %1799 = vmatpush1.msra.mxu0 0.0
  %1800 = vmatprep.subr.mxu0 0.0
  %1801 = vmatpush1.msra.mxu0 0.0
  %1802 = vmatprep.subr.mxu0 0.0
  %1803 = vmatpush1.msra.mxu0 0.0
  %1804 = vmatprep.subr.mxu0 0.0
  %1805 = vmatpush1.msra.mxu0 0.0
  %1806 = vmatprep.subr.mxu0 0.0
  %1807 = vmatpush1.msra.mxu0 0.0
  %1808 = vmatprep.subr.mxu0 0.0
  %1809 = vmatpush1.msra.mxu0 0.0
  %1810 = vmatprep.subr.mxu0 0.0
  %1811 = vmatpush1.msra.mxu0 0.0
  %1812 = vmatprep.subr.mxu0 0.0
  %1813 = vmatpush1.msra.mxu0 0.0
  %1814 = vmatprep.subr.mxu0 0.0
  %1815 = vmatpush1.msra.mxu0 0.0
  %1816 = vmatprep.subr.mxu0 0.0
  %1817 = vmatpush1.msra.mxu0 0.0
  %1818 = vmatprep.subr.mxu0 0.0
  %1819 = vmatpush1.msra.mxu0 0.0
  %1820 = vmatprep.subr.mxu0 0.0
  %1821 = vmatpush1.msra.mxu0 0.0
  %1822 = vmatprep.subr.mxu0 0.0
  %1823 = vmatpush1.msra.mxu0 0.0
  %1824 = vmatprep.subr.mxu0 0.0
  %1825 = vmatpush1.msra.mxu0 0.0
  %1826 = vmatprep.subr.mxu0 0.0
  %1827 = vmatpush1.msra.mxu0 0.0
  %1828 = vmatprep.mubr.f32.mxu0 0.0
  %1829 = vmatmul.mubr.f32.gmra.mrb[0].mxu0 %v1762
  %v1830 = vpop.f32.mrb[0].mxu0
  %v1831 = vadd.f32 0.0, %v1830
  %v1832 = vpop.f32.mrb[0].mxu0
  %1833 = vdwg.mxu0
  %v1834 = vadd.f32 %v1752, %v1831
  %v1835 = vld [vmem:[#allocation3 + $0x15] sm:$0x3f]
  %v1836 = vld [vmem:[%s1088] sm:$0xff]
  %v1837 = vld [vmem:[%s1088 + $0x8] sm:$0xff]
  %v1838 = vld [vmem:[%s1088 + $0x10] sm:$0xff]
  %v1839 = vld [vmem:[%s1088 + $0x18] sm:$0xff]
  %v1840 = vld [vmem:[%s1088 + $0x20] sm:$0xff]
  %v1841 = vld [vmem:[%s1088 + $0x28] sm:$0xff]
  %v1842 = vld [vmem:[%s1088 + $0x30] sm:$0xff]
  %v1844 = vsel %vm497, %v1835, 0
  %1846 = vmatprep.subr.mxu0 0.0
  %1847 = vmatpush1.msra.mxu0 %v1836
  %1848 = vmatprep.subr.mxu0 0.0
  %1849 = vmatpush1.msra.mxu0 %v1837
  %1850 = vmatprep.subr.mxu0 0.0
  %1851 = vmatpush1.msra.mxu0 %v1838
  %1852 = vmatprep.subr.mxu0 0.0
  %1853 = vmatpush1.msra.mxu0 %v1839
  %1854 = vmatprep.subr.mxu0 0.0
  %1855 = vmatpush1.msra.mxu0 %v1840
  %1856 = vmatprep.subr.mxu0 0.0
  %1857 = vmatpush1.msra.mxu0 %v1841
  %1858 = vmatprep.subr.mxu0 0.0
  %1859 = vmatpush1.msra.mxu0 %v1842
  %1860 = vmatprep.subr.mxu0 0.0
  %1861 = vmatpush1.msra.mxu0 0.0
  %1862 = vmatprep.subr.mxu0 0.0
  %1863 = vmatpush1.msra.mxu0 0.0
  %1864 = vmatprep.subr.mxu0 0.0
  %1865 = vmatpush1.msra.mxu0 0.0
  %1866 = vmatprep.subr.mxu0 0.0
  %1867 = vmatpush1.msra.mxu0 0.0
  %1868 = vmatprep.subr.mxu0 0.0
  %1869 = vmatpush1.msra.mxu0 0.0
  %1870 = vmatprep.subr.mxu0 0.0
  %1871 = vmatpush1.msra.mxu0 0.0
  %1872 = vmatprep.subr.mxu0 0.0
  %1873 = vmatpush1.msra.mxu0 0.0
  %1874 = vmatprep.subr.mxu0 0.0
  %1875 = vmatpush1.msra.mxu0 0.0
  %1876 = vmatprep.subr.mxu0 0.0
  %1877 = vmatpush1.msra.mxu0 0.0
  %1878 = vmatprep.subr.mxu0 0.0
  %1879 = vmatpush1.msra.mxu0 0.0
  %1880 = vmatprep.subr.mxu0 0.0
  %1881 = vmatpush1.msra.mxu0 0.0
  %1882 = vmatprep.subr.mxu0 0.0
  %1883 = vmatpush1.msra.mxu0 0.0
  %1884 = vmatprep.subr.mxu0 0.0
  %1885 = vmatpush1.msra.mxu0 0.0
  %1886 = vmatprep.subr.mxu0 0.0
  %1887 = vmatpush1.msra.mxu0 0.0
  %1888 = vmatprep.subr.mxu0 0.0
  %1889 = vmatpush1.msra.mxu0 0.0
  %1890 = vmatprep.subr.mxu0 0.0
  %1891 = vmatpush1.msra.mxu0 0.0
  %1892 = vmatprep.subr.mxu0 0.0
  %1893 = vmatpush1.msra.mxu0 0.0
  %1894 = vmatprep.subr.mxu0 0.0
  %1895 = vmatpush1.msra.mxu0 0.0
  %1896 = vmatprep.subr.mxu0 0.0
  %1897 = vmatpush1.msra.mxu0 0.0
  %1898 = vmatprep.subr.mxu0 0.0
  %1899 = vmatpush1.msra.mxu0 0.0
  %1900 = vmatprep.subr.mxu0 0.0
  %1901 = vmatpush1.msra.mxu0 0.0
  %1902 = vmatprep.subr.mxu0 0.0
  %1903 = vmatpush1.msra.mxu0 0.0
  %1904 = vmatprep.subr.mxu0 0.0
  %1905 = vmatpush1.msra.mxu0 0.0
  %1906 = vmatprep.subr.mxu0 0.0
  %1907 = vmatpush1.msra.mxu0 0.0
  %1908 = vmatprep.subr.mxu0 0.0
  %1909 = vmatpush1.msra.mxu0 0.0
  %1910 = vmatprep.mubr.f32.mxu0 0.0
  %1911 = vmatmul.mubr.f32.gmra.mrb[0].mxu0 %v1844
  %v1912 = vpop.f32.mrb[0].mxu0
  %v1913 = vadd.f32 0.0, %v1912
  %v1914 = vpop.f32.mrb[0].mxu0
  %1915 = vdwg.mxu0
  %v1916 = vadd.f32 %v1834, %v1913
  %v1917 = vld [vmem:[#allocation3 + $0x16] sm:$0x3f]
  %v1918 = vld [vmem:[%s1171] sm:$0xff]
  %v1919 = vld [vmem:[%s1171 + $0x8] sm:$0xff]
  %v1920 = vld [vmem:[%s1171 + $0x10] sm:$0xff]
  %v1921 = vld [vmem:[%s1171 + $0x18] sm:$0xff]
  %v1922 = vld [vmem:[%s1171 + $0x20] sm:$0xff]
  %v1923 = vld [vmem:[%s1171 + $0x28] sm:$0xff]
  %v1924 = vld [vmem:[%s1171 + $0x30] sm:$0xff]
  %v1926 = vsel %vm497, %v1917, 0
  %1928 = vmatprep.subr.mxu0 0.0
  %1929 = vmatpush1.msra.mxu0 %v1918
  %1930 = vmatprep.subr.mxu0 0.0
  %1931 = vmatpush1.msra.mxu0 %v1919
  %1932 = vmatprep.subr.mxu0 0.0
  %1933 = vmatpush1.msra.mxu0 %v1920
  %1934 = vmatprep.subr.mxu0 0.0
  %1935 = vmatpush1.msra.mxu0 %v1921
  %1936 = vmatprep.subr.mxu0 0.0
  %1937 = vmatpush1.msra.mxu0 %v1922
  %1938 = vmatprep.subr.mxu0 0.0
  %1939 = vmatpush1.msra.mxu0 %v1923
  %1940 = vmatprep.subr.mxu0 0.0
  %1941 = vmatpush1.msra.mxu0 %v1924
  %1942 = vmatprep.subr.mxu0 0.0
  %1943 = vmatpush1.msra.mxu0 0.0
  %1944 = vmatprep.subr.mxu0 0.0
  %1945 = vmatpush1.msra.mxu0 0.0
  %1946 = vmatprep.subr.mxu0 0.0
  %1947 = vmatpush1.msra.mxu0 0.0
  %1948 = vmatprep.subr.mxu0 0.0
  %1949 = vmatpush1.msra.mxu0 0.0
  %1950 = vmatprep.subr.mxu0 0.0
  %1951 = vmatpush1.msra.mxu0 0.0
  %1952 = vmatprep.subr.mxu0 0.0
  %1953 = vmatpush1.msra.mxu0 0.0
  %1954 = vmatprep.subr.mxu0 0.0
  %1955 = vmatpush1.msra.mxu0 0.0
  %1956 = vmatprep.subr.mxu0 0.0
  %1957 = vmatpush1.msra.mxu0 0.0
  %1958 = vmatprep.subr.mxu0 0.0
  %1959 = vmatpush1.msra.mxu0 0.0
  %1960 = vmatprep.subr.mxu0 0.0
  %1961 = vmatpush1.msra.mxu0 0.0
  %1962 = vmatprep.subr.mxu0 0.0
  %1963 = vmatpush1.msra.mxu0 0.0
  %1964 = vmatprep.subr.mxu0 0.0
  %1965 = vmatpush1.msra.mxu0 0.0
  %1966 = vmatprep.subr.mxu0 0.0
  %1967 = vmatpush1.msra.mxu0 0.0
  %1968 = vmatprep.subr.mxu0 0.0
  %1969 = vmatpush1.msra.mxu0 0.0
  %1970 = vmatprep.subr.mxu0 0.0
  %1971 = vmatpush1.msra.mxu0 0.0
  %1972 = vmatprep.subr.mxu0 0.0
  %1973 = vmatpush1.msra.mxu0 0.0
  %1974 = vmatprep.subr.mxu0 0.0
  %1975 = vmatpush1.msra.mxu0 0.0
  %1976 = vmatprep.subr.mxu0 0.0
  %1977 = vmatpush1.msra.mxu0 0.0
  %1978 = vmatprep.subr.mxu0 0.0
  %1979 = vmatpush1.msra.mxu0 0.0
  %1980 = vmatprep.subr.mxu0 0.0
  %1981 = vmatpush1.msra.mxu0 0.0
  %1982 = vmatprep.subr.mxu0 0.0
  %1983 = vmatpush1.msra.mxu0 0.0
  %1984 = vmatprep.subr.mxu0 0.0
  %1985 = vmatpush1.msra.mxu0 0.0
  %1986 = vmatprep.subr.mxu0 0.0
  %1987 = vmatpush1.msra.mxu0 0.0
  %1988 = vmatprep.subr.mxu0 0.0
  %1989 = vmatpush1.msra.mxu0 0.0
  %1990 = vmatprep.subr.mxu0 0.0
  %1991 = vmatpush1.msra.mxu0 0.0
  %1992 = vmatprep.mubr.f32.mxu0 0.0
  %1993 = vmatmul.mubr.f32.gmra.mrb[0].mxu0 %v1926
  %v1994 = vpop.f32.mrb[0].mxu0
  %v1995 = vadd.f32 0.0, %v1994
  %v1996 = vpop.f32.mrb[0].mxu0
  %1997 = vdwg.mxu0
  %v1998 = vadd.f32 %v1916, %v1995
  %1999 = vst.msk [vmem:[#allocation4 + $0x6] sm:$0x3f] %vm1253, %v1998
  %v2000 = vld [vmem:[#allocation4] sm:$0xff]
  %v2001 = vld [vmem:[#allocation4 + $0x8] sm:$0xf]
  %vm2002 = vcmask 195584
  %v2003 = vsel %vm2002, %v2000, 0.0
  %vm2004 = vcmask 191488
  %v2005 = vsel %vm2004, %v2001, 0.0
  %v2006 = vadd.f32 %v2003, %v2005
  %v2007 = vrot.slane %v2006, 4
  %v2008 = vadd.f32 %v2006, %v2007
  %v2009 = vrot.slane %v2008, 2
  %v2010 = vadd.f32 %v2008, %v2009
  %v2011 = vrot.slane %v2010, 1
  %v2012 = vadd.f32 %v2010, %v2011
  %2014 = vrot.lane.b32.xlu0 %v2012, 124
  %v2015 = vpop.permute.xlu0 %2014
  %v2017 = vadd.f32 %v2012, %v2015
  %2018 = vrot.lane.b32.xlu0 %v2012, 120
  %v2019 = vpop.permute.xlu0 %2018
  %v2021 = vadd.f32 %v2017, %v2019
  %2022 = vrot.lane.b32.xlu0 %v2012, 116
  %v2023 = vpop.permute.xlu0 %2022
  %v2025 = vadd.f32 %v2021, %v2023
  %2026 = vrot.lane.b32.xlu0 %v2012, 112
  %v2027 = vpop.permute.xlu0 %2026
  %v2029 = vadd.f32 %v2025, %v2027
  %2030 = vrot.lane.b32.xlu0 %v2012, 108
  %v2031 = vpop.permute.xlu0 %2030
  %v2033 = vadd.f32 %v2029, %v2031
  %v2034 = vmul.f32 %v2033, 0.013888889
  %2036 = vrot.lane.b32.xlu0 %v2034, 4
  %v2037 = vpop.permute.xlu0 %2036
  %2039 = vrot.lane.b32.xlu0 %v2034, 8
  %v2040 = vpop.permute.xlu0 %2039
  %2042 = vrot.lane.b32.xlu0 %v2034, 12
  %v2043 = vpop.permute.xlu0 %2042
  %2045 = vrot.lane.b32.xlu0 %v2034, 16
  %v2046 = vpop.permute.xlu0 %2045
  %2048 = vrot.lane.b32.xlu0 %v2034, 20
  %v2049 = vpop.permute.xlu0 %2048
  %v2051 = vsel %vm68, %v2034, %v2037
  %vm2052 = vcmask 64512
  %v2053 = vsel %vm2052, %v2051, %v2040
  %vm2054 = vcmask 97280
  %v2055 = vsel %vm2054, %v2053, %v2043
  %vm2056 = vcmask 130048
  %v2057 = vsel %vm2056, %v2055, %v2046
  %vm2058 = vcmask 162816
  %v2059 = vsel %vm2058, %v2057, %v2049
  %v2060 = vlaneseq
  %v2061 = vshrl.u32 %v2060, 7
  %v2062 = vsub.s32 0, %v2061
  %v2063 = vrot.slane %v2059, %v2062
  %v2064 = vsub.f32 %v2000, %v2063
  %v2065 = vsub.f32 %v2001, %v2063
  %v2066 = vmul.f32 %v2064, %v2064
  %v2067 = vmul.f32 %v2065, %v2065
  %v2068 = vsel %vm2002, %v2066, 0.0
  %v2069 = vsel %vm2004, %v2067, 0.0
  %v2070 = vadd.f32 %v2068, %v2069
  %v2071 = vrot.slane %v2070, 4
  %v2072 = vadd.f32 %v2070, %v2071
  %v2073 = vrot.slane %v2072, 2
  %v2074 = vadd.f32 %v2072, %v2073
  %v2075 = vrot.slane %v2074, 1
  %v2076 = vadd.f32 %v2074, %v2075
  %2078 = vrot.lane.b32.xlu0 %v2076, 124
  %v2079 = vpop.permute.xlu0 %2078
  %v2081 = vadd.f32 %v2076, %v2079
  %2082 = vrot.lane.b32.xlu0 %v2076, 120
  %v2083 = vpop.permute.xlu0 %2082
  %v2085 = vadd.f32 %v2081, %v2083
  %2086 = vrot.lane.b32.xlu0 %v2076, 116
  %v2087 = vpop.permute.xlu0 %2086
  %v2089 = vadd.f32 %v2085, %v2087
  %2090 = vrot.lane.b32.xlu0 %v2076, 112
  %v2091 = vpop.permute.xlu0 %2090
  %v2093 = vadd.f32 %v2089, %v2091
  %2094 = vrot.lane.b32.xlu0 %v2076, 108
  %v2095 = vpop.permute.xlu0 %2094
  %v2097 = vadd.f32 %v2093, %v2095
  %v2098 = vmul.f32 %v2097, 0.013888889
  %v2099 = vadd.f32 %v2098, 1e-05
  %v2100 = vrsqrt.pop %v2099
  %v2101 = vmul.f32 %v22, %v2100
  %v2103 = vlaneseq
  %v2104 = vshrl.u32 %v2103, 7
  %v2105 = vsub.s32 0, %v2104
  %v2106 = vrot.slane %v2101, %v2105
  %2107 = vrot.lane.b32.xlu0 %v2106, 4
  %v2108 = vpop.permute.xlu0 %2107
  %2110 = vrot.lane.b32.xlu0 %v2106, 8
  %v2111 = vpop.permute.xlu0 %2110
  %2113 = vrot.lane.b32.xlu0 %v2106, 12
  %v2114 = vpop.permute.xlu0 %2113
  %2116 = vrot.lane.b32.xlu0 %v2106, 16
  %v2117 = vpop.permute.xlu0 %2116
  %2119 = vrot.lane.b32.xlu0 %v2106, 20
  %v2120 = vpop.permute.xlu0 %2119
  %v2122 = vsel %vm68, %v2101, %v2108
  %v2123 = vsel %vm2052, %v2122, %v2111
  %v2124 = vsel %vm2054, %v2123, %v2114
  %v2125 = vsel %vm2056, %v2124, %v2117
  %v2126 = vsel %vm2058, %v2125, %v2120
  %v2127 = vlaneseq
  %v2128 = vshrl.u32 %v2127, 7
  %v2129 = vsub.s32 0, %v2128
  %v2130 = vrot.slane %v2126, %v2129
  %v2131 = vmul.f32 %v2064, %v2130
  %v2132 = vmul.f32 %v2065, %v2130
  %v2134 = vlaneseq
  %v2135 = vshrl.u32 %v2134, 7
  %v2136 = vsub.s32 0, %v2135
  %v2137 = vrot.slane %v23, %v2136
  %2138 = vrot.lane.b32.xlu0 %v2137, 4
  %v2139 = vpop.permute.xlu0 %2138
  %2141 = vrot.lane.b32.xlu0 %v2137, 8
  %v2142 = vpop.permute.xlu0 %2141
  %2144 = vrot.lane.b32.xlu0 %v2137, 12
  %v2145 = vpop.permute.xlu0 %2144
  %2147 = vrot.lane.b32.xlu0 %v2137, 16
  %v2148 = vpop.permute.xlu0 %2147
  %2150 = vrot.lane.b32.xlu0 %v2137, 20
  %v2151 = vpop.permute.xlu0 %2150
  %v2153 = vsel %vm68, %v23, %v2139
  %v2154 = vsel %vm2052, %v2153, %v2142
  %v2155 = vsel %vm2054, %v2154, %v2145
  %v2156 = vsel %vm2056, %v2155, %v2148
  %v2157 = vsel %vm2058, %v2156, %v2151
  %v2158 = vlaneseq
  %v2159 = vshrl.u32 %v2158, 7
  %v2160 = vsub.s32 0, %v2159
  %v2161 = vrot.slane %v2157, %v2160
  %v2162 = vadd.f32 %v2131, %v2161
  %v2163 = vadd.f32 %v2132, %v2161
  %v2164 = vsel %vm2002, %v2162, %v493
  %v2165 = vsel %vm2002, %v2163, %v495
  %v2166 = vld [vmem:[%s3] sm:$0xff]
  %v2167 = vld [vmem:[%s3 + $0x8] sm:$0xff]
  %v2168 = vld [vmem:[%s3 + $0x10] sm:$0xff]
  %v2169 = vld [vmem:[%s3 + $0x18] sm:$0xff]
  %v2170 = vld [vmem:[%s3 + $0x20] sm:$0xff]
  %v2171 = vld [vmem:[%s3 + $0x28] sm:$0xff]
  %v2172 = vld [vmem:[%s3 + $0x30] sm:$0xff]
  %v2173 = vld [vmem:[%s3 + $0x38] sm:$0xff]
  %v2174 = vld [vmem:[%s3 + $0x40] sm:$0xff]
  %v2175 = vld [vmem:[%s3 + $0x48] sm:$0xff]
  %v2176 = vld [vmem:[%s3 + $0x50] sm:$0xff]
  %v2177 = vld [vmem:[%s3 + $0x58] sm:$0xff]
  %v2178 = vld [vmem:[%s3 + $0x60] sm:$0xff]
  %v2179 = vld [vmem:[%s3 + $0x68] sm:$0xff]
  %v2180 = vld [vmem:[%s3 + $0x70] sm:$0xff]
  %v2181 = vld [vmem:[%s3 + $0x78] sm:$0xff]
  %v2182 = vld [vmem:[%s3 + $0x80] sm:$0xff]
  %v2183 = vld [vmem:[%s3 + $0x88] sm:$0xff]
  %v2185 = vsel %vm2056, %v494, 0
  %v2188 = vsel %vm2056, %v496, 0
  %2190 = vmatprep.subr.mxu0 0.0
  %2191 = vmatpush1.msra.mxu0 %v2166
  %2192 = vmatprep.subr.mxu0 0.0
  %2193 = vmatpush1.msra.mxu0 %v2167
  %2194 = vmatprep.subr.mxu0 0.0
  %2195 = vmatpush1.msra.mxu0 %v2168
  %2196 = vmatprep.subr.mxu0 0.0
  %2197 = vmatpush1.msra.mxu0 %v2169
  %2198 = vmatprep.subr.mxu0 0.0
  %2199 = vmatpush1.msra.mxu0 %v2170
  %2200 = vmatprep.subr.mxu0 0.0
  %2201 = vmatpush1.msra.mxu0 %v2171
  %2202 = vmatprep.subr.mxu0 0.0
  %2203 = vmatpush1.msra.mxu0 %v2172
  %2204 = vmatprep.subr.mxu0 0.0
  %2205 = vmatpush1.msra.mxu0 %v2173
  %2206 = vmatprep.subr.mxu0 0.0
  %2207 = vmatpush1.msra.mxu0 %v2174
  %2208 = vmatprep.subr.mxu0 0.0
  %2209 = vmatpush1.msra.mxu0 %v2175
  %2210 = vmatprep.subr.mxu0 0.0
  %2211 = vmatpush1.msra.mxu0 %v2176
  %2212 = vmatprep.subr.mxu0 0.0
  %2213 = vmatpush1.msra.mxu0 %v2177
  %2214 = vmatprep.subr.mxu0 0.0
  %2215 = vmatpush1.msra.mxu0 %v2178
  %2216 = vmatprep.subr.mxu0 0.0
  %2217 = vmatpush1.msra.mxu0 %v2179
  %2218 = vmatprep.subr.mxu0 0.0
  %2219 = vmatpush1.msra.mxu0 %v2180
  %2220 = vmatprep.subr.mxu0 0.0
  %2221 = vmatpush1.msra.mxu0 %v2181
  %2222 = vmatprep.subr.mxu0 0.0
  %2223 = vmatpush1.msra.mxu0 %v2182
  %2224 = vmatprep.subr.mxu0 0.0
  %2225 = vmatpush1.msra.mxu0 %v2183
  %2226 = vmatprep.subr.mxu0 0.0
  %2227 = vmatpush1.msra.mxu0 0.0
  %2228 = vmatprep.subr.mxu0 0.0
  %2229 = vmatpush1.msra.mxu0 0.0
  %2230 = vmatprep.subr.mxu0 0.0
  %2231 = vmatpush1.msra.mxu0 0.0
  %2232 = vmatprep.subr.mxu0 0.0
  %2233 = vmatpush1.msra.mxu0 0.0
  %2234 = vmatprep.subr.mxu0 0.0
  %2235 = vmatpush1.msra.mxu0 0.0
  %2236 = vmatprep.subr.mxu0 0.0
  %2237 = vmatpush1.msra.mxu0 0.0
  %2238 = vmatprep.subr.mxu0 0.0
  %2239 = vmatpush1.msra.mxu0 0.0
  %2240 = vmatprep.subr.mxu0 0.0
  %2241 = vmatpush1.msra.mxu0 0.0
  %2242 = vmatprep.subr.mxu0 0.0
  %2243 = vmatpush1.msra.mxu0 0.0
  %2244 = vmatprep.subr.mxu0 0.0
  %2245 = vmatpush1.msra.mxu0 0.0
  %2246 = vmatprep.subr.mxu0 0.0
  %2247 = vmatpush1.msra.mxu0 0.0
  %2248 = vmatprep.subr.mxu0 0.0
  %2249 = vmatpush1.msra.mxu0 0.0
  %2250 = vmatprep.subr.mxu0 0.0
  %2251 = vmatpush1.msra.mxu0 0.0
  %2252 = vmatprep.subr.mxu0 0.0
  %2253 = vmatpush1.msra.mxu0 0.0
  %2254 = vmatprep.mubr.f32.mxu0 %v2185
  %2255 = vmatmul.mubr.f32.gmra.mrb[0].mxu0 %v2164
  %v2256 = vpop.f32.mrb[0].mxu0
  %v2257 = vadd.f32 0.0, %v2256
  %v2258 = vpop.f32.mrb[0].mxu0
  %2259 = vmatprep.mubr.f32.mxu0 %v2188
  %2260 = vmatmul.mubr.f32.gmra.mrb[0].mxu0 %v2165
  %v2261 = vpop.f32.mrb[0].mxu0
  %v2262 = vadd.f32 0.0, %v2261
  %v2263 = vpop.f32.mrb[0].mxu0
  %2264 = vdwg.mxu0
  %s2265 = scalar_lea.vmem %s3, 144
  %v2266 = vld [vmem:[%s2265] sm:$0xff]
  %v2267 = vld [vmem:[%s2265 + $0x8] sm:$0xff]
  %v2268 = vld [vmem:[%s2265 + $0x10] sm:$0xff]
  %v2269 = vld [vmem:[%s2265 + $0x18] sm:$0xff]
  %v2270 = vld [vmem:[%s2265 + $0x20] sm:$0xff]
  %v2271 = vld [vmem:[%s2265 + $0x28] sm:$0xff]
  %v2272 = vld [vmem:[%s2265 + $0x30] sm:$0xff]
  %v2273 = vld [vmem:[%s2265 + $0x38] sm:$0xff]
  %v2274 = vld [vmem:[%s2265 + $0x40] sm:$0xff]
  %v2275 = vld [vmem:[%s2265 + $0x48] sm:$0xff]
  %v2276 = vld [vmem:[%s2265 + $0x50] sm:$0xff]
  %v2277 = vld [vmem:[%s2265 + $0x58] sm:$0xff]
  %v2278 = vld [vmem:[%s2265 + $0x60] sm:$0xff]
  %v2279 = vld [vmem:[%s2265 + $0x68] sm:$0xff]
  %v2280 = vld [vmem:[%s2265 + $0x70] sm:$0xff]
  %v2281 = vld [vmem:[%s2265 + $0x78] sm:$0xff]
  %v2282 = vld [vmem:[%s2265 + $0x80] sm:$0xff]
  %v2283 = vld [vmem:[%s2265 + $0x88] sm:$0xff]
  %s2284 = scalar_lea.vmem %s3, 288
  %v2285 = vld [vmem:[%s2284] sm:$0xff]
  %v2286 = vld [vmem:[%s2284 + $0x8] sm:$0xff]
  %v2287 = vld [vmem:[%s2284 + $0x10] sm:$0xff]
  %v2288 = vld [vmem:[%s2284 + $0x18] sm:$0xff]
  %v2289 = vld [vmem:[%s2284 + $0x20] sm:$0xff]
  %v2290 = vld [vmem:[%s2284 + $0x28] sm:$0xff]
  %v2291 = vld [vmem:[%s2284 + $0x30] sm:$0xff]
  %v2292 = vld [vmem:[%s2284 + $0x38] sm:$0xff]
  %v2293 = vld [vmem:[%s2284 + $0x40] sm:$0xff]
  %v2294 = vld [vmem:[%s2284 + $0x48] sm:$0xff]
  %v2295 = vld [vmem:[%s2284 + $0x50] sm:$0xff]
  %v2296 = vld [vmem:[%s2284 + $0x58] sm:$0xff]
  %v2297 = vld [vmem:[%s2284 + $0x60] sm:$0xff]
  %v2298 = vld [vmem:[%s2284 + $0x68] sm:$0xff]
  %v2299 = vld [vmem:[%s2284 + $0x70] sm:$0xff]
  %v2300 = vld [vmem:[%s2284 + $0x78] sm:$0xff]
  %v2301 = vld [vmem:[%s2284 + $0x80] sm:$0xff]
  %v2302 = vld [vmem:[%s2284 + $0x88] sm:$0xff]
  %v2303 = vlaneseq
  %v2304 = vshrl.u32 %v2303, 7
  %v2305 = vadd.s32 %v2304, 8
  %vm2306 = vcmp.eq.s32.totalorder %v2304, 5
  %vm2307 = vcmp.eq.s32.totalorder %v2305, 5
  %vm2308 = vcmp.eq.s32.totalorder %v2304, 11
  %vm2309 = vcmp.eq.s32.totalorder %v2305, 11
  %vm2310 = vmor %vm2306, %vm2308
  %vm2311 = vmor %vm2307, %vm2309
  %v2314 = vrot.slane %v2257, 1
  %v2315 = vrot.slane %v2262, 1
  %v2316 = vsel %vm40, %v2314, %v2315
  %vm2319 = vcmask 1042432
  %v2320 = vsel %vm2319, %v2315, 0.0
  %v2321 = vsel %vm2310, 0.0, %v2316
  %v2322 = vsel %vm2311, 0.0, %v2320
  %v2323 = vld [vmem:[%s0] ss:$3 sm:$0xff]
  %s2324 = scalar_lea.vmem %s0, 24
  %v2325 = vld [vmem:[%s2324] ss:$3 sm:$0xf]
  %v2326 = vlaneseq
  %v2327 = vshrl.u32 %v2326, 7
  %v2328 = vsub.s32 0, %v2327
  %v2329 = vrot.slane %v21, %v2328
  %2330 = vmatprep.subr.mxu0 0.0
  %2331 = vmatpush1.msra.mxu0 %v2266
  %2332 = vmatprep.subr.mxu0 0.0
  %2333 = vmatpush1.msra.mxu0 %v2267
  %2334 = vmatprep.subr.mxu0 0.0
  %2335 = vmatpush1.msra.mxu0 %v2268
  %2336 = vmatprep.subr.mxu0 0.0
  %2337 = vmatpush1.msra.mxu0 %v2269
  %2338 = vmatprep.subr.mxu0 0.0
  %2339 = vmatpush1.msra.mxu0 %v2270
  %2340 = vmatprep.subr.mxu0 0.0
  %2341 = vmatpush1.msra.mxu0 %v2271
  %2342 = vmatprep.subr.mxu0 0.0
  %2343 = vmatpush1.msra.mxu0 %v2272
  %2344 = vmatprep.subr.mxu0 0.0
  %2345 = vmatpush1.msra.mxu0 %v2273
  %2346 = vmatprep.subr.mxu0 0.0
  %2347 = vmatpush1.msra.mxu0 %v2274
  %2348 = vmatprep.subr.mxu0 0.0
  %2349 = vmatpush1.msra.mxu0 %v2275
  %2350 = vmatprep.subr.mxu0 0.0
  %2351 = vmatpush1.msra.mxu0 %v2276
  %2352 = vmatprep.subr.mxu0 0.0
  %2353 = vmatpush1.msra.mxu0 %v2277
  %2354 = vmatprep.subr.mxu0 0.0
  %2355 = vmatpush1.msra.mxu0 %v2278
  %2356 = vmatprep.subr.mxu0 0.0
  %2357 = vmatpush1.msra.mxu0 %v2279
  %2358 = vmatprep.subr.mxu0 0.0
  %2359 = vmatpush1.msra.mxu0 %v2280
  %2360 = vmatprep.subr.mxu0 0.0
  %2361 = vmatpush1.msra.mxu0 %v2281
  %2362 = vmatprep.subr.mxu0 0.0
  %2363 = vmatpush1.msra.mxu0 %v2282
  %2364 = vmatprep.subr.mxu0 0.0
  %2365 = vmatpush1.msra.mxu0 %v2283
  %2366 = vmatprep.subr.mxu0 0.0
  %2367 = vmatpush1.msra.mxu0 0.0
  %2368 = vmatprep.subr.mxu0 0.0
  %2369 = vmatpush1.msra.mxu0 0.0
  %2370 = vmatprep.subr.mxu0 0.0
  %2371 = vmatpush1.msra.mxu0 0.0
  %2372 = vmatprep.subr.mxu0 0.0
  %2373 = vmatpush1.msra.mxu0 0.0
  %2374 = vmatprep.subr.mxu0 0.0
  %2375 = vmatpush1.msra.mxu0 0.0
  %2376 = vmatprep.subr.mxu0 0.0
  %2377 = vmatpush1.msra.mxu0 0.0
  %2378 = vmatprep.subr.mxu0 0.0
  %2379 = vmatpush1.msra.mxu0 0.0
  %2380 = vmatprep.subr.mxu0 0.0
  %2381 = vmatpush1.msra.mxu0 0.0
  %2382 = vmatprep.subr.mxu0 0.0
  %2383 = vmatpush1.msra.mxu0 0.0
  %2384 = vmatprep.subr.mxu0 0.0
  %2385 = vmatpush1.msra.mxu0 0.0
  %2386 = vmatprep.subr.mxu0 0.0
  %2387 = vmatpush1.msra.mxu0 0.0
  %2388 = vmatprep.subr.mxu0 0.0
  %2389 = vmatpush1.msra.mxu0 0.0
  %2390 = vmatprep.subr.mxu0 0.0
  %2391 = vmatpush1.msra.mxu0 0.0
  %2392 = vmatprep.subr.mxu0 0.0
  %2393 = vmatpush1.msra.mxu0 0.0
  %2394 = vmatprep.mubr.f32.mxu0 %v2185
  %2395 = vmatmul.mubr.f32.gmra.mrb[0].mxu0 %v2164
  %v2396 = vpop.f32.mrb[0].mxu0
  %v2397 = vadd.f32 %v2329, %v2396
  %v2398 = vpop.f32.mrb[0].mxu0
  %2399 = vmatprep.mubr.f32.mxu0 %v2188
  %2400 = vmatmul.mubr.f32.gmra.mrb[0].mxu0 %v2165
  %v2401 = vpop.f32.mrb[0].mxu0
  %v2402 = vadd.f32 %v2329, %v2401
  %v2403 = vpop.f32.mrb[0].mxu0
  %2404 = vdwg.mxu0
  %v2405 = vxor.u32 %v2397, 2147483648
  %v2406 = vxor.u32 %v2402, 2147483648
  %v2407 = vmul.f32 %v2405, 1.442695
  %v2408 = vpow.pop %v2407
  %v2409 = vmul.f32 %v2406, 1.442695
  %v2410 = vpow.pop %v2409
  %v2411 = vadd.f32 %v2408, 1.0
  %v2412 = vadd.f32 %v2410, 1.0
  %v2413 = vrcp.pop %v2411
  %v2414 = vmul.f32 1.0, %v2413
  %v2415 = vrcp.pop %v2412
  %v2416 = vmul.f32 1.0, %v2415
  %v2417 = vmul.f32 %v2323, %v2414
  %v2418 = vmul.f32 %v2325, %v2416
  %2419 = vst.msk [vmem:[%s5] sm:$0xff] %vm91, %v2417
  %vm2420 = vcmask 584704
  %2421 = vst.msk [vmem:[%s5 + $0x8] sm:$0xf] %vm2420, %v2418
  %s2422 = scalar_lea.vmem %s0, 1
  %v2423 = vld [vmem:[%s2422] ss:$3 sm:$0xff]
  %s2424 = scalar_lea.vmem %s0, 25
  %v2425 = vld [vmem:[%s2424] ss:$3 sm:$0xf]
  %2426 = vmatprep.subr.mxu0 0.0
  %2427 = vmatpush1.msra.mxu0 %v2285
  %2428 = vmatprep.subr.mxu0 0.0
  %2429 = vmatpush1.msra.mxu0 %v2286
  %2430 = vmatprep.subr.mxu0 0.0
  %2431 = vmatpush1.msra.mxu0 %v2287
  %2432 = vmatprep.subr.mxu0 0.0
  %2433 = vmatpush1.msra.mxu0 %v2288
  %2434 = vmatprep.subr.mxu0 0.0
  %2435 = vmatpush1.msra.mxu0 %v2289
  %2436 = vmatprep.subr.mxu0 0.0
  %2437 = vmatpush1.msra.mxu0 %v2290
  %2438 = vmatprep.subr.mxu0 0.0
  %2439 = vmatpush1.msra.mxu0 %v2291
  %2440 = vmatprep.subr.mxu0 0.0
  %2441 = vmatpush1.msra.mxu0 %v2292
  %2442 = vmatprep.subr.mxu0 0.0
  %2443 = vmatpush1.msra.mxu0 %v2293
  %2444 = vmatprep.subr.mxu0 0.0
  %2445 = vmatpush1.msra.mxu0 %v2294
  %2446 = vmatprep.subr.mxu0 0.0
  %2447 = vmatpush1.msra.mxu0 %v2295
  %2448 = vmatprep.subr.mxu0 0.0
  %2449 = vmatpush1.msra.mxu0 %v2296
  %2450 = vmatprep.subr.mxu0 0.0
  %2451 = vmatpush1.msra.mxu0 %v2297
  %2452 = vmatprep.subr.mxu0 0.0
  %2453 = vmatpush1.msra.mxu0 %v2298
  %2454 = vmatprep.subr.mxu0 0.0
  %2455 = vmatpush1.msra.mxu0 %v2299
  %2456 = vmatprep.subr.mxu0 0.0
  %2457 = vmatpush1.msra.mxu0 %v2300
  %2458 = vmatprep.subr.mxu0 0.0
  %2459 = vmatpush1.msra.mxu0 %v2301
  %2460 = vmatprep.subr.mxu0 0.0
  %2461 = vmatpush1.msra.mxu0 %v2302
  %2462 = vmatprep.subr.mxu0 0.0
  %2463 = vmatpush1.msra.mxu0 0.0
  %2464 = vmatprep.subr.mxu0 0.0
  %2465 = vmatpush1.msra.mxu0 0.0
  %2466 = vmatprep.subr.mxu0 0.0
  %2467 = vmatpush1.msra.mxu0 0.0
  %2468 = vmatprep.subr.mxu0 0.0
  %2469 = vmatpush1.msra.mxu0 0.0
  %2470 = vmatprep.subr.mxu0 0.0
  %2471 = vmatpush1.msra.mxu0 0.0
  %2472 = vmatprep.subr.mxu0 0.0
  %2473 = vmatpush1.msra.mxu0 0.0
  %2474 = vmatprep.subr.mxu0 0.0
  %2475 = vmatpush1.msra.mxu0 0.0
  %2476 = vmatprep.subr.mxu0 0.0
  %2477 = vmatpush1.msra.mxu0 0.0
  %2478 = vmatprep.subr.mxu0 0.0
  %2479 = vmatpush1.msra.mxu0 0.0
  %2480 = vmatprep.subr.mxu0 0.0
  %2481 = vmatpush1.msra.mxu0 0.0
  %2482 = vmatprep.subr.mxu0 0.0
  %2483 = vmatpush1.msra.mxu0 0.0
  %2484 = vmatprep.subr.mxu0 0.0
  %2485 = vmatpush1.msra.mxu0 0.0
  %2486 = vmatprep.subr.mxu0 0.0
  %2487 = vmatpush1.msra.mxu0 0.0
  %2488 = vmatprep.subr.mxu0 0.0
  %2489 = vmatpush1.msra.mxu0 0.0
  %2490 = vmatprep.mubr.f32.mxu0 %v2185
  %2491 = vmatmul.mubr.f32.gmra.mrb[0].mxu0 %v2164
  %v2492 = vpop.f32.mrb[0].mxu0
  %v2493 = vadd.f32 %v2329, %v2492
  %v2494 = vpop.f32.mrb[0].mxu0
  %2495 = vmatprep.mubr.f32.mxu0 %v2188
  %2496 = vmatmul.mubr.f32.gmra.mrb[0].mxu0 %v2165
  %v2497 = vpop.f32.mrb[0].mxu0
  %v2498 = vadd.f32 %v2329, %v2497
  %v2499 = vpop.f32.mrb[0].mxu0
  %2500 = vdwg.mxu0
  %v2501 = vxor.u32 %v2493, 2147483648
  %v2502 = vxor.u32 %v2498, 2147483648
  %v2503 = vmul.f32 %v2501, 1.442695
  %v2504 = vpow.pop %v2503
  %v2505 = vmul.f32 %v2502, 1.442695
  %v2506 = vpow.pop %v2505
  %v2507 = vadd.f32 %v2504, 1.0
  %v2508 = vadd.f32 %v2506, 1.0
  %v2509 = vrcp.pop %v2507
  %v2510 = vmul.f32 1.0, %v2509
  %v2511 = vrcp.pop %v2508
  %v2512 = vmul.f32 1.0, %v2511
  %v2513 = vmul.f32 %v2423, %v2510
  %v2514 = vmul.f32 %v2425, %v2512
  %2515 = vst.msk [vmem:[%s5 + $0xc] sm:$0xff] %vm91, %v2513
  %2516 = vst.msk [vmem:[%s5 + $0x14] sm:$0xf] %vm2420, %v2514
  %s2517 = scalar_lea.vmem %s0, 2
  %v2518 = vld [vmem:[%s2517] ss:$3 sm:$0xff]
  %s2519 = scalar_lea.vmem %s0, 26
  %v2520 = vld [vmem:[%s2519] ss:$3 sm:$0xf]
  %v2521 = vadd.f32 %v2321, %v2329
  %v2522 = vadd.f32 %v2322, %v2329
  %v2523 = vxor.u32 %v2521, 2147483648
  %v2524 = vxor.u32 %v2522, 2147483648
  %v2525 = vmul.f32 %v2523, 1.442695
  %v2526 = vpow.pop %v2525
  %v2527 = vmul.f32 %v2524, 1.442695
  %v2528 = vpow.pop %v2527
  %v2529 = vadd.f32 %v2526, 1.0
  %v2530 = vadd.f32 %v2528, 1.0
  %v2531 = vrcp.pop %v2529
  %v2532 = vmul.f32 1.0, %v2531
  %v2533 = vrcp.pop %v2530
  %v2534 = vmul.f32 1.0, %v2533
  %v2535 = vmul.f32 %v2518, %v2532
  %v2536 = vmul.f32 %v2520, %v2534
  %2537 = vst.msk [vmem:[%s5 + $0x18] sm:$0xff] %vm91, %v2535
  %2538 = vst.msk [vmem:[%s5 + $0x20] sm:$0xf] %vm2420, %v2536
  // Predicated region
  $region22: #{mra_forward.1} parent=0 // pred_check
    _
  $region23: #{mra_forward.1} parent=0 // pred_check_branch
    %2540 = sbr.rel (0) target = $region25
  $region24: #{mra_forward.1} parent=0 // pred_region
    _
  $region25: #{mra_forward.1} parent=0 // pred_fallthru
    _
  // Predicated region
  $region26: #{mra_forward.1} parent=0 // pred_check
    _
  $region27: #{mra_forward.1} parent=0 // pred_check_branch
    %2542 = sbr.rel (0) target = $region29
  $region28: #{mra_forward.1} parent=0 // pred_region
    _
  $region29: #{mra_forward.1} parent=0 // pred_fallthru
    _

</llo_original>
